<compile_context>
chip_gen: v7x
topology: tpu7x:2x2x1
jax: 0.10.0
libtpu: 0.0.40
codegen_flags: <defaults>
</compile_context>

<pallas_src>
import jax
import jax.numpy as jnp
from jax.experimental import pallas as pl
from jax.experimental.pallas import tpu as pltpu

# Real (unpadded) sizes from the PyTorch module.
D_IMG = 784           # flattened 28x28 image
D_LAB = 10            # label embedding dim (nn.Embedding(10, 10))
D1, D2, D3, D4 = 1024, 512, 256, 128
D_OUT = 1

# TPU-friendly padded sizes.
D_LAB_PAD = 16        # 10 -> 16 (one bf16 sublane tile; extra rows/cols zero)
D_OUT_PAD = 128       # 1  -> 128 (only column 0 is meaningful)
MAX_TILE_B = 512      # max batch rows per grid step


def _cdiv(a, b):
    return -(-a // b)


def _round_up(x, m):
    return ((x + m - 1) // m) * m


def _choose_tile_b(B):
    """Batch tile: multiple of 16, balanced, >= 2 grid steps once B >= 64."""
    if B < 64:
        return _round_up(B, 16)
    n_steps = max(2, _cdiv(B, MAX_TILE_B))        # >=2 for v7x megacore
    return min(_round_up(_cdiv(B, n_steps), 16), MAX_TILE_B)


def _leaky_relu(h):
    # Identical to LeakyReLU(0.2) for slope < 1; one VALU op fewer than where().
    return jnp.maximum(h, 0.2 * h)


def discriminator_kernel(x_ref, c_ref,
                         w1x_ref, w1c_ref, b1_ref,
                         w2_ref, b2_ref,
                         w3_ref, b3_ref,
                         w4_ref, b4_ref,
                         w5_ref, b5_ref,
                         out_ref):
    """Fused 5-layer MLP: (Linear + LeakyReLU(0.2)) x4 + Linear + Sigmoid.

    Weights are bf16; matmuls accumulate in f32 on the MXU; biases,
    activations and the sigmoid stay f32.  Layer 1 is split into the image
    part (K=784) and the label-embedding part (K=16) so no concatenated /
    padded copy of the input ever exists in HBM.
    """
    x = x_ref[...].astype(jnp.bfloat16)           # (tile_b, 784)
    c = c_ref[...].astype(jnp.bfloat16)           # (tile_b, 16)

    h = (jnp.dot(x, w1x_ref[...], preferred_element_type=jnp.float32)
         + jnp.dot(c, w1c_ref[...], preferred_element_type=jnp.float32)
         + b1_ref[...])
    h = _leaky_relu(h)
    # Dropout(0.3) -> identity in eval mode.
    h = jnp.dot(h.astype(jnp.bfloat16), w2_ref[...],
                preferred_element_type=jnp.float32) + b2_ref[...]
    h = _leaky_relu(h)
    h = jnp.dot(h.astype(jnp.bfloat16), w3_ref[...],
                preferred_element_type=jnp.float32) + b3_ref[...]
    h = _leaky_relu(h)
    h = jnp.dot(h.astype(jnp.bfloat16), w4_ref[...],
                preferred_element_type=jnp.float32) + b4_ref[...]
    h = _leaky_relu(h)
    logits = jnp.dot(h.astype(jnp.bfloat16), w5_ref[...],
                     preferred_element_type=jnp.float32) + b5_ref[...]
    out_ref[...] = jax.nn.sigmoid(logits)


def _resident(shape):
    # Full-array block with a constant index map: DMA'd once, stays resident
    # in VMEM across the whole batch grid.
    return pl.BlockSpec(shape, lambda i: (0, 0))


@jax.jit
def discriminator_forward(x, labels, params):
    """x: (B, 784) float32, labels: (B,) int32 in [0, 10). Returns (B, 1) f32."""
    B = x.shape[0]
    tile_b = _choose_tile_b(B)
    b_pad = _round_up(B, tile_b)
    n_b = b_pad // tile_b

    # Embedding gather (tiny: B x 16 floats); table is pre-padded 10 -> 16.
    c = params["embed"][labels]                               # (B, 16) f32
    if b_pad != B:
        x = jnp.pad(x, ((0, b_pad - B), (0, 0)))
        c = jnp.pad(c, ((0, b_pad - B), (0, 0)))

    in_specs = [
        pl.BlockSpec((tile_b, D_IMG), lambda i: (i, 0)),      # batch-tiled x
        pl.BlockSpec((tile_b, D_LAB_PAD), lambda i: (i, 0)),  # batch-tiled c
        _resident((D_IMG, D1)), _resident((D_LAB_PAD, D1)), _resident((1, D1)),
        _resident((D1, D2)), _resident((1, D2)),
        _resident((D2, D3)), _resident((1, D3)),
        _resident((D3, D4)), _resident((1, D4)),
        _resident((D4, D_OUT_PAD)), _resident((1, D_OUT_PAD)),
    ]

    out_pad = pl.pallas_call(
        discriminator_kernel,
        out_shape=jax.ShapeDtypeStruct((b_pad, D_OUT_PAD), jnp.float32),
        grid_spec=pltpu.PrefetchScalarGridSpec(
            num_scalar_prefetch=0,
            grid=(n_b,),
            in_specs=in_specs,
            out_specs=pl.BlockSpec((tile_b, D_OUT_PAD), lambda i: (i, 0)),
        ),
        compiler_params=pltpu.CompilerParams(
            dimension_semantics=("parallel",),
            vmem_limit_bytes=32 << 20,
        ),
    )(
        x, c,
        params["w1x"], params["w1c"], params["b1"],
        params["w2"], params["b2"],
        params["w3"], params["b3"],
        params["w4"], params["b4"],
        params["w5"], params["b5"],
    )
    return out_pad[:B, :D_OUT]


def init_params(key):
    """Deterministic init matching the PyTorch module's shapes.

    Weights are stored (in, out), padded to TPU-friendly shapes, bf16;
    biases f32.  Layer 1 is split into image rows (784) and label rows
    (10, padded to 16).
    """
    ks = jax.random.split(key, 6)

    def linear(k, din, dout, dout_pad=None):
        dout_pad = dout if dout_pad is None else dout_pad
        w = jax.random.normal(k, (din, dout), jnp.float32) * 0.02
        w_pad = jnp.zeros((din, dout_pad), jnp.float32).at[:, :dout].set(w)
        b_pad = jnp.zeros((1, dout_pad), jnp.float32)
        return w_pad.astype(jnp.bfloat16), b_pad

    # nn.Embedding(10, 10), zero-padded to 16 columns.
    embed = jnp.zeros((10, D_LAB_PAD), jnp.float32).at[:, :D_LAB].set(
        jax.random.normal(ks[0], (10, D_LAB), jnp.float32))

    # Linear(794, 1024) split into image part (784 rows) and label part.
    w1_full = jax.random.normal(ks[1], (D_IMG + D_LAB, D1), jnp.float32) * 0.02
    w1x = w1_full[:D_IMG].astype(jnp.bfloat16)                       # (784, 1024)
    w1c = (jnp.zeros((D_LAB_PAD, D1), jnp.float32)
           .at[:D_LAB].set(w1_full[D_IMG:])).astype(jnp.bfloat16)    # (16, 1024)
    b1 = jnp.zeros((1, D1), jnp.float32)

    w2, b2 = linear(ks[2], D1, D2)                                   # Linear(1024, 512)
    w3, b3 = linear(ks[3], D2, D3)                                   # Linear(512, 256)
    w4, b4 = linear(ks[4], D3, D4)                                   # Linear(256, 128)
    w5, b5 = linear(ks[5], D4, D_OUT, dout_pad=D_OUT_PAD)            # Linear(128, 1)

    return dict(embed=embed, w1x=w1x, w1c=w1c, b1=b1,
                w2=w2, b2=b2, w3=w3, b3=b3, w4=w4, b4=b4, w5=w5, b5=b5)


def reference_forward(x, labels, params):
    """Pure-JAX reference with identical bf16-weight / f32-accumulate math."""
    c = params["embed"][labels].astype(jnp.bfloat16)
    xb = x.astype(jnp.bfloat16)
    h = (jnp.dot(xb, params["w1x"], preferred_element_type=jnp.float32)
         + jnp.dot(c, params["w1c"], preferred_element_type=jnp.float32)
         + params["b1"])
    h = jnp.maximum(h, 0.2 * h)
    for wi, bi in (("w2", "b2"), ("w3", "b3"), ("w4", "b4")):
        h = jnp.dot(h.astype(jnp.bfloat16), params[wi],
                    preferred_element_type=jnp.float32) + params[bi]
        h = jnp.maximum(h, 0.2 * h)
    out = jnp.dot(h.astype(jnp.bfloat16), params["w5"],
                  preferred_element_type=jnp.float32) + params["b5"]
    return jax.nn.sigmoid(out)[:, :D_OUT]


if __name__ == "__main__":
    key = jax.random.PRNGKey(0)
    k_param, k_x, k_lab = jax.random.split(key, 3)

    B = 2
    params = init_params(k_param)
    x = jax.random.normal(k_x, (B, D_IMG), jnp.float32)          # flattened 28x28 images
    labels = jax.random.randint(k_lab, (B,), 0, 10, jnp.int32)   # class labels in [0, 10)

    out = discriminator_forward(x, labels, params)
    out = jax.block_until_ready(out)

    ref = reference_forward(x, labels, params)
    assert out.shape == (B, 1), out.shape
    assert jnp.allclose(out, ref, atol=1e-3, rtol=1e-3), (out, ref)

    print("KERNEL_OK")
</pallas_src>

<mosaic_0001>
module attributes {stable_mosaic.version = 11 : i64} {
  func.func @discriminator_kernel(%arg0: i32, %arg1: memref<16x784xf32, #tpu.memory_space<vmem>>, %arg2: memref<16x16xf32, #tpu.memory_space<vmem>>, %arg3: memref<784x1024xbf16, #tpu.memory_space<vmem>>, %arg4: memref<16x1024xbf16, #tpu.memory_space<vmem>>, %arg5: memref<1x1024xf32, #tpu.memory_space<vmem>>, %arg6: memref<1024x512xbf16, #tpu.memory_space<vmem>>, %arg7: memref<1x512xf32, #tpu.memory_space<vmem>>, %arg8: memref<512x256xbf16, #tpu.memory_space<vmem>>, %arg9: memref<1x256xf32, #tpu.memory_space<vmem>>, %arg10: memref<256x128xbf16, #tpu.memory_space<vmem>>, %arg11: memref<1x128xf32, #tpu.memory_space<vmem>>, %arg12: memref<128x128xbf16, #tpu.memory_space<vmem>>, %arg13: memref<1x128xf32, #tpu.memory_space<vmem>>, %arg14: memref<16x128xf32, #tpu.memory_space<vmem>>) attributes {dimension_semantics = [#tpu.dimension_semantics<parallel>], iteration_bounds = array<i64: 1>, scalar_prefetch = 0 : i64, scratch_operands = 0 : i64, tpu.core_type = #tpu.core_type<tc>, window_params = [{transform_indices = @transform_0, window_bounds = array<i64: 16, 784>}, {transform_indices = @transform_1, window_bounds = array<i64: 16, 16>}, {pipeline_mode = #tpu.pipeline_mode<synchronous>, transform_indices = @transform_2, window_bounds = array<i64: 784, 1024>}, {pipeline_mode = #tpu.pipeline_mode<synchronous>, transform_indices = @transform_3, window_bounds = array<i64: 16, 1024>}, {pipeline_mode = #tpu.pipeline_mode<synchronous>, transform_indices = @transform_4, window_bounds = array<i64: 1, 1024>}, {pipeline_mode = #tpu.pipeline_mode<synchronous>, transform_indices = @transform_5, window_bounds = array<i64: 1024, 512>}, {pipeline_mode = #tpu.pipeline_mode<synchronous>, transform_indices = @transform_6, window_bounds = array<i64: 1, 512>}, {pipeline_mode = #tpu.pipeline_mode<synchronous>, transform_indices = @transform_7, window_bounds = array<i64: 512, 256>}, {pipeline_mode = #tpu.pipeline_mode<synchronous>, transform_indices = @transform_8, window_bounds = array<i64: 1, 256>}, {pipeline_mode = #tpu.pipeline_mode<synchronous>, transform_indices = @transform_9, window_bounds = array<i64: 256, 128>}, {pipeline_mode = #tpu.pipeline_mode<synchronous>, transform_indices = @transform_10, window_bounds = array<i64: 1, 128>}, {pipeline_mode = #tpu.pipeline_mode<synchronous>, transform_indices = @transform_11, window_bounds = array<i64: 128, 128>}, {pipeline_mode = #tpu.pipeline_mode<synchronous>, transform_indices = @transform_12, window_bounds = array<i64: 1, 128>}, {transform_indices = @transform_13, window_bounds = array<i64: 16, 128>}]} {
    %c0 = arith.constant 0 : index
    %c0_0 = arith.constant 0 : index
    %0 = vector.load %arg1[%c0, %c0_0] : memref<16x784xf32, #tpu.memory_space<vmem>>, vector<16x784xf32>
    %1 = arith.truncf %0 : vector<16x784xf32> to vector<16x784xbf16>
    %c0_1 = arith.constant 0 : index
    %c0_2 = arith.constant 0 : index
    %2 = vector.load %arg2[%c0_1, %c0_2] : memref<16x16xf32, #tpu.memory_space<vmem>>, vector<16x16xf32>
    %3 = arith.truncf %2 : vector<16x16xf32> to vector<16x16xbf16>
    %c0_3 = arith.constant 0 : index
    %c0_4 = arith.constant 0 : index
    %4 = vector.load %arg3[%c0_3, %c0_4] : memref<784x1024xbf16, #tpu.memory_space<vmem>>, vector<784x1024xbf16>
    %cst = arith.constant dense<0.000000e+00> : vector<16x1024xf32>
    %5 = tpu.matmul %1, %4, %cst {dimension_numbers = #tpu.dot_dimension_numbers<[1], [0], [0], [1], [0, 0, 1, 1], [], []>} : vector<16x784xbf16>, vector<784x1024xbf16>, vector<16x1024xf32> -> vector<16x1024xf32>
    %c0_5 = arith.constant 0 : index
    %c0_6 = arith.constant 0 : index
    %6 = vector.load %arg4[%c0_5, %c0_6] : memref<16x1024xbf16, #tpu.memory_space<vmem>>, vector<16x1024xbf16>
    %cst_7 = arith.constant dense<0.000000e+00> : vector<16x1024xf32>
    %7 = tpu.matmul %3, %6, %cst_7 {dimension_numbers = #tpu.dot_dimension_numbers<[1], [0], [0], [1], [0, 0, 1, 1], [], []>} : vector<16x16xbf16>, vector<16x1024xbf16>, vector<16x1024xf32> -> vector<16x1024xf32>
    %8 = arith.addf %5, %7 : vector<16x1024xf32>
    %c0_8 = arith.constant 0 : index
    %c0_9 = arith.constant 0 : index
    %9 = vector.load %arg5[%c0_8, %c0_9] : memref<1x1024xf32, #tpu.memory_space<vmem>>, vector<1x1024xf32>
    %10 = vector.broadcast %9 : vector<1x1024xf32> to vector<16x1024xf32>
    %11 = arith.addf %8, %10 : vector<16x1024xf32>
    %cst_10 = arith.constant 2.000000e-01 : f32
    %12 = vector.broadcast %cst_10 : f32 to vector<16x1024xf32>
    %13 = arith.mulf %12, %11 : vector<16x1024xf32>
    %14 = arith.maximumf %11, %13 : vector<16x1024xf32>
    %15 = arith.truncf %14 : vector<16x1024xf32> to vector<16x1024xbf16>
    %c0_11 = arith.constant 0 : index
    %c0_12 = arith.constant 0 : index
    %16 = vector.load %arg6[%c0_11, %c0_12] : memref<1024x512xbf16, #tpu.memory_space<vmem>>, vector<1024x512xbf16>
    %cst_13 = arith.constant dense<0.000000e+00> : vector<16x512xf32>
    %17 = tpu.matmul %15, %16, %cst_13 {dimension_numbers = #tpu.dot_dimension_numbers<[1], [0], [0], [1], [0, 0, 1, 1], [], []>} : vector<16x1024xbf16>, vector<1024x512xbf16>, vector<16x512xf32> -> vector<16x512xf32>
    %c0_14 = arith.constant 0 : index
    %c0_15 = arith.constant 0 : index
    %18 = vector.load %arg7[%c0_14, %c0_15] : memref<1x512xf32, #tpu.memory_space<vmem>>, vector<1x512xf32>
    %19 = vector.broadcast %18 : vector<1x512xf32> to vector<16x512xf32>
    %20 = arith.addf %17, %19 : vector<16x512xf32>
    %cst_16 = arith.constant 2.000000e-01 : f32
    %21 = vector.broadcast %cst_16 : f32 to vector<16x512xf32>
    %22 = arith.mulf %21, %20 : vector<16x512xf32>
    %23 = arith.maximumf %20, %22 : vector<16x512xf32>
    %24 = arith.truncf %23 : vector<16x512xf32> to vector<16x512xbf16>
    %c0_17 = arith.constant 0 : index
    %c0_18 = arith.constant 0 : index
    %25 = vector.load %arg8[%c0_17, %c0_18] : memref<512x256xbf16, #tpu.memory_space<vmem>>, vector<512x256xbf16>
    %cst_19 = arith.constant dense<0.000000e+00> : vector<16x256xf32>
    %26 = tpu.matmul %24, %25, %cst_19 {dimension_numbers = #tpu.dot_dimension_numbers<[1], [0], [0], [1], [0, 0, 1, 1], [], []>} : vector<16x512xbf16>, vector<512x256xbf16>, vector<16x256xf32> -> vector<16x256xf32>
    %c0_20 = arith.constant 0 : index
    %c0_21 = arith.constant 0 : index
    %27 = vector.load %arg9[%c0_20, %c0_21] : memref<1x256xf32, #tpu.memory_space<vmem>>, vector<1x256xf32>
    %28 = vector.broadcast %27 : vector<1x256xf32> to vector<16x256xf32>
    %29 = arith.addf %26, %28 : vector<16x256xf32>
    %cst_22 = arith.constant 2.000000e-01 : f32
    %30 = vector.broadcast %cst_22 : f32 to vector<16x256xf32>
    %31 = arith.mulf %30, %29 : vector<16x256xf32>
    %32 = arith.maximumf %29, %31 : vector<16x256xf32>
    %33 = arith.truncf %32 : vector<16x256xf32> to vector<16x256xbf16>
    %c0_23 = arith.constant 0 : index
    %c0_24 = arith.constant 0 : index
    %34 = vector.load %arg10[%c0_23, %c0_24] : memref<256x128xbf16, #tpu.memory_space<vmem>>, vector<256x128xbf16>
    %cst_25 = arith.constant dense<0.000000e+00> : vector<16x128xf32>
    %35 = tpu.matmul %33, %34, %cst_25 {dimension_numbers = #tpu.dot_dimension_numbers<[1], [0], [0], [1], [0, 0, 1, 1], [], []>} : vector<16x256xbf16>, vector<256x128xbf16>, vector<16x128xf32> -> vector<16x128xf32>
    %c0_26 = arith.constant 0 : index
    %c0_27 = arith.constant 0 : index
    %36 = vector.load %arg11[%c0_26, %c0_27] : memref<1x128xf32, #tpu.memory_space<vmem>>, vector<1x128xf32>
    %37 = vector.broadcast %36 : vector<1x128xf32> to vector<16x128xf32>
    %38 = arith.addf %35, %37 : vector<16x128xf32>
    %cst_28 = arith.constant 2.000000e-01 : f32
    %39 = vector.broadcast %cst_28 : f32 to vector<16x128xf32>
    %40 = arith.mulf %39, %38 : vector<16x128xf32>
    %41 = arith.maximumf %38, %40 : vector<16x128xf32>
    %42 = arith.truncf %41 : vector<16x128xf32> to vector<16x128xbf16>
    %c0_29 = arith.constant 0 : index
    %c0_30 = arith.constant 0 : index
    %43 = vector.load %arg12[%c0_29, %c0_30] : memref<128x128xbf16, #tpu.memory_space<vmem>>, vector<128x128xbf16>
    %cst_31 = arith.constant dense<0.000000e+00> : vector<16x128xf32>
    %44 = tpu.matmul %42, %43, %cst_31 {dimension_numbers = #tpu.dot_dimension_numbers<[1], [0], [0], [1], [0, 0, 1, 1], [], []>} : vector<16x128xbf16>, vector<128x128xbf16>, vector<16x128xf32> -> vector<16x128xf32>
    %c0_32 = arith.constant 0 : index
    %c0_33 = arith.constant 0 : index
    %45 = vector.load %arg13[%c0_32, %c0_33] : memref<1x128xf32, #tpu.memory_space<vmem>>, vector<1x128xf32>
    %46 = vector.broadcast %45 : vector<1x128xf32> to vector<16x128xf32>
    %47 = arith.addf %44, %46 : vector<16x128xf32>
    %48 = arith.negf %47 : vector<16x128xf32>
    %49 = math.exp %48 : vector<16x128xf32>
    %cst_34 = arith.constant 1.000000e+00 : f32
    %50 = vector.broadcast %cst_34 : f32 to vector<16x128xf32>
    %51 = arith.addf %50, %49 : vector<16x128xf32>
    %52 = arith.divf %50, %51 : vector<16x128xf32>
    %c0_35 = arith.constant 0 : index
    %c0_36 = arith.constant 0 : index
    %53 = vector.load %arg14[%c0_35, %c0_36] : memref<16x128xf32, #tpu.memory_space<vmem>>, vector<16x128xf32>
    tpu.vector_store %arg14[%c0_35, %c0_36], %52 {strides = array<i32>} : memref<16x128xf32, #tpu.memory_space<vmem>>, vector<16x128xf32>,
    return
  }
  func.func @transform_0(%arg0: i32) -> (i32, i32) {
    %c0_i32 = arith.constant 0 : i32
    %c0_i32_0 = arith.constant 0 : i32
    return %arg0, %c0_i32 : i32, i32
  }
  func.func @transform_1(%arg0: i32) -> (i32, i32) {
    %c0_i32 = arith.constant 0 : i32
    %c0_i32_0 = arith.constant 0 : i32
    return %arg0, %c0_i32 : i32, i32
  }
  func.func @transform_2(%arg0: i32) -> (i32, i32) {
    %c0_i32 = arith.constant 0 : i32
    %c0_i32_0 = arith.constant 0 : i32
    %c0_i32_1 = arith.constant 0 : i32
    return %c0_i32, %c0_i32_0 : i32, i32
  }
  func.func @transform_3(%arg0: i32) -> (i32, i32) {
    %c0_i32 = arith.constant 0 : i32
    %c0_i32_0 = arith.constant 0 : i32
    %c0_i32_1 = arith.constant 0 : i32
    return %c0_i32, %c0_i32_0 : i32, i32
  }
  func.func @transform_4(%arg0: i32) -> (i32, i32) {
    %c0_i32 = arith.constant 0 : i32
    %c0_i32_0 = arith.constant 0 : i32
    %c0_i32_1 = arith.constant 0 : i32
    return %c0_i32, %c0_i32_0 : i32, i32
  }
  func.func @transform_5(%arg0: i32) -> (i32, i32) {
    %c0_i32 = arith.constant 0 : i32
    %c0_i32_0 = arith.constant 0 : i32
    %c0_i32_1 = arith.constant 0 : i32
    return %c0_i32, %c0_i32_0 : i32, i32
  }
  func.func @transform_6(%arg0: i32) -> (i32, i32) {
    %c0_i32 = arith.constant 0 : i32
    %c0_i32_0 = arith.constant 0 : i32
    %c0_i32_1 = arith.constant 0 : i32
    return %c0_i32, %c0_i32_0 : i32, i32
  }
  func.func @transform_7(%arg0: i32) -> (i32, i32) {
    %c0_i32 = arith.constant 0 : i32
    %c0_i32_0 = arith.constant 0 : i32
    %c0_i32_1 = arith.constant 0 : i32
    return %c0_i32, %c0_i32_0 : i32, i32
  }
  func.func @transform_8(%arg0: i32) -> (i32, i32) {
    %c0_i32 = arith.constant 0 : i32
    %c0_i32_0 = arith.constant 0 : i32
    %c0_i32_1 = arith.constant 0 : i32
    return %c0_i32, %c0_i32_0 : i32, i32
  }
  func.func @transform_9(%arg0: i32) -> (i32, i32) {
    %c0_i32 = arith.constant 0 : i32
    %c0_i32_0 = arith.constant 0 : i32
    %c0_i32_1 = arith.constant 0 : i32
    return %c0_i32, %c0_i32_0 : i32, i32
  }
  func.func @transform_10(%arg0: i32) -> (i32, i32) {
    %c0_i32 = arith.constant 0 : i32
    %c0_i32_0 = arith.constant 0 : i32
    %c0_i32_1 = arith.constant 0 : i32
    return %c0_i32, %c0_i32_0 : i32, i32
  }
  func.func @transform_11(%arg0: i32) -> (i32, i32) {
    %c0_i32 = arith.constant 0 : i32
    %c0_i32_0 = arith.constant 0 : i32
    %c0_i32_1 = arith.constant 0 : i32
    return %c0_i32, %c0_i32_0 : i32, i32
  }
  func.func @transform_12(%arg0: i32) -> (i32, i32) {
    %c0_i32 = arith.constant 0 : i32
    %c0_i32_0 = arith.constant 0 : i32
    %c0_i32_1 = arith.constant 0 : i32
    return %c0_i32, %c0_i32_0 : i32, i32
  }
  func.func @transform_13(%arg0: i32) -> (i32, i32) {
    %c0_i32 = arith.constant 0 : i32
    %c0_i32_0 = arith.constant 0 : i32
    return %arg0, %c0_i32 : i32, i32
  }
}

</mosaic_0001>

<llo_original>
// kernel: discriminator_forward.1
$region0: #{discriminator_forward.1}
  #allocation0 [shape = 'u32[]', space=smem, size = 0x4, offset = 0x4, fixed_abs, tag = 'smem constant byte address 0x4 - core index']
  #allocation1 [shape = 'u32[144,128]{1,0:T(1,128)}', space=vmem, size = 0x12000, scoped, tag = 'internal scratch']
  %s0 = inlined_call_operand.vmem [shape: f32[16,784], index: 0, kind: input, shape index: {}]
  %s1 = inlined_call_operand.vmem [shape: f32[16,16], index: 1, kind: input, shape index: {}]
  %s2 = inlined_call_operand.hbm [shape: bf16[784,1024], index: 2, kind: input, shape index: {}]
  %s3 = inlined_call_operand.hbm [shape: bf16[16,1024], index: 3, kind: input, shape index: {}]
  %s4 = inlined_call_operand.hbm [shape: f32[1,1024], index: 4, kind: input, shape index: {}]
  %s5 = inlined_call_operand.hbm [shape: bf16[1024,512], index: 5, kind: input, shape index: {}]
  %s6 = inlined_call_operand.hbm [shape: f32[1,512], index: 6, kind: input, shape index: {}]
  %s7 = inlined_call_operand.hbm [shape: bf16[512,256], index: 7, kind: input, shape index: {}]
  %s8 = inlined_call_operand.hbm [shape: f32[1,256], index: 8, kind: input, shape index: {}]
  %s9 = inlined_call_operand.hbm [shape: bf16[256,128], index: 9, kind: input, shape index: {}]
  %s10 = inlined_call_operand.hbm [shape: f32[1,128], index: 10, kind: input, shape index: {}]
  %s11 = inlined_call_operand.hbm [shape: bf16[128,128], index: 11, kind: input, shape index: {}]
  %s12 = inlined_call_operand.hbm [shape: f32[1,128], index: 12, kind: input, shape index: {}]
  %s13 = inlined_call_operand.vmem [shape: f32[16,128], index: 13, kind: output, shape index: {}]
  %s14 = sld [smem:[#allocation0]]
  $region106: #{discriminator_forward.1} parent=0
    _
  %s16 = ssub.s32 1, %s14
  %s17 = scalar_select 0, %s16, %s14
  $region1: #{discriminator_forward.1} parent=0
    #allocation2 [shape = 'u8[1605632]{0}', space=vmem, size = 0x188000, scoped, tag = 'input window, operand 2, single buffered']
    #allocation3 [shape = 's32[1]{0}', space=sflag, size = 0x4, scoped, tag = 'scoped memory for discriminator_forward.1']
    #allocation4 [shape = 'u8[32768]{0}', space=vmem, size = 0x8000, scoped, tag = 'input window, operand 3, single buffered']
    #allocation5 [shape = 's32[1]{0}', space=sflag, size = 0x4, scoped, tag = 'scoped memory for discriminator_forward.1']
    #allocation6 [shape = 'u8[4096]{0}', space=vmem, size = 0x1000, scoped, tag = 'input window, operand 4, single buffered']
    #allocation7 [shape = 'u8[1048576]{0}', space=vmem, size = 0x100000, scoped, tag = 'input window, operand 5, single buffered']
    #allocation8 [shape = 's32[1]{0}', space=sflag, size = 0x4, scoped, tag = 'scoped memory for discriminator_forward.1']
    #allocation9 [shape = 'u8[2048]{0}', space=vmem, size = 0x800, scoped, tag = 'input window, operand 6, single buffered']
    #allocation10 [shape = 'u8[262144]{0}', space=vmem, size = 0x40000, scoped, tag = 'input window, operand 7, single buffered']
    #allocation11 [shape = 's32[1]{0}', space=sflag, size = 0x4, scoped, tag = 'scoped memory for discriminator_forward.1']
    #allocation12 [shape = 'u8[1024]{0}', space=vmem, size = 0x400, scoped, tag = 'input window, operand 8, single buffered']
    #allocation13 [shape = 'u8[65536]{0}', space=vmem, size = 0x10000, scoped, tag = 'input window, operand 9, single buffered']
    #allocation14 [shape = 's32[1]{0}', space=sflag, size = 0x4, scoped, tag = 'scoped memory for discriminator_forward.1']
    #allocation15 [shape = 'u8[512]{0}', space=vmem, size = 0x400, scoped, tag = 'input window, operand 10, single buffered']
    #allocation16 [shape = 'u8[32768]{0}', space=vmem, size = 0x8000, scoped, tag = 'input window, operand 11, single buffered']
    #allocation17 [shape = 's32[1]{0}', space=sflag, size = 0x4, scoped, tag = 'scoped memory for discriminator_forward.1']
    #allocation18 [shape = 'u8[512]{0}', space=vmem, size = 0x400, scoped, tag = 'input window, operand 12, single buffered']
    %18 = vsyncpa [#allocation3], 0
    %19 = vsyncpa [#allocation5], 0
    %20 = vsyncpa [#allocation8], 0
    %21 = vsyncpa [#allocation11], 0
    %22 = vsyncpa [#allocation14], 0
    %23 = vsyncpa [#allocation17], 0
    // Predicated region
    $region2: #{discriminator_forward.1} parent=1 // pred_check
      _
    $region3: #{discriminator_forward.1} parent=1 // pred_check_branch
      %25 = sbr.rel (0) target = $region5
    $region4: #{discriminator_forward.1} parent=1 // pred_region
      _
    $region5: #{discriminator_forward.1} parent=1 // pred_fallthru
      _
    // Predicated region
    $region6: #{discriminator_forward.1} parent=1 // pred_check
      _
    $region7: #{discriminator_forward.1} parent=1 // pred_check_branch
      %27 = sbr.rel (0) target = $region9
    $region8: #{discriminator_forward.1} parent=1 // pred_region
      _
    $region9: #{discriminator_forward.1} parent=1 // pred_fallthru
      _
    // Predicated region
    $region10: #{discriminator_forward.1} parent=1 // pred_check
      _
    $region11: #{discriminator_forward.1} parent=1 // pred_check_branch
      %29 = sbr.rel (0) target = $region13
    $region12: #{discriminator_forward.1} parent=1 // pred_region
      %s31 = ssub.s32 50176, 50176
      %32 = vsyncadd [#allocation3], %s31
      %s33 = sshll.u32 [#allocation2], 4
      %s34 = int_to_ptr.vmem [resolvable:$true] %s33
      %39 = dma.hbm_to_vmem [thread:$0]  %s2, 50176, %s34, [#allocation3], 512, 512, 32
    $region13: #{discriminator_forward.1} parent=1 // pred_fallthru
      _
    // Predicated region
    $region14: #{discriminator_forward.1} parent=1 // pred_check
      _
    $region15: #{discriminator_forward.1} parent=1 // pred_check_branch
      %41 = sbr.rel (0) target = $region17
    $region16: #{discriminator_forward.1} parent=1 // pred_region
      %s43 = ssub.s32 1024, 1024
      %44 = vsyncadd [#allocation5], %s43
      %s45 = sshll.u32 [#allocation4], 4
      %s46 = int_to_ptr.vmem [resolvable:$true] %s45
      %51 = dma.hbm_to_vmem [thread:$0]  %s3, 1024, %s46, [#allocation5], 512, 512, 32
    $region17: #{discriminator_forward.1} parent=1 // pred_fallthru
      _
    // Predicated region
    $region18: #{discriminator_forward.1} parent=1 // pred_check
      _
    $region19: #{discriminator_forward.1} parent=1 // pred_check_branch
      %53 = sbr.rel (0) target = $region21
    $region20: #{discriminator_forward.1} parent=1 // pred_region
      %s55 = ssub.s32 128, 128
      %56 = vsyncadd [#allocation5], %s55
      %s58 = sshll.u32 [#allocation6], 4
      %s59 = int_to_ptr.vmem [resolvable:$true] %s58
      %61 = dma.hbm_to_vmem [thread:$0]  %s4, 128, %s59, [#allocation5]
    $region21: #{discriminator_forward.1} parent=1 // pred_fallthru
      _
    // Predicated region
    $region22: #{discriminator_forward.1} parent=1 // pred_check
      _
    $region23: #{discriminator_forward.1} parent=1 // pred_check_branch
      %63 = sbr.rel (0) target = $region25
    $region24: #{discriminator_forward.1} parent=1 // pred_region
      %s65 = ssub.s32 32768, 32768
      %66 = vsyncadd [#allocation8], %s65
      %s67 = sshll.u32 [#allocation7], 4
      %s68 = int_to_ptr.vmem [resolvable:$true] %s67
      %73 = dma.hbm_to_vmem [thread:$0]  %s5, 32768, %s68, [#allocation8], 256, 256, 16
    $region25: #{discriminator_forward.1} parent=1 // pred_fallthru
      _
    // Predicated region
    $region26: #{discriminator_forward.1} parent=1 // pred_check
      _
    $region27: #{discriminator_forward.1} parent=1 // pred_check_branch
      %75 = sbr.rel (0) target = $region29
    $region28: #{discriminator_forward.1} parent=1 // pred_region
      %s77 = ssub.s32 64, 64
      %78 = vsyncadd [#allocation8], %s77
      %s80 = sshll.u32 [#allocation9], 4
      %s81 = int_to_ptr.vmem [resolvable:$true] %s80
      %83 = dma.hbm_to_vmem [thread:$0]  %s6, 64, %s81, [#allocation8]
    $region29: #{discriminator_forward.1} parent=1 // pred_fallthru
      _
    // Predicated region
    $region30: #{discriminator_forward.1} parent=1 // pred_check
      _
    $region31: #{discriminator_forward.1} parent=1 // pred_check_branch
      %85 = sbr.rel (0) target = $region33
    $region32: #{discriminator_forward.1} parent=1 // pred_region
      %s87 = ssub.s32 8192, 8192
      %88 = vsyncadd [#allocation11], %s87
      %s89 = sshll.u32 [#allocation10], 4
      %s90 = int_to_ptr.vmem [resolvable:$true] %s89
      %95 = dma.hbm_to_vmem [thread:$0]  %s7, 8192, %s90, [#allocation11], 128, 128, 8
    $region33: #{discriminator_forward.1} parent=1 // pred_fallthru
      _
    // Predicated region
    $region34: #{discriminator_forward.1} parent=1 // pred_check
      _
    $region35: #{discriminator_forward.1} parent=1 // pred_check_branch
      %97 = sbr.rel (0) target = $region37
    $region36: #{discriminator_forward.1} parent=1 // pred_region
      %s99 = ssub.s32 32, 32
      %100 = vsyncadd [#allocation11], %s99
      %s102 = sshll.u32 [#allocation12], 4
      %s103 = int_to_ptr.vmem [resolvable:$true] %s102
      %105 = dma.hbm_to_vmem [thread:$0]  %s8, 32, %s103, [#allocation11]
    $region37: #{discriminator_forward.1} parent=1 // pred_fallthru
      _
    // Predicated region
    $region38: #{discriminator_forward.1} parent=1 // pred_check
      _
    $region39: #{discriminator_forward.1} parent=1 // pred_check_branch
      %107 = sbr.rel (0) target = $region41
    $region40: #{discriminator_forward.1} parent=1 // pred_region
      %s109 = ssub.s32 2048, 2048
      %110 = vsyncadd [#allocation14], %s109
      %s111 = sshll.u32 [#allocation13], 4
      %s112 = int_to_ptr.vmem [resolvable:$true] %s111
      %117 = dma.hbm_to_vmem [thread:$0]  %s9, 2048, %s112, [#allocation14], 64, 64, 4
    $region41: #{discriminator_forward.1} parent=1 // pred_fallthru
      _
    // Predicated region
    $region42: #{discriminator_forward.1} parent=1 // pred_check
      _
    $region43: #{discriminator_forward.1} parent=1 // pred_check_branch
      %119 = sbr.rel (0) target = $region45
    $region44: #{discriminator_forward.1} parent=1 // pred_region
      %s121 = ssub.s32 16, 16
      %122 = vsyncadd [#allocation14], %s121
      %s124 = sshll.u32 [#allocation15], 4
      %s125 = int_to_ptr.vmem [resolvable:$true] %s124
      %127 = dma.hbm_to_vmem [thread:$0]  %s10, 16, %s125, [#allocation14]
    $region45: #{discriminator_forward.1} parent=1 // pred_fallthru
      _
    // Predicated region
    $region46: #{discriminator_forward.1} parent=1 // pred_check
      _
    $region47: #{discriminator_forward.1} parent=1 // pred_check_branch
      %129 = sbr.rel (0) target = $region49
    $region48: #{discriminator_forward.1} parent=1 // pred_region
      %s131 = ssub.s32 1024, 1024
      %132 = vsyncadd [#allocation17], %s131
      %s133 = sshll.u32 [#allocation16], 4
      %s134 = int_to_ptr.vmem [resolvable:$true] %s133
      %139 = dma.hbm_to_vmem [thread:$0]  %s11, 1024, %s134, [#allocation17], 64, 64, 4
    $region49: #{discriminator_forward.1} parent=1 // pred_fallthru
      _
    // Predicated region
    $region50: #{discriminator_forward.1} parent=1 // pred_check
      _
    $region51: #{discriminator_forward.1} parent=1 // pred_check_branch
      %141 = sbr.rel (0) target = $region53
    $region52: #{discriminator_forward.1} parent=1 // pred_region
      %s143 = ssub.s32 16, 16
      %144 = vsyncadd [#allocation17], %s143
      %s146 = sshll.u32 [#allocation18], 4
      %s147 = int_to_ptr.vmem [resolvable:$true] %s146
      %149 = dma.hbm_to_vmem [thread:$0]  %s12, 16, %s147, [#allocation17]
    $region53: #{discriminator_forward.1} parent=1 // pred_fallthru
      _
    // Predicated region
    $region54: #{discriminator_forward.1} parent=1 // pred_check
      _
    $region55: #{discriminator_forward.1} parent=1 // pred_check_branch
      %151 = sbr.rel (0) target = $region57
    $region56: #{discriminator_forward.1} parent=1 // pred_region
      %152 = dma.done [#allocation3], 50176
    $region57: #{discriminator_forward.1} parent=1 // pred_fallthru
      _
    // Predicated region
    $region58: #{discriminator_forward.1} parent=1 // pred_check
      _
    $region59: #{discriminator_forward.1} parent=1 // pred_check_branch
      %154 = sbr.rel (0) target = $region61
    $region60: #{discriminator_forward.1} parent=1 // pred_region
      %155 = dma.done [#allocation5], 1024
    $region61: #{discriminator_forward.1} parent=1 // pred_fallthru
      _
    // Predicated region
    $region62: #{discriminator_forward.1} parent=1 // pred_check
      _
    $region63: #{discriminator_forward.1} parent=1 // pred_check_branch
      %157 = sbr.rel (0) target = $region65
    $region64: #{discriminator_forward.1} parent=1 // pred_region
      %158 = dma.done [#allocation5], 128
    $region65: #{discriminator_forward.1} parent=1 // pred_fallthru
      _
    // Predicated region
    $region66: #{discriminator_forward.1} parent=1 // pred_check
      _
    $region67: #{discriminator_forward.1} parent=1 // pred_check_branch
      %160 = sbr.rel (0) target = $region69
    $region68: #{discriminator_forward.1} parent=1 // pred_region
      %161 = dma.done [#allocation8], 32768
    $region69: #{discriminator_forward.1} parent=1 // pred_fallthru
      _
    // Predicated region
    $region70: #{discriminator_forward.1} parent=1 // pred_check
      _
    $region71: #{discriminator_forward.1} parent=1 // pred_check_branch
      %163 = sbr.rel (0) target = $region73
    $region72: #{discriminator_forward.1} parent=1 // pred_region
      %164 = dma.done [#allocation8], 64
    $region73: #{discriminator_forward.1} parent=1 // pred_fallthru
      _
    // Predicated region
    $region74: #{discriminator_forward.1} parent=1 // pred_check
      _
    $region75: #{discriminator_forward.1} parent=1 // pred_check_branch
      %166 = sbr.rel (0) target = $region77
    $region76: #{discriminator_forward.1} parent=1 // pred_region
      %167 = dma.done [#allocation11], 8192
    $region77: #{discriminator_forward.1} parent=1 // pred_fallthru
      _
    // Predicated region
    $region78: #{discriminator_forward.1} parent=1 // pred_check
      _
    $region79: #{discriminator_forward.1} parent=1 // pred_check_branch
      %169 = sbr.rel (0) target = $region81
    $region80: #{discriminator_forward.1} parent=1 // pred_region
      %170 = dma.done [#allocation11], 32
    $region81: #{discriminator_forward.1} parent=1 // pred_fallthru
      _
    // Predicated region
    $region82: #{discriminator_forward.1} parent=1 // pred_check
      _
    $region83: #{discriminator_forward.1} parent=1 // pred_check_branch
      %172 = sbr.rel (0) target = $region85
    $region84: #{discriminator_forward.1} parent=1 // pred_region
      %173 = dma.done [#allocation14], 2048
    $region85: #{discriminator_forward.1} parent=1 // pred_fallthru
      _
    // Predicated region
    $region86: #{discriminator_forward.1} parent=1 // pred_check
      _
    $region87: #{discriminator_forward.1} parent=1 // pred_check_branch
      %175 = sbr.rel (0) target = $region89
    $region88: #{discriminator_forward.1} parent=1 // pred_region
      %176 = dma.done [#allocation14], 16
    $region89: #{discriminator_forward.1} parent=1 // pred_fallthru
      _
    // Predicated region
    $region90: #{discriminator_forward.1} parent=1 // pred_check
      _
    $region91: #{discriminator_forward.1} parent=1 // pred_check_branch
      %178 = sbr.rel (0) target = $region93
    $region92: #{discriminator_forward.1} parent=1 // pred_region
      %179 = dma.done [#allocation17], 1024
    $region93: #{discriminator_forward.1} parent=1 // pred_fallthru
      _
    // Predicated region
    $region94: #{discriminator_forward.1} parent=1 // pred_check
      _
    $region95: #{discriminator_forward.1} parent=1 // pred_check_branch
      %181 = sbr.rel (0) target = $region97
    $region96: #{discriminator_forward.1} parent=1 // pred_region
      %182 = dma.done [#allocation17], 16
    $region97: #{discriminator_forward.1} parent=1 // pred_fallthru
      _
    %v184 = vld [vmem:[%s0] sm:$0xff]
    %v185 = vld [vmem:[%s0 + $0x8] sm:$0xff]
    %v186 = vld [vmem:[%s0 + $0x10] sm:$0xff]
    %v187 = vld [vmem:[%s0 + $0x18] sm:$0xff]
    %v188 = vld [vmem:[%s0 + $0x20] sm:$0xff]
    %v189 = vld [vmem:[%s0 + $0x28] sm:$0xff]
    %v190 = vld [vmem:[%s0 + $0x30] sm:$0xff]
    %v191 = vld [vmem:[%s0 + $0x38] sm:$0xff]
    %v192 = vld [vmem:[%s0 + $0x40] sm:$0xff]
    %v193 = vld [vmem:[%s0 + $0x48] sm:$0xff]
    %v194 = vld [vmem:[%s0 + $0x50] sm:$0xff]
    %v195 = vld [vmem:[%s0 + $0x58] sm:$0xff]
    %v196 = vld [vmem:[%s0 + $0x60] sm:$0xff]
    %v197 = vld [vmem:[%s0 + $0x68] sm:$0xff]
    %v198 = vpack.c.bf16 %v191, %v184
    %v199 = vpack.c.bf16 %v192, %v185
    %v200 = vpack.c.bf16 %v193, %v186
    %v201 = vpack.c.bf16 %v194, %v187
    %v202 = vpack.c.bf16 %v195, %v188
    %v203 = vpack.c.bf16 %v196, %v189
    %v204 = vpack.c.bf16 %v197, %v190
    %v205 = vld [vmem:[%s1] sm:$0xff]
    %v206 = vld [vmem:[%s1 + $0x8] sm:$0xff]
    %v207 = vpack.c.bf16 %v206, %v205
    %v208 = vld [vmem:[#allocation2] sm:$0xff]
    %v209 = vld [vmem:[#allocation2 + $0x8] sm:$0xff]
    %v210 = vld [vmem:[#allocation2 + $0x10] sm:$0xff]
    %v211 = vld [vmem:[#allocation2 + $0x18] sm:$0xff]
    %v212 = vld [vmem:[#allocation2 + $0x20] sm:$0xff]
    %v213 = vld [vmem:[#allocation2 + $0x28] sm:$0xff]
    %v214 = vld [vmem:[#allocation2 + $0x30] sm:$0xff]
    %v215 = vld [vmem:[#allocation2 + $0x38] sm:$0xff]
    %v216 = vld [vmem:[#allocation2 + $0x40] sm:$0xff]
    %v217 = vld [vmem:[#allocation2 + $0x48] sm:$0xff]
    %v218 = vld [vmem:[#allocation2 + $0x50] sm:$0xff]
    %v219 = vld [vmem:[#allocation2 + $0x58] sm:$0xff]
    %v220 = vld [vmem:[#allocation2 + $0x60] sm:$0xff]
    %v221 = vld [vmem:[#allocation2 + $0x68] sm:$0xff]
    %v222 = vld [vmem:[#allocation2 + $0x70] sm:$0xff]
    %v223 = vld [vmem:[#allocation2 + $0x78] sm:$0xff]
    %v224 = vld [vmem:[#allocation2 + $0x80] sm:$0xff]
    %v225 = vld [vmem:[#allocation2 + $0x88] sm:$0xff]
    %v226 = vld [vmem:[#allocation2 + $0x90] sm:$0xff]
    %v227 = vld [vmem:[#allocation2 + $0x98] sm:$0xff]
    %v228 = vld [vmem:[#allocation2 + $0xa0] sm:$0xff]
    %v229 = vld [vmem:[#allocation2 + $0xa8] sm:$0xff]
    %v230 = vld [vmem:[#allocation2 + $0xb0] sm:$0xff]
    %v231 = vld [vmem:[#allocation2 + $0xb8] sm:$0xff]
    %v232 = vld [vmem:[#allocation2 + $0xc0] sm:$0xff]
    %v233 = vld [vmem:[#allocation2 + $0xc8] sm:$0xff]
    %v234 = vld [vmem:[#allocation2 + $0xd0] sm:$0xff]
    %v235 = vld [vmem:[#allocation2 + $0xd8] sm:$0xff]
    %v236 = vld [vmem:[#allocation2 + $0xe0] sm:$0xff]
    %v237 = vld [vmem:[#allocation2 + $0xe8] sm:$0xff]
    %v238 = vld [vmem:[#allocation2 + $0xf0] sm:$0xff]
    %v239 = vld [vmem:[#allocation2 + $0xf8] sm:$0xff]
    %v240 = vld [vmem:[#allocation2 + $0x100] sm:$0xff]
    %v241 = vld [vmem:[#allocation2 + $0x108] sm:$0xff]
    %v242 = vld [vmem:[#allocation2 + $0x110] sm:$0xff]
    %v243 = vld [vmem:[#allocation2 + $0x118] sm:$0xff]
    %v244 = vld [vmem:[#allocation2 + $0x120] sm:$0xff]
    %v245 = vld [vmem:[#allocation2 + $0x128] sm:$0xff]
    %v246 = vld [vmem:[#allocation2 + $0x130] sm:$0xff]
    %v247 = vld [vmem:[#allocation2 + $0x138] sm:$0xff]
    %v248 = vld [vmem:[#allocation2 + $0x140] sm:$0xff]
    %v249 = vld [vmem:[#allocation2 + $0x148] sm:$0xff]
    %v250 = vld [vmem:[#allocation2 + $0x150] sm:$0xff]
    %v251 = vld [vmem:[#allocation2 + $0x158] sm:$0xff]
    %v252 = vld [vmem:[#allocation2 + $0x160] sm:$0xff]
    %v253 = vld [vmem:[#allocation2 + $0x168] sm:$0xff]
    %v254 = vld [vmem:[#allocation2 + $0x170] sm:$0xff]
    %v255 = vld [vmem:[#allocation2 + $0x178] sm:$0xff]
    %v256 = vld [vmem:[#allocation2 + $0x180] sm:$0xff]
    %v257 = vld [vmem:[#allocation2 + $0x188] sm:$0xff]
    %v258 = vld [vmem:[#allocation2 + $0x190] sm:$0xff]
    %v259 = vld [vmem:[#allocation2 + $0x198] sm:$0xff]
    %v260 = vld [vmem:[#allocation2 + $0x1a0] sm:$0xff]
    %v261 = vld [vmem:[#allocation2 + $0x1a8] sm:$0xff]
    %v262 = vld [vmem:[#allocation2 + $0x1b0] sm:$0xff]
    %v263 = vld [vmem:[#allocation2 + $0x1b8] sm:$0xff]
    %v264 = vld [vmem:[#allocation2 + $0x1c0] sm:$0xff]
    %v265 = vld [vmem:[#allocation2 + $0x1c8] sm:$0xff]
    %v266 = vld [vmem:[#allocation2 + $0x1d0] sm:$0xff]
    %v267 = vld [vmem:[#allocation2 + $0x1d8] sm:$0xff]
    %v268 = vld [vmem:[#allocation2 + $0x1e0] sm:$0xff]
    %v269 = vld [vmem:[#allocation2 + $0x1e8] sm:$0xff]
    %v270 = vld [vmem:[#allocation2 + $0x1f0] sm:$0xff]
    %v271 = vld [vmem:[#allocation2 + $0x1f8] sm:$0xff]
    %v272 = vld [vmem:[#allocation2 + $0x200] sm:$0xff]
    %v273 = vld [vmem:[#allocation2 + $0x208] sm:$0xff]
    %v274 = vld [vmem:[#allocation2 + $0x210] sm:$0xff]
    %v275 = vld [vmem:[#allocation2 + $0x218] sm:$0xff]
    %v276 = vld [vmem:[#allocation2 + $0x220] sm:$0xff]
    %v277 = vld [vmem:[#allocation2 + $0x228] sm:$0xff]
    %v278 = vld [vmem:[#allocation2 + $0x230] sm:$0xff]
    %v279 = vld [vmem:[#allocation2 + $0x238] sm:$0xff]
    %v280 = vld [vmem:[#allocation2 + $0x240] sm:$0xff]
    %v281 = vld [vmem:[#allocation2 + $0x248] sm:$0xff]
    %v282 = vld [vmem:[#allocation2 + $0x250] sm:$0xff]
    %v283 = vld [vmem:[#allocation2 + $0x258] sm:$0xff]
    %v284 = vld [vmem:[#allocation2 + $0x260] sm:$0xff]
    %v285 = vld [vmem:[#allocation2 + $0x268] sm:$0xff]
    %v286 = vld [vmem:[#allocation2 + $0x270] sm:$0xff]
    %v287 = vld [vmem:[#allocation2 + $0x278] sm:$0xff]
    %v288 = vld [vmem:[#allocation2 + $0x280] sm:$0xff]
    %v289 = vld [vmem:[#allocation2 + $0x288] sm:$0xff]
    %v290 = vld [vmem:[#allocation2 + $0x290] sm:$0xff]
    %v291 = vld [vmem:[#allocation2 + $0x298] sm:$0xff]
    %v292 = vld [vmem:[#allocation2 + $0x2a0] sm:$0xff]
    %v293 = vld [vmem:[#allocation2 + $0x2a8] sm:$0xff]
    %v294 = vld [vmem:[#allocation2 + $0x2b0] sm:$0xff]
    %v295 = vld [vmem:[#allocation2 + $0x2b8] sm:$0xff]
    %v296 = vld [vmem:[#allocation2 + $0x2c0] sm:$0xff]
    %v297 = vld [vmem:[#allocation2 + $0x2c8] sm:$0xff]
    %v298 = vld [vmem:[#allocation2 + $0x2d0] sm:$0xff]
    %v299 = vld [vmem:[#allocation2 + $0x2d8] sm:$0xff]
    %v300 = vld [vmem:[#allocation2 + $0x2e0] sm:$0xff]
    %v301 = vld [vmem:[#allocation2 + $0x2e8] sm:$0xff]
    %v302 = vld [vmem:[#allocation2 + $0x2f0] sm:$0xff]
    %v303 = vld [vmem:[#allocation2 + $0x2f8] sm:$0xff]
    %v304 = vld [vmem:[#allocation2 + $0x300] sm:$0xff]
    %v305 = vld [vmem:[#allocation2 + $0x308] sm:$0xff]
    %v306 = vld [vmem:[#allocation2 + $0x310] sm:$0xff]
    %v307 = vld [vmem:[#allocation2 + $0x318] sm:$0xff]
    %v308 = vld [vmem:[#allocation2 + $0x320] sm:$0xff]
    %v309 = vld [vmem:[#allocation2 + $0x328] sm:$0xff]
    %v310 = vld [vmem:[#allocation2 + $0x330] sm:$0xff]
    %v311 = vld [vmem:[#allocation2 + $0x338] sm:$0xff]
    %v312 = vld [vmem:[#allocation2 + $0x340] sm:$0xff]
    %v313 = vld [vmem:[#allocation2 + $0x348] sm:$0xff]
    %v314 = vld [vmem:[#allocation2 + $0x350] sm:$0xff]
    %v315 = vld [vmem:[#allocation2 + $0x358] sm:$0xff]
    %v316 = vld [vmem:[#allocation2 + $0x360] sm:$0xff]
    %v317 = vld [vmem:[#allocation2 + $0x368] sm:$0xff]
    %v318 = vld [vmem:[#allocation2 + $0x370] sm:$0xff]
    %v319 = vld [vmem:[#allocation2 + $0x378] sm:$0xff]
    %v320 = vld [vmem:[#allocation2 + $0x380] sm:$0xff]
    %v321 = vld [vmem:[#allocation2 + $0x388] sm:$0xff]
    %v322 = vld [vmem:[#allocation2 + $0x390] sm:$0xff]
    %v323 = vld [vmem:[#allocation2 + $0x398] sm:$0xff]
    %v324 = vld [vmem:[#allocation2 + $0x3a0] sm:$0xff]
    %v325 = vld [vmem:[#allocation2 + $0x3a8] sm:$0xff]
    %v326 = vld [vmem:[#allocation2 + $0x3b0] sm:$0xff]
    %v327 = vld [vmem:[#allocation2 + $0x3b8] sm:$0xff]
    %v328 = vld [vmem:[#allocation2 + $0x3c0] sm:$0xff]
    %v329 = vld [vmem:[#allocation2 + $0x3c8] sm:$0xff]
    %v330 = vld [vmem:[#allocation2 + $0x3d0] sm:$0xff]
    %v331 = vld [vmem:[#allocation2 + $0x3d8] sm:$0xff]
    %v332 = vld [vmem:[#allocation2 + $0x3e0] sm:$0xff]
    %v333 = vld [vmem:[#allocation2 + $0x3e8] sm:$0xff]
    %v334 = vld [vmem:[#allocation2 + $0x3f0] sm:$0xff]
    %v335 = vld [vmem:[#allocation2 + $0x3f8] sm:$0xff]
    %v336 = vld [vmem:[#allocation2 + $0x400] sm:$0xff]
    %v337 = vld [vmem:[#allocation2 + $0x408] sm:$0xff]
    %v338 = vld [vmem:[#allocation2 + $0x410] sm:$0xff]
    %v339 = vld [vmem:[#allocation2 + $0x418] sm:$0xff]
    %v340 = vld [vmem:[#allocation2 + $0x420] sm:$0xff]
    %v341 = vld [vmem:[#allocation2 + $0x428] sm:$0xff]
    %v342 = vld [vmem:[#allocation2 + $0x430] sm:$0xff]
    %v343 = vld [vmem:[#allocation2 + $0x438] sm:$0xff]
    %v344 = vld [vmem:[#allocation2 + $0x440] sm:$0xff]
    %v345 = vld [vmem:[#allocation2 + $0x448] sm:$0xff]
    %v346 = vld [vmem:[#allocation2 + $0x450] sm:$0xff]
    %v347 = vld [vmem:[#allocation2 + $0x458] sm:$0xff]
    %v348 = vld [vmem:[#allocation2 + $0x460] sm:$0xff]
    %v349 = vld [vmem:[#allocation2 + $0x468] sm:$0xff]
    %v350 = vld [vmem:[#allocation2 + $0x470] sm:$0xff]
    %v351 = vld [vmem:[#allocation2 + $0x478] sm:$0xff]
    %v352 = vld [vmem:[#allocation2 + $0x480] sm:$0xff]
    %v353 = vld [vmem:[#allocation2 + $0x488] sm:$0xff]
    %v354 = vld [vmem:[#allocation2 + $0x490] sm:$0xff]
    %v355 = vld [vmem:[#allocation2 + $0x498] sm:$0xff]
    %v356 = vld [vmem:[#allocation2 + $0x4a0] sm:$0xff]
    %v357 = vld [vmem:[#allocation2 + $0x4a8] sm:$0xff]
    %v358 = vld [vmem:[#allocation2 + $0x4b0] sm:$0xff]
    %v359 = vld [vmem:[#allocation2 + $0x4b8] sm:$0xff]
    %v360 = vld [vmem:[#allocation2 + $0x4c0] sm:$0xff]
    %v361 = vld [vmem:[#allocation2 + $0x4c8] sm:$0xff]
    %v362 = vld [vmem:[#allocation2 + $0x4d0] sm:$0xff]
    %v363 = vld [vmem:[#allocation2 + $0x4d8] sm:$0xff]
    %v364 = vld [vmem:[#allocation2 + $0x4e0] sm:$0xff]
    %v365 = vld [vmem:[#allocation2 + $0x4e8] sm:$0xff]
    %v366 = vld [vmem:[#allocation2 + $0x4f0] sm:$0xff]
    %v367 = vld [vmem:[#allocation2 + $0x4f8] sm:$0xff]
    %v368 = vld [vmem:[#allocation2 + $0x500] sm:$0xff]
    %v369 = vld [vmem:[#allocation2 + $0x508] sm:$0xff]
    %v370 = vld [vmem:[#allocation2 + $0x510] sm:$0xff]
    %v371 = vld [vmem:[#allocation2 + $0x518] sm:$0xff]
    %v372 = vld [vmem:[#allocation2 + $0x520] sm:$0xff]
    %v373 = vld [vmem:[#allocation2 + $0x528] sm:$0xff]
    %v374 = vld [vmem:[#allocation2 + $0x530] sm:$0xff]
    %v375 = vld [vmem:[#allocation2 + $0x538] sm:$0xff]
    %v376 = vld [vmem:[#allocation2 + $0x540] sm:$0xff]
    %v377 = vld [vmem:[#allocation2 + $0x548] sm:$0xff]
    %v378 = vld [vmem:[#allocation2 + $0x550] sm:$0xff]
    %v379 = vld [vmem:[#allocation2 + $0x558] sm:$0xff]
    %v380 = vld [vmem:[#allocation2 + $0x560] sm:$0xff]
    %v381 = vld [vmem:[#allocation2 + $0x568] sm:$0xff]
    %v382 = vld [vmem:[#allocation2 + $0x570] sm:$0xff]
    %v383 = vld [vmem:[#allocation2 + $0x578] sm:$0xff]
    %v384 = vld [vmem:[#allocation2 + $0x580] sm:$0xff]
    %v385 = vld [vmem:[#allocation2 + $0x588] sm:$0xff]
    %v386 = vld [vmem:[#allocation2 + $0x590] sm:$0xff]
    %v387 = vld [vmem:[#allocation2 + $0x598] sm:$0xff]
    %v388 = vld [vmem:[#allocation2 + $0x5a0] sm:$0xff]
    %v389 = vld [vmem:[#allocation2 + $0x5a8] sm:$0xff]
    %v390 = vld [vmem:[#allocation2 + $0x5b0] sm:$0xff]
    %v391 = vld [vmem:[#allocation2 + $0x5b8] sm:$0xff]
    %v392 = vld [vmem:[#allocation2 + $0x5c0] sm:$0xff]
    %v393 = vld [vmem:[#allocation2 + $0x5c8] sm:$0xff]
    %v394 = vld [vmem:[#allocation2 + $0x5d0] sm:$0xff]
    %v395 = vld [vmem:[#allocation2 + $0x5d8] sm:$0xff]
    %v396 = vld [vmem:[#allocation2 + $0x5e0] sm:$0xff]
    %v397 = vld [vmem:[#allocation2 + $0x5e8] sm:$0xff]
    %v398 = vld [vmem:[#allocation2 + $0x5f0] sm:$0xff]
    %v399 = vld [vmem:[#allocation2 + $0x5f8] sm:$0xff]
    %v400 = vld [vmem:[#allocation2 + $0x600] sm:$0xff]
    %v401 = vld [vmem:[#allocation2 + $0x608] sm:$0xff]
    %v402 = vld [vmem:[#allocation2 + $0x610] sm:$0xff]
    %v403 = vld [vmem:[#allocation2 + $0x618] sm:$0xff]
    %v404 = vld [vmem:[#allocation2 + $0x620] sm:$0xff]
    %v405 = vld [vmem:[#allocation2 + $0x628] sm:$0xff]
    %v406 = vld [vmem:[#allocation2 + $0x630] sm:$0xff]
    %v407 = vld [vmem:[#allocation2 + $0x638] sm:$0xff]
    %v408 = vld [vmem:[#allocation2 + $0x640] sm:$0xff]
    %v409 = vld [vmem:[#allocation2 + $0x648] sm:$0xff]
    %v410 = vld [vmem:[#allocation2 + $0x650] sm:$0xff]
    %v411 = vld [vmem:[#allocation2 + $0x658] sm:$0xff]
    %v412 = vld [vmem:[#allocation2 + $0x660] sm:$0xff]
    %v413 = vld [vmem:[#allocation2 + $0x668] sm:$0xff]
    %v414 = vld [vmem:[#allocation2 + $0x670] sm:$0xff]
    %v415 = vld [vmem:[#allocation2 + $0x678] sm:$0xff]
    %v416 = vld [vmem:[#allocation2 + $0x680] sm:$0xff]
    %v417 = vld [vmem:[#allocation2 + $0x688] sm:$0xff]
    %v418 = vld [vmem:[#allocation2 + $0x690] sm:$0xff]
    %v419 = vld [vmem:[#allocation2 + $0x698] sm:$0xff]
    %v420 = vld [vmem:[#allocation2 + $0x6a0] sm:$0xff]
    %v421 = vld [vmem:[#allocation2 + $0x6a8] sm:$0xff]
    %v422 = vld [vmem:[#allocation2 + $0x6b0] sm:$0xff]
    %v423 = vld [vmem:[#allocation2 + $0x6b8] sm:$0xff]
    %v424 = vld [vmem:[#allocation2 + $0x6c0] sm:$0xff]
    %v425 = vld [vmem:[#allocation2 + $0x6c8] sm:$0xff]
    %v426 = vld [vmem:[#allocation2 + $0x6d0] sm:$0xff]
    %v427 = vld [vmem:[#allocation2 + $0x6d8] sm:$0xff]
    %v428 = vld [vmem:[#allocation2 + $0x6e0] sm:$0xff]
    %v429 = vld [vmem:[#allocation2 + $0x6e8] sm:$0xff]
    %v430 = vld [vmem:[#allocation2 + $0x6f0] sm:$0xff]
    %v431 = vld [vmem:[#allocation2 + $0x6f8] sm:$0xff]
    %v432 = vld [vmem:[#allocation2 + $0x700] sm:$0xff]
    %v433 = vld [vmem:[#allocation2 + $0x708] sm:$0xff]
    %v434 = vld [vmem:[#allocation2 + $0x710] sm:$0xff]
    %v435 = vld [vmem:[#allocation2 + $0x718] sm:$0xff]
    %v436 = vld [vmem:[#allocation2 + $0x720] sm:$0xff]
    %v437 = vld [vmem:[#allocation2 + $0x728] sm:$0xff]
    %v438 = vld [vmem:[#allocation2 + $0x730] sm:$0xff]
    %v439 = vld [vmem:[#allocation2 + $0x738] sm:$0xff]
    %v440 = vld [vmem:[#allocation2 + $0x740] sm:$0xff]
    %v441 = vld [vmem:[#allocation2 + $0x748] sm:$0xff]
    %v442 = vld [vmem:[#allocation2 + $0x750] sm:$0xff]
    %v443 = vld [vmem:[#allocation2 + $0x758] sm:$0xff]
    %v444 = vld [vmem:[#allocation2 + $0x760] sm:$0xff]
    %v445 = vld [vmem:[#allocation2 + $0x768] sm:$0xff]
    %v446 = vld [vmem:[#allocation2 + $0x770] sm:$0xff]
    %v447 = vld [vmem:[#allocation2 + $0x778] sm:$0xff]
    %v448 = vld [vmem:[#allocation2 + $0x780] sm:$0xff]
    %v449 = vld [vmem:[#allocation2 + $0x788] sm:$0xff]
    %v450 = vld [vmem:[#allocation2 + $0x790] sm:$0xff]
    %v451 = vld [vmem:[#allocation2 + $0x798] sm:$0xff]
    %v452 = vld [vmem:[#allocation2 + $0x7a0] sm:$0xff]
    %v453 = vld [vmem:[#allocation2 + $0x7a8] sm:$0xff]
    %v454 = vld [vmem:[#allocation2 + $0x7b0] sm:$0xff]
    %v455 = vld [vmem:[#allocation2 + $0x7b8] sm:$0xff]
    %v456 = vld [vmem:[#allocation2 + $0x7c0] sm:$0xff]
    %v457 = vld [vmem:[#allocation2 + $0x7c8] sm:$0xff]
    %v458 = vld [vmem:[#allocation2 + $0x7d0] sm:$0xff]
    %v459 = vld [vmem:[#allocation2 + $0x7d8] sm:$0xff]
    %v460 = vld [vmem:[#allocation2 + $0x7e0] sm:$0xff]
    %v461 = vld [vmem:[#allocation2 + $0x7e8] sm:$0xff]
    %v462 = vld [vmem:[#allocation2 + $0x7f0] sm:$0xff]
    %v463 = vld [vmem:[#allocation2 + $0x7f8] sm:$0xff]
    %v464 = vld [vmem:[#allocation2 + $0x800] sm:$0xff]
    %v465 = vld [vmem:[#allocation2 + $0x808] sm:$0xff]
    %v466 = vld [vmem:[#allocation2 + $0x810] sm:$0xff]
    %v467 = vld [vmem:[#allocation2 + $0x818] sm:$0xff]
    %v468 = vld [vmem:[#allocation2 + $0x820] sm:$0xff]
    %v469 = vld [vmem:[#allocation2 + $0x828] sm:$0xff]
    %v470 = vld [vmem:[#allocation2 + $0x830] sm:$0xff]
    %v471 = vld [vmem:[#allocation2 + $0x838] sm:$0xff]
    %v472 = vld [vmem:[#allocation2 + $0x840] sm:$0xff]
    %v473 = vld [vmem:[#allocation2 + $0x848] sm:$0xff]
    %v474 = vld [vmem:[#allocation2 + $0x850] sm:$0xff]
    %v475 = vld [vmem:[#allocation2 + $0x858] sm:$0xff]
    %v476 = vld [vmem:[#allocation2 + $0x860] sm:$0xff]
    %v477 = vld [vmem:[#allocation2 + $0x868] sm:$0xff]
    %v478 = vld [vmem:[#allocation2 + $0x870] sm:$0xff]
    %v479 = vld [vmem:[#allocation2 + $0x878] sm:$0xff]
    %v480 = vld [vmem:[#allocation2 + $0x880] sm:$0xff]
    %v481 = vld [vmem:[#allocation2 + $0x888] sm:$0xff]
    %v482 = vld [vmem:[#allocation2 + $0x890] sm:$0xff]
    %v483 = vld [vmem:[#allocation2 + $0x898] sm:$0xff]
    %v484 = vld [vmem:[#allocation2 + $0x8a0] sm:$0xff]
    %v485 = vld [vmem:[#allocation2 + $0x8a8] sm:$0xff]
    %v486 = vld [vmem:[#allocation2 + $0x8b0] sm:$0xff]
    %v487 = vld [vmem:[#allocation2 + $0x8b8] sm:$0xff]
    %v488 = vld [vmem:[#allocation2 + $0x8c0] sm:$0xff]
    %v489 = vld [vmem:[#allocation2 + $0x8c8] sm:$0xff]
    %v490 = vld [vmem:[#allocation2 + $0x8d0] sm:$0xff]
    %v491 = vld [vmem:[#allocation2 + $0x8d8] sm:$0xff]
    %v492 = vld [vmem:[#allocation2 + $0x8e0] sm:$0xff]
    %v493 = vld [vmem:[#allocation2 + $0x8e8] sm:$0xff]
    %v494 = vld [vmem:[#allocation2 + $0x8f0] sm:$0xff]
    %v495 = vld [vmem:[#allocation2 + $0x8f8] sm:$0xff]
    %v496 = vld [vmem:[#allocation2 + $0x900] sm:$0xff]
    %v497 = vld [vmem:[#allocation2 + $0x908] sm:$0xff]
    %v498 = vld [vmem:[#allocation2 + $0x910] sm:$0xff]
    %v499 = vld [vmem:[#allocation2 + $0x918] sm:$0xff]
    %v500 = vld [vmem:[#allocation2 + $0x920] sm:$0xff]
    %v501 = vld [vmem:[#allocation2 + $0x928] sm:$0xff]
    %v502 = vld [vmem:[#allocation2 + $0x930] sm:$0xff]
    %v503 = vld [vmem:[#allocation2 + $0x938] sm:$0xff]
    %v504 = vld [vmem:[#allocation2 + $0x940] sm:$0xff]
    %v505 = vld [vmem:[#allocation2 + $0x948] sm:$0xff]
    %v506 = vld [vmem:[#allocation2 + $0x950] sm:$0xff]
    %v507 = vld [vmem:[#allocation2 + $0x958] sm:$0xff]
    %v508 = vld [vmem:[#allocation2 + $0x960] sm:$0xff]
    %v509 = vld [vmem:[#allocation2 + $0x968] sm:$0xff]
    %v510 = vld [vmem:[#allocation2 + $0x970] sm:$0xff]
    %v511 = vld [vmem:[#allocation2 + $0x978] sm:$0xff]
    %v512 = vld [vmem:[#allocation2 + $0x980] sm:$0xff]
    %v513 = vld [vmem:[#allocation2 + $0x988] sm:$0xff]
    %v514 = vld [vmem:[#allocation2 + $0x990] sm:$0xff]
    %v515 = vld [vmem:[#allocation2 + $0x998] sm:$0xff]
    %v516 = vld [vmem:[#allocation2 + $0x9a0] sm:$0xff]
    %v517 = vld [vmem:[#allocation2 + $0x9a8] sm:$0xff]
    %v518 = vld [vmem:[#allocation2 + $0x9b0] sm:$0xff]
    %v519 = vld [vmem:[#allocation2 + $0x9b8] sm:$0xff]
    %v520 = vld [vmem:[#allocation2 + $0x9c0] sm:$0xff]
    %v521 = vld [vmem:[#allocation2 + $0x9c8] sm:$0xff]
    %v522 = vld [vmem:[#allocation2 + $0x9d0] sm:$0xff]
    %v523 = vld [vmem:[#allocation2 + $0x9d8] sm:$0xff]
    %v524 = vld [vmem:[#allocation2 + $0x9e0] sm:$0xff]
    %v525 = vld [vmem:[#allocation2 + $0x9e8] sm:$0xff]
    %v526 = vld [vmem:[#allocation2 + $0x9f0] sm:$0xff]
    %v527 = vld [vmem:[#allocation2 + $0x9f8] sm:$0xff]
    %v528 = vld [vmem:[#allocation2 + $0xa00] sm:$0xff]
    %v529 = vld [vmem:[#allocation2 + $0xa08] sm:$0xff]
    %v530 = vld [vmem:[#allocation2 + $0xa10] sm:$0xff]
    %v531 = vld [vmem:[#allocation2 + $0xa18] sm:$0xff]
    %v532 = vld [vmem:[#allocation2 + $0xa20] sm:$0xff]
    %v533 = vld [vmem:[#allocation2 + $0xa28] sm:$0xff]
    %v534 = vld [vmem:[#allocation2 + $0xa30] sm:$0xff]
    %v535 = vld [vmem:[#allocation2 + $0xa38] sm:$0xff]
    %v536 = vld [vmem:[#allocation2 + $0xa40] sm:$0xff]
    %v537 = vld [vmem:[#allocation2 + $0xa48] sm:$0xff]
    %v538 = vld [vmem:[#allocation2 + $0xa50] sm:$0xff]
    %v539 = vld [vmem:[#allocation2 + $0xa58] sm:$0xff]
    %v540 = vld [vmem:[#allocation2 + $0xa60] sm:$0xff]
    %v541 = vld [vmem:[#allocation2 + $0xa68] sm:$0xff]
    %v542 = vld [vmem:[#allocation2 + $0xa70] sm:$0xff]
    %v543 = vld [vmem:[#allocation2 + $0xa78] sm:$0xff]
    %v544 = vld [vmem:[#allocation2 + $0xa80] sm:$0xff]
    %v545 = vld [vmem:[#allocation2 + $0xa88] sm:$0xff]
    %v546 = vld [vmem:[#allocation2 + $0xa90] sm:$0xff]
    %v547 = vld [vmem:[#allocation2 + $0xa98] sm:$0xff]
    %v548 = vld [vmem:[#allocation2 + $0xaa0] sm:$0xff]
    %v549 = vld [vmem:[#allocation2 + $0xaa8] sm:$0xff]
    %v550 = vld [vmem:[#allocation2 + $0xab0] sm:$0xff]
    %v551 = vld [vmem:[#allocation2 + $0xab8] sm:$0xff]
    %v552 = vld [vmem:[#allocation2 + $0xac0] sm:$0xff]
    %v553 = vld [vmem:[#allocation2 + $0xac8] sm:$0xff]
    %v554 = vld [vmem:[#allocation2 + $0xad0] sm:$0xff]
    %v555 = vld [vmem:[#allocation2 + $0xad8] sm:$0xff]
    %v556 = vld [vmem:[#allocation2 + $0xae0] sm:$0xff]
    %v557 = vld [vmem:[#allocation2 + $0xae8] sm:$0xff]
    %v558 = vld [vmem:[#allocation2 + $0xaf0] sm:$0xff]
    %v559 = vld [vmem:[#allocation2 + $0xaf8] sm:$0xff]
    %v560 = vld [vmem:[#allocation2 + $0xb00] sm:$0xff]
    %v561 = vld [vmem:[#allocation2 + $0xb08] sm:$0xff]
    %v562 = vld [vmem:[#allocation2 + $0xb10] sm:$0xff]
    %v563 = vld [vmem:[#allocation2 + $0xb18] sm:$0xff]
    %v564 = vld [vmem:[#allocation2 + $0xb20] sm:$0xff]
    %v565 = vld [vmem:[#allocation2 + $0xb28] sm:$0xff]
    %v566 = vld [vmem:[#allocation2 + $0xb30] sm:$0xff]
    %v567 = vld [vmem:[#allocation2 + $0xb38] sm:$0xff]
    %v568 = vld [vmem:[#allocation2 + $0xb40] sm:$0xff]
    %v569 = vld [vmem:[#allocation2 + $0xb48] sm:$0xff]
    %v570 = vld [vmem:[#allocation2 + $0xb50] sm:$0xff]
    %v571 = vld [vmem:[#allocation2 + $0xb58] sm:$0xff]
    %v572 = vld [vmem:[#allocation2 + $0xb60] sm:$0xff]
    %v573 = vld [vmem:[#allocation2 + $0xb68] sm:$0xff]
    %v574 = vld [vmem:[#allocation2 + $0xb70] sm:$0xff]
    %v575 = vld [vmem:[#allocation2 + $0xb78] sm:$0xff]
    %v576 = vld [vmem:[#allocation2 + $0xb80] sm:$0xff]
    %v577 = vld [vmem:[#allocation2 + $0xb88] sm:$0xff]
    %v578 = vld [vmem:[#allocation2 + $0xb90] sm:$0xff]
    %v579 = vld [vmem:[#allocation2 + $0xb98] sm:$0xff]
    %v580 = vld [vmem:[#allocation2 + $0xba0] sm:$0xff]
    %v581 = vld [vmem:[#allocation2 + $0xba8] sm:$0xff]
    %v582 = vld [vmem:[#allocation2 + $0xbb0] sm:$0xff]
    %v583 = vld [vmem:[#allocation2 + $0xbb8] sm:$0xff]
    %v584 = vld [vmem:[#allocation2 + $0xbc0] sm:$0xff]
    %v585 = vld [vmem:[#allocation2 + $0xbc8] sm:$0xff]
    %v586 = vld [vmem:[#allocation2 + $0xbd0] sm:$0xff]
    %v587 = vld [vmem:[#allocation2 + $0xbd8] sm:$0xff]
    %v588 = vld [vmem:[#allocation2 + $0xbe0] sm:$0xff]
    %v589 = vld [vmem:[#allocation2 + $0xbe8] sm:$0xff]
    %v590 = vld [vmem:[#allocation2 + $0xbf0] sm:$0xff]
    %v591 = vld [vmem:[#allocation2 + $0xbf8] sm:$0xff]
    %v592 = vld [vmem:[#allocation2 + $0xc00] sm:$0xff]
    %v593 = vld [vmem:[#allocation2 + $0xc08] sm:$0xff]
    %v594 = vld [vmem:[#allocation2 + $0xc10] sm:$0xff]
    %v595 = vld [vmem:[#allocation2 + $0xc18] sm:$0xff]
    %v596 = vld [vmem:[#allocation2 + $0xc20] sm:$0xff]
    %v597 = vld [vmem:[#allocation2 + $0xc28] sm:$0xff]
    %v598 = vld [vmem:[#allocation2 + $0xc30] sm:$0xff]
    %v599 = vld [vmem:[#allocation2 + $0xc38] sm:$0xff]
    %v600 = vld [vmem:[#allocation4] sm:$0xff]
    %v601 = vld [vmem:[#allocation4 + $0x8] sm:$0xff]
    %v602 = vld [vmem:[#allocation4 + $0x10] sm:$0xff]
    %v603 = vld [vmem:[#allocation4 + $0x18] sm:$0xff]
    %v604 = vld [vmem:[#allocation4 + $0x20] sm:$0xff]
    %v605 = vld [vmem:[#allocation4 + $0x28] sm:$0xff]
    %v606 = vld [vmem:[#allocation4 + $0x30] sm:$0xff]
    %v607 = vld [vmem:[#allocation4 + $0x38] sm:$0xff]
    %v616 = vunpack.c.l.b16 %v600
    %v617 = vunpack.c.h.b16 %v600
    %v618 = vunpack.c.l.b16 %v601
    %v619 = vunpack.c.h.b16 %v601
    %v620 = vunpack.c.l.b16 %v602
    %v621 = vunpack.c.h.b16 %v602
    %v622 = vunpack.c.l.b16 %v603
    %v623 = vunpack.c.h.b16 %v603
    %v624 = vunpack.c.l.b16 %v604
    %v625 = vunpack.c.h.b16 %v604
    %v626 = vunpack.c.l.b16 %v605
    %v627 = vunpack.c.h.b16 %v605
    %v628 = vunpack.c.l.b16 %v606
    %v629 = vunpack.c.h.b16 %v606
    %v630 = vunpack.c.l.b16 %v607
    %v631 = vunpack.c.h.b16 %v607
    %v632 = vpack.c.b16 %v624, %v616
    %v633 = vpack.c.b16 %v625, %v617
    %v634 = vpack.c.b16 %v626, %v618
    %v635 = vpack.c.b16 %v627, %v619
    %v636 = vpack.c.b16 %v628, %v620
    %v637 = vpack.c.b16 %v629, %v621
    %v638 = vpack.c.b16 %v630, %v622
    %v639 = vpack.c.b16 %v631, %v623
    %vm648 = vcmask 130048
    %v650 = vsel %vm648, %v207, 0
    %652 = vmatprep.subr.bf16.mxu0 %v633
    %653 = vmatpush1.bf16.msra.mxu0 %v632
    %654 = vmatprep.subr.bf16.mxu0 0
    %655 = vmatpush1.bf16.msra.mxu0 0
    %656 = vmatprep.subr.bf16.mxu0 0
    %657 = vmatpush1.bf16.msra.mxu0 0
    %658 = vmatprep.subr.bf16.mxu0 0
    %659 = vmatpush1.bf16.msra.mxu0 0
    %660 = vmatprep.subr.bf16.mxu0 0
    %661 = vmatpush1.bf16.msra.mxu0 0
    %662 = vmatprep.subr.bf16.mxu0 0
    %663 = vmatpush1.bf16.msra.mxu0 0
    %664 = vmatprep.subr.bf16.mxu0 0
    %665 = vmatpush1.bf16.msra.mxu0 0
    %666 = vmatprep.subr.bf16.mxu0 0
    %667 = vmatpush1.bf16.msra.mxu0 0
    %668 = vmatprep.subr.bf16.mxu0 0
    %669 = vmatpush1.bf16.msra.mxu0 0
    %670 = vmatprep.subr.bf16.mxu0 0
    %671 = vmatpush1.bf16.msra.mxu0 0
    %672 = vmatprep.subr.bf16.mxu0 0
    %673 = vmatpush1.bf16.msra.mxu0 0
    %674 = vmatprep.subr.bf16.mxu0 0
    %675 = vmatpush1.bf16.msra.mxu0 0
    %676 = vmatprep.subr.bf16.mxu0 0
    %677 = vmatpush1.bf16.msra.mxu0 0
    %678 = vmatprep.subr.bf16.mxu0 0
    %679 = vmatpush1.bf16.msra.mxu0 0
    %680 = vmatprep.subr.bf16.mxu0 0
    %681 = vmatpush1.bf16.msra.mxu0 0
    %682 = vmatprep.subr.bf16.mxu0 0
    %683 = vmatpush1.bf16.msra.mxu0 0
    %684 = vmatprep.mubr.bf16.mxu0 0
    %685 = vmatmul.mubr.bf16.gmra.mrb[0].mxu0 %v650
    %v686 = vpop.f32.mrb[0].mxu0
    %v687 = vadd.f32 0.0, %v686
    %v688 = vpop.f32.mrb[0].mxu0
    %v689 = vadd.f32 0.0, %v688
    %v690 = vpop.f32.mrb[0].mxu0
    %v691 = vadd.f32 0.0, %v690
    %v692 = vpop.f32.mrb[0].mxu0
    %v693 = vadd.f32 0.0, %v692
    %694 = vdwg.mxu0
    %695 = vmatprep.subr.bf16.mxu0 %v635
    %696 = vmatpush1.bf16.msra.mxu0 %v634
    %697 = vmatprep.subr.bf16.mxu0 0
    %698 = vmatpush1.bf16.msra.mxu0 0
    %699 = vmatprep.subr.bf16.mxu0 0
    %700 = vmatpush1.bf16.msra.mxu0 0
    %701 = vmatprep.subr.bf16.mxu0 0
    %702 = vmatpush1.bf16.msra.mxu0 0
    %703 = vmatprep.subr.bf16.mxu0 0
    %704 = vmatpush1.bf16.msra.mxu0 0
    %705 = vmatprep.subr.bf16.mxu0 0
    %706 = vmatpush1.bf16.msra.mxu0 0
    %707 = vmatprep.subr.bf16.mxu0 0
    %708 = vmatpush1.bf16.msra.mxu0 0
    %709 = vmatprep.subr.bf16.mxu0 0
    %710 = vmatpush1.bf16.msra.mxu0 0
    %711 = vmatprep.subr.bf16.mxu0 0
    %712 = vmatpush1.bf16.msra.mxu0 0
    %713 = vmatprep.subr.bf16.mxu0 0
    %714 = vmatpush1.bf16.msra.mxu0 0
    %715 = vmatprep.subr.bf16.mxu0 0
    %716 = vmatpush1.bf16.msra.mxu0 0
    %717 = vmatprep.subr.bf16.mxu0 0
    %718 = vmatpush1.bf16.msra.mxu0 0
    %719 = vmatprep.subr.bf16.mxu0 0
    %720 = vmatpush1.bf16.msra.mxu0 0
    %721 = vmatprep.subr.bf16.mxu0 0
    %722 = vmatpush1.bf16.msra.mxu0 0
    %723 = vmatprep.subr.bf16.mxu0 0
    %724 = vmatpush1.bf16.msra.mxu0 0
    %725 = vmatprep.subr.bf16.mxu0 0
    %726 = vmatpush1.bf16.msra.mxu0 0
    %727 = vmatprep.mubr.bf16.mxu0 0
    %728 = vmatmul.mubr.bf16.gmra.mrb[0].mxu0 %v650
    %v729 = vpop.f32.mrb[0].mxu0
    %v730 = vadd.f32 0.0, %v729
    %v731 = vpop.f32.mrb[0].mxu0
    %v732 = vadd.f32 0.0, %v731
    %v733 = vpop.f32.mrb[0].mxu0
    %v734 = vadd.f32 0.0, %v733
    %v735 = vpop.f32.mrb[0].mxu0
    %v736 = vadd.f32 0.0, %v735
    %737 = vdwg.mxu0
    %738 = vmatprep.subr.bf16.mxu0 %v637
    %739 = vmatpush1.bf16.msra.mxu0 %v636
    %740 = vmatprep.subr.bf16.mxu0 0
    %741 = vmatpush1.bf16.msra.mxu0 0
    %742 = vmatprep.subr.bf16.mxu0 0
    %743 = vmatpush1.bf16.msra.mxu0 0
    %744 = vmatprep.subr.bf16.mxu0 0
    %745 = vmatpush1.bf16.msra.mxu0 0
    %746 = vmatprep.subr.bf16.mxu0 0
    %747 = vmatpush1.bf16.msra.mxu0 0
    %748 = vmatprep.subr.bf16.mxu0 0
    %749 = vmatpush1.bf16.msra.mxu0 0
    %750 = vmatprep.subr.bf16.mxu0 0
    %751 = vmatpush1.bf16.msra.mxu0 0
    %752 = vmatprep.subr.bf16.mxu0 0
    %753 = vmatpush1.bf16.msra.mxu0 0
    %754 = vmatprep.subr.bf16.mxu0 0
    %755 = vmatpush1.bf16.msra.mxu0 0
    %756 = vmatprep.subr.bf16.mxu0 0
    %757 = vmatpush1.bf16.msra.mxu0 0
    %758 = vmatprep.subr.bf16.mxu0 0
    %759 = vmatpush1.bf16.msra.mxu0 0
    %760 = vmatprep.subr.bf16.mxu0 0
    %761 = vmatpush1.bf16.msra.mxu0 0
    %762 = vmatprep.subr.bf16.mxu0 0
    %763 = vmatpush1.bf16.msra.mxu0 0
    %764 = vmatprep.subr.bf16.mxu0 0
    %765 = vmatpush1.bf16.msra.mxu0 0
    %766 = vmatprep.subr.bf16.mxu0 0
    %767 = vmatpush1.bf16.msra.mxu0 0
    %768 = vmatprep.subr.bf16.mxu0 0
    %769 = vmatpush1.bf16.msra.mxu0 0
    %770 = vmatprep.mubr.bf16.mxu0 0
    %771 = vmatmul.mubr.bf16.gmra.mrb[0].mxu0 %v650
    %v772 = vpop.f32.mrb[0].mxu0
    %v773 = vadd.f32 0.0, %v772
    %v774 = vpop.f32.mrb[0].mxu0
    %v775 = vadd.f32 0.0, %v774
    %v776 = vpop.f32.mrb[0].mxu0
    %v777 = vadd.f32 0.0, %v776
    %v778 = vpop.f32.mrb[0].mxu0
    %v779 = vadd.f32 0.0, %v778
    %780 = vdwg.mxu0
    %781 = vmatprep.subr.bf16.mxu0 %v639
    %782 = vmatpush1.bf16.msra.mxu0 %v638
    %783 = vmatprep.subr.bf16.mxu0 0
    %784 = vmatpush1.bf16.msra.mxu0 0
    %785 = vmatprep.subr.bf16.mxu0 0
    %786 = vmatpush1.bf16.msra.mxu0 0
    %787 = vmatprep.subr.bf16.mxu0 0
    %788 = vmatpush1.bf16.msra.mxu0 0
    %789 = vmatprep.subr.bf16.mxu0 0
    %790 = vmatpush1.bf16.msra.mxu0 0
    %791 = vmatprep.subr.bf16.mxu0 0
    %792 = vmatpush1.bf16.msra.mxu0 0
    %793 = vmatprep.subr.bf16.mxu0 0
    %794 = vmatpush1.bf16.msra.mxu0 0
    %795 = vmatprep.subr.bf16.mxu0 0
    %796 = vmatpush1.bf16.msra.mxu0 0
    %797 = vmatprep.subr.bf16.mxu0 0
    %798 = vmatpush1.bf16.msra.mxu0 0
    %799 = vmatprep.subr.bf16.mxu0 0
    %800 = vmatpush1.bf16.msra.mxu0 0
    %801 = vmatprep.subr.bf16.mxu0 0
    %802 = vmatpush1.bf16.msra.mxu0 0
    %803 = vmatprep.subr.bf16.mxu0 0
    %804 = vmatpush1.bf16.msra.mxu0 0
    %805 = vmatprep.subr.bf16.mxu0 0
    %806 = vmatpush1.bf16.msra.mxu0 0
    %807 = vmatprep.subr.bf16.mxu0 0
    %808 = vmatpush1.bf16.msra.mxu0 0
    %809 = vmatprep.subr.bf16.mxu0 0
    %810 = vmatpush1.bf16.msra.mxu0 0
    %811 = vmatprep.subr.bf16.mxu0 0
    %812 = vmatpush1.bf16.msra.mxu0 0
    %813 = vmatprep.mubr.bf16.mxu0 0
    %814 = vmatmul.mubr.bf16.gmra.mrb[0].mxu0 %v650
    %v815 = vpop.f32.mrb[0].mxu0
    %v816 = vadd.f32 0.0, %v815
    %v817 = vpop.f32.mrb[0].mxu0
    %v818 = vadd.f32 0.0, %v817
    %v819 = vpop.f32.mrb[0].mxu0
    %v820 = vadd.f32 0.0, %v819
    %v821 = vpop.f32.mrb[0].mxu0
    %v822 = vadd.f32 0.0, %v821
    %823 = vdwg.mxu0
    %v1216 = vunpack.c.l.b16 %v208
    %v1217 = vunpack.c.h.b16 %v208
    %v1218 = vunpack.c.l.b16 %v209
    %v1219 = vunpack.c.h.b16 %v209
    %v1220 = vunpack.c.l.b16 %v210
    %v1221 = vunpack.c.h.b16 %v210
    %v1222 = vunpack.c.l.b16 %v211
    %v1223 = vunpack.c.h.b16 %v211
    %v1224 = vunpack.c.l.b16 %v212
    %v1225 = vunpack.c.h.b16 %v212
    %v1226 = vunpack.c.l.b16 %v213
    %v1227 = vunpack.c.h.b16 %v213
    %v1228 = vunpack.c.l.b16 %v214
    %v1229 = vunpack.c.h.b16 %v214
    %v1230 = vunpack.c.l.b16 %v215
    %v1231 = vunpack.c.h.b16 %v215
    %v1232 = vunpack.c.l.b16 %v216
    %v1233 = vunpack.c.h.b16 %v216
    %v1234 = vunpack.c.l.b16 %v217
    %v1235 = vunpack.c.h.b16 %v217
    %v1236 = vunpack.c.l.b16 %v218
    %v1237 = vunpack.c.h.b16 %v218
    %v1238 = vunpack.c.l.b16 %v219
    %v1239 = vunpack.c.h.b16 %v219
    %v1240 = vunpack.c.l.b16 %v220
    %v1241 = vunpack.c.h.b16 %v220
    %v1242 = vunpack.c.l.b16 %v221
    %v1243 = vunpack.c.h.b16 %v221
    %v1244 = vunpack.c.l.b16 %v222
    %v1245 = vunpack.c.h.b16 %v222
    %v1246 = vunpack.c.l.b16 %v223
    %v1247 = vunpack.c.h.b16 %v223
    %v1248 = vunpack.c.l.b16 %v224
    %v1249 = vunpack.c.h.b16 %v224
    %v1250 = vunpack.c.l.b16 %v225
    %v1251 = vunpack.c.h.b16 %v225
    %v1252 = vunpack.c.l.b16 %v226
    %v1253 = vunpack.c.h.b16 %v226
    %v1254 = vunpack.c.l.b16 %v227
    %v1255 = vunpack.c.h.b16 %v227
    %v1256 = vunpack.c.l.b16 %v228
    %v1257 = vunpack.c.h.b16 %v228
    %v1258 = vunpack.c.l.b16 %v229
    %v1259 = vunpack.c.h.b16 %v229
    %v1260 = vunpack.c.l.b16 %v230
    %v1261 = vunpack.c.h.b16 %v230
    %v1262 = vunpack.c.l.b16 %v231
    %v1263 = vunpack.c.h.b16 %v231
    %v1264 = vunpack.c.l.b16 %v232
    %v1265 = vunpack.c.h.b16 %v232
    %v1266 = vunpack.c.l.b16 %v233
    %v1267 = vunpack.c.h.b16 %v233
    %v1268 = vunpack.c.l.b16 %v234
    %v1269 = vunpack.c.h.b16 %v234
    %v1270 = vunpack.c.l.b16 %v235
    %v1271 = vunpack.c.h.b16 %v235
    %v1272 = vunpack.c.l.b16 %v236
    %v1273 = vunpack.c.h.b16 %v236
    %v1274 = vunpack.c.l.b16 %v237
    %v1275 = vunpack.c.h.b16 %v237
    %v1276 = vunpack.c.l.b16 %v238
    %v1277 = vunpack.c.h.b16 %v238
    %v1278 = vunpack.c.l.b16 %v239
    %v1279 = vunpack.c.h.b16 %v239
    %v1280 = vunpack.c.l.b16 %v240
    %v1281 = vunpack.c.h.b16 %v240
    %v1282 = vunpack.c.l.b16 %v241
    %v1283 = vunpack.c.h.b16 %v241
    %v1284 = vunpack.c.l.b16 %v242
    %v1285 = vunpack.c.h.b16 %v242
    %v1286 = vunpack.c.l.b16 %v243
    %v1287 = vunpack.c.h.b16 %v243
    %v1288 = vunpack.c.l.b16 %v244
    %v1289 = vunpack.c.h.b16 %v244
    %v1290 = vunpack.c.l.b16 %v245
    %v1291 = vunpack.c.h.b16 %v245
    %v1292 = vunpack.c.l.b16 %v246
    %v1293 = vunpack.c.h.b16 %v246
    %v1294 = vunpack.c.l.b16 %v247
    %v1295 = vunpack.c.h.b16 %v247
    %v1296 = vunpack.c.l.b16 %v248
    %v1297 = vunpack.c.h.b16 %v248
    %v1298 = vunpack.c.l.b16 %v249
    %v1299 = vunpack.c.h.b16 %v249
    %v1300 = vunpack.c.l.b16 %v250
    %v1301 = vunpack.c.h.b16 %v250
    %v1302 = vunpack.c.l.b16 %v251
    %v1303 = vunpack.c.h.b16 %v251
    %v1304 = vunpack.c.l.b16 %v252
    %v1305 = vunpack.c.h.b16 %v252
    %v1306 = vunpack.c.l.b16 %v253
    %v1307 = vunpack.c.h.b16 %v253
    %v1308 = vunpack.c.l.b16 %v254
    %v1309 = vunpack.c.h.b16 %v254
    %v1310 = vunpack.c.l.b16 %v255
    %v1311 = vunpack.c.h.b16 %v255
    %v1312 = vunpack.c.l.b16 %v256
    %v1313 = vunpack.c.h.b16 %v256
    %v1314 = vunpack.c.l.b16 %v257
    %v1315 = vunpack.c.h.b16 %v257
    %v1316 = vunpack.c.l.b16 %v258
    %v1317 = vunpack.c.h.b16 %v258
    %v1318 = vunpack.c.l.b16 %v259
    %v1319 = vunpack.c.h.b16 %v259
    %v1320 = vunpack.c.l.b16 %v260
    %v1321 = vunpack.c.h.b16 %v260
    %v1322 = vunpack.c.l.b16 %v261
    %v1323 = vunpack.c.h.b16 %v261
    %v1324 = vunpack.c.l.b16 %v262
    %v1325 = vunpack.c.h.b16 %v262
    %v1326 = vunpack.c.l.b16 %v263
    %v1327 = vunpack.c.h.b16 %v263
    %v1328 = vunpack.c.l.b16 %v264
    %v1329 = vunpack.c.h.b16 %v264
    %v1330 = vunpack.c.l.b16 %v265
    %v1331 = vunpack.c.h.b16 %v265
    %v1332 = vunpack.c.l.b16 %v266
    %v1333 = vunpack.c.h.b16 %v266
    %v1334 = vunpack.c.l.b16 %v267
    %v1335 = vunpack.c.h.b16 %v267
    %v1336 = vunpack.c.l.b16 %v268
    %v1337 = vunpack.c.h.b16 %v268
    %v1338 = vunpack.c.l.b16 %v269
    %v1339 = vunpack.c.h.b16 %v269
    %v1340 = vunpack.c.l.b16 %v270
    %v1341 = vunpack.c.h.b16 %v270
    %v1342 = vunpack.c.l.b16 %v271
    %v1343 = vunpack.c.h.b16 %v271
    %v1344 = vunpack.c.l.b16 %v272
    %v1345 = vunpack.c.h.b16 %v272
    %v1346 = vunpack.c.l.b16 %v273
    %v1347 = vunpack.c.h.b16 %v273
    %v1348 = vunpack.c.l.b16 %v274
    %v1349 = vunpack.c.h.b16 %v274
    %v1350 = vunpack.c.l.b16 %v275
    %v1351 = vunpack.c.h.b16 %v275
    %v1352 = vunpack.c.l.b16 %v276
    %v1353 = vunpack.c.h.b16 %v276
    %v1354 = vunpack.c.l.b16 %v277
    %v1355 = vunpack.c.h.b16 %v277
    %v1356 = vunpack.c.l.b16 %v278
    %v1357 = vunpack.c.h.b16 %v278
    %v1358 = vunpack.c.l.b16 %v279
    %v1359 = vunpack.c.h.b16 %v279
    %v1360 = vunpack.c.l.b16 %v280
    %v1361 = vunpack.c.h.b16 %v280
    %v1362 = vunpack.c.l.b16 %v281
    %v1363 = vunpack.c.h.b16 %v281
    %v1364 = vunpack.c.l.b16 %v282
    %v1365 = vunpack.c.h.b16 %v282
    %v1366 = vunpack.c.l.b16 %v283
    %v1367 = vunpack.c.h.b16 %v283
    %v1368 = vunpack.c.l.b16 %v284
    %v1369 = vunpack.c.h.b16 %v284
    %v1370 = vunpack.c.l.b16 %v285
    %v1371 = vunpack.c.h.b16 %v285
    %v1372 = vunpack.c.l.b16 %v286
    %v1373 = vunpack.c.h.b16 %v286
    %v1374 = vunpack.c.l.b16 %v287
    %v1375 = vunpack.c.h.b16 %v287
    %v1376 = vunpack.c.l.b16 %v288
    %v1377 = vunpack.c.h.b16 %v288
    %v1378 = vunpack.c.l.b16 %v289
    %v1379 = vunpack.c.h.b16 %v289
    %v1380 = vunpack.c.l.b16 %v290
    %v1381 = vunpack.c.h.b16 %v290
    %v1382 = vunpack.c.l.b16 %v291
    %v1383 = vunpack.c.h.b16 %v291
    %v1384 = vunpack.c.l.b16 %v292
    %v1385 = vunpack.c.h.b16 %v292
    %v1386 = vunpack.c.l.b16 %v293
    %v1387 = vunpack.c.h.b16 %v293
    %v1388 = vunpack.c.l.b16 %v294
    %v1389 = vunpack.c.h.b16 %v294
    %v1390 = vunpack.c.l.b16 %v295
    %v1391 = vunpack.c.h.b16 %v295
    %v1392 = vunpack.c.l.b16 %v296
    %v1393 = vunpack.c.h.b16 %v296
    %v1394 = vunpack.c.l.b16 %v297
    %v1395 = vunpack.c.h.b16 %v297
    %v1396 = vunpack.c.l.b16 %v298
    %v1397 = vunpack.c.h.b16 %v298
    %v1398 = vunpack.c.l.b16 %v299
    %v1399 = vunpack.c.h.b16 %v299
    %v1400 = vunpack.c.l.b16 %v300
    %v1401 = vunpack.c.h.b16 %v300
    %v1402 = vunpack.c.l.b16 %v301
    %v1403 = vunpack.c.h.b16 %v301
    %v1404 = vunpack.c.l.b16 %v302
    %v1405 = vunpack.c.h.b16 %v302
    %v1406 = vunpack.c.l.b16 %v303
    %v1407 = vunpack.c.h.b16 %v303
    %v1408 = vunpack.c.l.b16 %v304
    %v1409 = vunpack.c.h.b16 %v304
    %v1410 = vunpack.c.l.b16 %v305
    %v1411 = vunpack.c.h.b16 %v305
    %v1412 = vunpack.c.l.b16 %v306
    %v1413 = vunpack.c.h.b16 %v306
    %v1414 = vunpack.c.l.b16 %v307
    %v1415 = vunpack.c.h.b16 %v307
    %v1416 = vunpack.c.l.b16 %v308
    %v1417 = vunpack.c.h.b16 %v308
    %v1418 = vunpack.c.l.b16 %v309
    %v1419 = vunpack.c.h.b16 %v309
    %v1420 = vunpack.c.l.b16 %v310
    %v1421 = vunpack.c.h.b16 %v310
    %v1422 = vunpack.c.l.b16 %v311
    %v1423 = vunpack.c.h.b16 %v311
    %v1424 = vunpack.c.l.b16 %v312
    %v1425 = vunpack.c.h.b16 %v312
    %v1426 = vunpack.c.l.b16 %v313
    %v1427 = vunpack.c.h.b16 %v313
    %v1428 = vunpack.c.l.b16 %v314
    %v1429 = vunpack.c.h.b16 %v314
    %v1430 = vunpack.c.l.b16 %v315
    %v1431 = vunpack.c.h.b16 %v315
    %v1432 = vunpack.c.l.b16 %v316
    %v1433 = vunpack.c.h.b16 %v316
    %v1434 = vunpack.c.l.b16 %v317
    %v1435 = vunpack.c.h.b16 %v317
    %v1436 = vunpack.c.l.b16 %v318
    %v1437 = vunpack.c.h.b16 %v318
    %v1438 = vunpack.c.l.b16 %v319
    %v1439 = vunpack.c.h.b16 %v319
    %v1440 = vunpack.c.l.b16 %v320
    %v1441 = vunpack.c.h.b16 %v320
    %v1442 = vunpack.c.l.b16 %v321
    %v1443 = vunpack.c.h.b16 %v321
    %v1444 = vunpack.c.l.b16 %v322
    %v1445 = vunpack.c.h.b16 %v322
    %v1446 = vunpack.c.l.b16 %v323
    %v1447 = vunpack.c.h.b16 %v323
    %v1448 = vunpack.c.l.b16 %v324
    %v1449 = vunpack.c.h.b16 %v324
    %v1450 = vunpack.c.l.b16 %v325
    %v1451 = vunpack.c.h.b16 %v325
    %v1452 = vunpack.c.l.b16 %v326
    %v1453 = vunpack.c.h.b16 %v326
    %v1454 = vunpack.c.l.b16 %v327
    %v1455 = vunpack.c.h.b16 %v327
    %v1456 = vunpack.c.l.b16 %v328
    %v1457 = vunpack.c.h.b16 %v328
    %v1458 = vunpack.c.l.b16 %v329
    %v1459 = vunpack.c.h.b16 %v329
    %v1460 = vunpack.c.l.b16 %v330
    %v1461 = vunpack.c.h.b16 %v330
    %v1462 = vunpack.c.l.b16 %v331
    %v1463 = vunpack.c.h.b16 %v331
    %v1464 = vunpack.c.l.b16 %v332
    %v1465 = vunpack.c.h.b16 %v332
    %v1466 = vunpack.c.l.b16 %v333
    %v1467 = vunpack.c.h.b16 %v333
    %v1468 = vunpack.c.l.b16 %v334
    %v1469 = vunpack.c.h.b16 %v334
    %v1470 = vunpack.c.l.b16 %v335
    %v1471 = vunpack.c.h.b16 %v335
    %v1472 = vunpack.c.l.b16 %v336
    %v1473 = vunpack.c.h.b16 %v336
    %v1474 = vunpack.c.l.b16 %v337
    %v1475 = vunpack.c.h.b16 %v337
    %v1476 = vunpack.c.l.b16 %v338
    %v1477 = vunpack.c.h.b16 %v338
    %v1478 = vunpack.c.l.b16 %v339
    %v1479 = vunpack.c.h.b16 %v339
    %v1480 = vunpack.c.l.b16 %v340
    %v1481 = vunpack.c.h.b16 %v340
    %v1482 = vunpack.c.l.b16 %v341
    %v1483 = vunpack.c.h.b16 %v341
    %v1484 = vunpack.c.l.b16 %v342
    %v1485 = vunpack.c.h.b16 %v342
    %v1486 = vunpack.c.l.b16 %v343
    %v1487 = vunpack.c.h.b16 %v343
    %v1488 = vunpack.c.l.b16 %v344
    %v1489 = vunpack.c.h.b16 %v344
    %v1490 = vunpack.c.l.b16 %v345
    %v1491 = vunpack.c.h.b16 %v345
    %v1492 = vunpack.c.l.b16 %v346
    %v1493 = vunpack.c.h.b16 %v346
    %v1494 = vunpack.c.l.b16 %v347
    %v1495 = vunpack.c.h.b16 %v347
    %v1496 = vunpack.c.l.b16 %v348
    %v1497 = vunpack.c.h.b16 %v348
    %v1498 = vunpack.c.l.b16 %v349
    %v1499 = vunpack.c.h.b16 %v349
    %v1500 = vunpack.c.l.b16 %v350
    %v1501 = vunpack.c.h.b16 %v350
    %v1502 = vunpack.c.l.b16 %v351
    %v1503 = vunpack.c.h.b16 %v351
    %v1504 = vunpack.c.l.b16 %v352
    %v1505 = vunpack.c.h.b16 %v352
    %v1506 = vunpack.c.l.b16 %v353
    %v1507 = vunpack.c.h.b16 %v353
    %v1508 = vunpack.c.l.b16 %v354
    %v1509 = vunpack.c.h.b16 %v354
    %v1510 = vunpack.c.l.b16 %v355
    %v1511 = vunpack.c.h.b16 %v355
    %v1512 = vunpack.c.l.b16 %v356
    %v1513 = vunpack.c.h.b16 %v356
    %v1514 = vunpack.c.l.b16 %v357
    %v1515 = vunpack.c.h.b16 %v357
    %v1516 = vunpack.c.l.b16 %v358
    %v1517 = vunpack.c.h.b16 %v358
    %v1518 = vunpack.c.l.b16 %v359
    %v1519 = vunpack.c.h.b16 %v359
    %v1520 = vunpack.c.l.b16 %v360
    %v1521 = vunpack.c.h.b16 %v360
    %v1522 = vunpack.c.l.b16 %v361
    %v1523 = vunpack.c.h.b16 %v361
    %v1524 = vunpack.c.l.b16 %v362
    %v1525 = vunpack.c.h.b16 %v362
    %v1526 = vunpack.c.l.b16 %v363
    %v1527 = vunpack.c.h.b16 %v363
    %v1528 = vunpack.c.l.b16 %v364
    %v1529 = vunpack.c.h.b16 %v364
    %v1530 = vunpack.c.l.b16 %v365
    %v1531 = vunpack.c.h.b16 %v365
    %v1532 = vunpack.c.l.b16 %v366
    %v1533 = vunpack.c.h.b16 %v366
    %v1534 = vunpack.c.l.b16 %v367
    %v1535 = vunpack.c.h.b16 %v367
    %v1536 = vunpack.c.l.b16 %v368
    %v1537 = vunpack.c.h.b16 %v368
    %v1538 = vunpack.c.l.b16 %v369
    %v1539 = vunpack.c.h.b16 %v369
    %v1540 = vunpack.c.l.b16 %v370
    %v1541 = vunpack.c.h.b16 %v370
    %v1542 = vunpack.c.l.b16 %v371
    %v1543 = vunpack.c.h.b16 %v371
    %v1544 = vunpack.c.l.b16 %v372
    %v1545 = vunpack.c.h.b16 %v372
    %v1546 = vunpack.c.l.b16 %v373
    %v1547 = vunpack.c.h.b16 %v373
    %v1548 = vunpack.c.l.b16 %v374
    %v1549 = vunpack.c.h.b16 %v374
    %v1550 = vunpack.c.l.b16 %v375
    %v1551 = vunpack.c.h.b16 %v375
    %v1552 = vunpack.c.l.b16 %v376
    %v1553 = vunpack.c.h.b16 %v376
    %v1554 = vunpack.c.l.b16 %v377
    %v1555 = vunpack.c.h.b16 %v377
    %v1556 = vunpack.c.l.b16 %v378
    %v1557 = vunpack.c.h.b16 %v378
    %v1558 = vunpack.c.l.b16 %v379
    %v1559 = vunpack.c.h.b16 %v379
    %v1560 = vunpack.c.l.b16 %v380
    %v1561 = vunpack.c.h.b16 %v380
    %v1562 = vunpack.c.l.b16 %v381
    %v1563 = vunpack.c.h.b16 %v381
    %v1564 = vunpack.c.l.b16 %v382
    %v1565 = vunpack.c.h.b16 %v382
    %v1566 = vunpack.c.l.b16 %v383
    %v1567 = vunpack.c.h.b16 %v383
    %v1568 = vunpack.c.l.b16 %v384
    %v1569 = vunpack.c.h.b16 %v384
    %v1570 = vunpack.c.l.b16 %v385
    %v1571 = vunpack.c.h.b16 %v385
    %v1572 = vunpack.c.l.b16 %v386
    %v1573 = vunpack.c.h.b16 %v386
    %v1574 = vunpack.c.l.b16 %v387
    %v1575 = vunpack.c.h.b16 %v387
    %v1576 = vunpack.c.l.b16 %v388
    %v1577 = vunpack.c.h.b16 %v388
    %v1578 = vunpack.c.l.b16 %v389
    %v1579 = vunpack.c.h.b16 %v389
    %v1580 = vunpack.c.l.b16 %v390
    %v1581 = vunpack.c.h.b16 %v390
    %v1582 = vunpack.c.l.b16 %v391
    %v1583 = vunpack.c.h.b16 %v391
    %v1584 = vunpack.c.l.b16 %v392
    %v1585 = vunpack.c.h.b16 %v392
    %v1586 = vunpack.c.l.b16 %v393
    %v1587 = vunpack.c.h.b16 %v393
    %v1588 = vunpack.c.l.b16 %v394
    %v1589 = vunpack.c.h.b16 %v394
    %v1590 = vunpack.c.l.b16 %v395
    %v1591 = vunpack.c.h.b16 %v395
    %v1592 = vunpack.c.l.b16 %v396
    %v1593 = vunpack.c.h.b16 %v396
    %v1594 = vunpack.c.l.b16 %v397
    %v1595 = vunpack.c.h.b16 %v397
    %v1596 = vunpack.c.l.b16 %v398
    %v1597 = vunpack.c.h.b16 %v398
    %v1598 = vunpack.c.l.b16 %v399
    %v1599 = vunpack.c.h.b16 %v399
    %v1600 = vunpack.c.l.b16 %v400
    %v1601 = vunpack.c.h.b16 %v400
    %v1602 = vunpack.c.l.b16 %v401
    %v1603 = vunpack.c.h.b16 %v401
    %v1604 = vunpack.c.l.b16 %v402
    %v1605 = vunpack.c.h.b16 %v402
    %v1606 = vunpack.c.l.b16 %v403
    %v1607 = vunpack.c.h.b16 %v403
    %v1608 = vunpack.c.l.b16 %v404
    %v1609 = vunpack.c.h.b16 %v404
    %v1610 = vunpack.c.l.b16 %v405
    %v1611 = vunpack.c.h.b16 %v405
    %v1612 = vunpack.c.l.b16 %v406
    %v1613 = vunpack.c.h.b16 %v406
    %v1614 = vunpack.c.l.b16 %v407
    %v1615 = vunpack.c.h.b16 %v407
    %v1616 = vunpack.c.l.b16 %v408
    %v1617 = vunpack.c.h.b16 %v408
    %v1618 = vunpack.c.l.b16 %v409
    %v1619 = vunpack.c.h.b16 %v409
    %v1620 = vunpack.c.l.b16 %v410
    %v1621 = vunpack.c.h.b16 %v410
    %v1622 = vunpack.c.l.b16 %v411
    %v1623 = vunpack.c.h.b16 %v411
    %v1624 = vunpack.c.l.b16 %v412
    %v1625 = vunpack.c.h.b16 %v412
    %v1626 = vunpack.c.l.b16 %v413
    %v1627 = vunpack.c.h.b16 %v413
    %v1628 = vunpack.c.l.b16 %v414
    %v1629 = vunpack.c.h.b16 %v414
    %v1630 = vunpack.c.l.b16 %v415
    %v1631 = vunpack.c.h.b16 %v415
    %v1632 = vunpack.c.l.b16 %v416
    %v1633 = vunpack.c.h.b16 %v416
    %v1634 = vunpack.c.l.b16 %v417
    %v1635 = vunpack.c.h.b16 %v417
    %v1636 = vunpack.c.l.b16 %v418
    %v1637 = vunpack.c.h.b16 %v418
    %v1638 = vunpack.c.l.b16 %v419
    %v1639 = vunpack.c.h.b16 %v419
    %v1640 = vunpack.c.l.b16 %v420
    %v1641 = vunpack.c.h.b16 %v420
    %v1642 = vunpack.c.l.b16 %v421
    %v1643 = vunpack.c.h.b16 %v421
    %v1644 = vunpack.c.l.b16 %v422
    %v1645 = vunpack.c.h.b16 %v422
    %v1646 = vunpack.c.l.b16 %v423
    %v1647 = vunpack.c.h.b16 %v423
    %v1648 = vunpack.c.l.b16 %v424
    %v1649 = vunpack.c.h.b16 %v424
    %v1650 = vunpack.c.l.b16 %v425
    %v1651 = vunpack.c.h.b16 %v425
    %v1652 = vunpack.c.l.b16 %v426
    %v1653 = vunpack.c.h.b16 %v426
    %v1654 = vunpack.c.l.b16 %v427
    %v1655 = vunpack.c.h.b16 %v427
    %v1656 = vunpack.c.l.b16 %v428
    %v1657 = vunpack.c.h.b16 %v428
    %v1658 = vunpack.c.l.b16 %v429
    %v1659 = vunpack.c.h.b16 %v429
    %v1660 = vunpack.c.l.b16 %v430
    %v1661 = vunpack.c.h.b16 %v430
    %v1662 = vunpack.c.l.b16 %v431
    %v1663 = vunpack.c.h.b16 %v431
    %v1664 = vunpack.c.l.b16 %v432
    %v1665 = vunpack.c.h.b16 %v432
    %v1666 = vunpack.c.l.b16 %v433
    %v1667 = vunpack.c.h.b16 %v433
    %v1668 = vunpack.c.l.b16 %v434
    %v1669 = vunpack.c.h.b16 %v434
    %v1670 = vunpack.c.l.b16 %v435
    %v1671 = vunpack.c.h.b16 %v435
    %v1672 = vunpack.c.l.b16 %v436
    %v1673 = vunpack.c.h.b16 %v436
    %v1674 = vunpack.c.l.b16 %v437
    %v1675 = vunpack.c.h.b16 %v437
    %v1676 = vunpack.c.l.b16 %v438
    %v1677 = vunpack.c.h.b16 %v438
    %v1678 = vunpack.c.l.b16 %v439
    %v1679 = vunpack.c.h.b16 %v439
    %v1680 = vunpack.c.l.b16 %v440
    %v1681 = vunpack.c.h.b16 %v440
    %v1682 = vunpack.c.l.b16 %v441
    %v1683 = vunpack.c.h.b16 %v441
    %v1684 = vunpack.c.l.b16 %v442
    %v1685 = vunpack.c.h.b16 %v442
    %v1686 = vunpack.c.l.b16 %v443
    %v1687 = vunpack.c.h.b16 %v443
    %v1688 = vunpack.c.l.b16 %v444
    %v1689 = vunpack.c.h.b16 %v444
    %v1690 = vunpack.c.l.b16 %v445
    %v1691 = vunpack.c.h.b16 %v445
    %v1692 = vunpack.c.l.b16 %v446
    %v1693 = vunpack.c.h.b16 %v446
    %v1694 = vunpack.c.l.b16 %v447
    %v1695 = vunpack.c.h.b16 %v447
    %v1696 = vunpack.c.l.b16 %v448
    %v1697 = vunpack.c.h.b16 %v448
    %v1698 = vunpack.c.l.b16 %v449
    %v1699 = vunpack.c.h.b16 %v449
    %v1700 = vunpack.c.l.b16 %v450
    %v1701 = vunpack.c.h.b16 %v450
    %v1702 = vunpack.c.l.b16 %v451
    %v1703 = vunpack.c.h.b16 %v451
    %v1704 = vunpack.c.l.b16 %v452
    %v1705 = vunpack.c.h.b16 %v452
    %v1706 = vunpack.c.l.b16 %v453
    %v1707 = vunpack.c.h.b16 %v453
    %v1708 = vunpack.c.l.b16 %v454
    %v1709 = vunpack.c.h.b16 %v454
    %v1710 = vunpack.c.l.b16 %v455
    %v1711 = vunpack.c.h.b16 %v455
    %v1712 = vunpack.c.l.b16 %v456
    %v1713 = vunpack.c.h.b16 %v456
    %v1714 = vunpack.c.l.b16 %v457
    %v1715 = vunpack.c.h.b16 %v457
    %v1716 = vunpack.c.l.b16 %v458
    %v1717 = vunpack.c.h.b16 %v458
    %v1718 = vunpack.c.l.b16 %v459
    %v1719 = vunpack.c.h.b16 %v459
    %v1720 = vunpack.c.l.b16 %v460
    %v1721 = vunpack.c.h.b16 %v460
    %v1722 = vunpack.c.l.b16 %v461
    %v1723 = vunpack.c.h.b16 %v461
    %v1724 = vunpack.c.l.b16 %v462
    %v1725 = vunpack.c.h.b16 %v462
    %v1726 = vunpack.c.l.b16 %v463
    %v1727 = vunpack.c.h.b16 %v463
    %v1728 = vunpack.c.l.b16 %v464
    %v1729 = vunpack.c.h.b16 %v464
    %v1730 = vunpack.c.l.b16 %v465
    %v1731 = vunpack.c.h.b16 %v465
    %v1732 = vunpack.c.l.b16 %v466
    %v1733 = vunpack.c.h.b16 %v466
    %v1734 = vunpack.c.l.b16 %v467
    %v1735 = vunpack.c.h.b16 %v467
    %v1736 = vunpack.c.l.b16 %v468
    %v1737 = vunpack.c.h.b16 %v468
    %v1738 = vunpack.c.l.b16 %v469
    %v1739 = vunpack.c.h.b16 %v469
    %v1740 = vunpack.c.l.b16 %v470
    %v1741 = vunpack.c.h.b16 %v470
    %v1742 = vunpack.c.l.b16 %v471
    %v1743 = vunpack.c.h.b16 %v471
    %v1744 = vunpack.c.l.b16 %v472
    %v1745 = vunpack.c.h.b16 %v472
    %v1746 = vunpack.c.l.b16 %v473
    %v1747 = vunpack.c.h.b16 %v473
    %v1748 = vunpack.c.l.b16 %v474
    %v1749 = vunpack.c.h.b16 %v474
    %v1750 = vunpack.c.l.b16 %v475
    %v1751 = vunpack.c.h.b16 %v475
    %v1752 = vunpack.c.l.b16 %v476
    %v1753 = vunpack.c.h.b16 %v476
    %v1754 = vunpack.c.l.b16 %v477
    %v1755 = vunpack.c.h.b16 %v477
    %v1756 = vunpack.c.l.b16 %v478
    %v1757 = vunpack.c.h.b16 %v478
    %v1758 = vunpack.c.l.b16 %v479
    %v1759 = vunpack.c.h.b16 %v479
    %v1760 = vunpack.c.l.b16 %v480
    %v1761 = vunpack.c.h.b16 %v480
    %v1762 = vunpack.c.l.b16 %v481
    %v1763 = vunpack.c.h.b16 %v481
    %v1764 = vunpack.c.l.b16 %v482
    %v1765 = vunpack.c.h.b16 %v482
    %v1766 = vunpack.c.l.b16 %v483
    %v1767 = vunpack.c.h.b16 %v483
    %v1768 = vunpack.c.l.b16 %v484
    %v1769 = vunpack.c.h.b16 %v484
    %v1770 = vunpack.c.l.b16 %v485
    %v1771 = vunpack.c.h.b16 %v485
    %v1772 = vunpack.c.l.b16 %v486
    %v1773 = vunpack.c.h.b16 %v486
    %v1774 = vunpack.c.l.b16 %v487
    %v1775 = vunpack.c.h.b16 %v487
    %v1776 = vunpack.c.l.b16 %v488
    %v1777 = vunpack.c.h.b16 %v488
    %v1778 = vunpack.c.l.b16 %v489
    %v1779 = vunpack.c.h.b16 %v489
    %v1780 = vunpack.c.l.b16 %v490
    %v1781 = vunpack.c.h.b16 %v490
    %v1782 = vunpack.c.l.b16 %v491
    %v1783 = vunpack.c.h.b16 %v491
    %v1784 = vunpack.c.l.b16 %v492
    %v1785 = vunpack.c.h.b16 %v492
    %v1786 = vunpack.c.l.b16 %v493
    %v1787 = vunpack.c.h.b16 %v493
    %v1788 = vunpack.c.l.b16 %v494
    %v1789 = vunpack.c.h.b16 %v494
    %v1790 = vunpack.c.l.b16 %v495
    %v1791 = vunpack.c.h.b16 %v495
    %v1792 = vunpack.c.l.b16 %v496
    %v1793 = vunpack.c.h.b16 %v496
    %v1794 = vunpack.c.l.b16 %v497
    %v1795 = vunpack.c.h.b16 %v497
    %v1796 = vunpack.c.l.b16 %v498
    %v1797 = vunpack.c.h.b16 %v498
    %v1798 = vunpack.c.l.b16 %v499
    %v1799 = vunpack.c.h.b16 %v499
    %v1800 = vunpack.c.l.b16 %v500
    %v1801 = vunpack.c.h.b16 %v500
    %v1802 = vunpack.c.l.b16 %v501
    %v1803 = vunpack.c.h.b16 %v501
    %v1804 = vunpack.c.l.b16 %v502
    %v1805 = vunpack.c.h.b16 %v502
    %v1806 = vunpack.c.l.b16 %v503
    %v1807 = vunpack.c.h.b16 %v503
    %v1808 = vunpack.c.l.b16 %v504
    %v1809 = vunpack.c.h.b16 %v504
    %v1810 = vunpack.c.l.b16 %v505
    %v1811 = vunpack.c.h.b16 %v505
    %v1812 = vunpack.c.l.b16 %v506
    %v1813 = vunpack.c.h.b16 %v506
    %v1814 = vunpack.c.l.b16 %v507
    %v1815 = vunpack.c.h.b16 %v507
    %v1816 = vunpack.c.l.b16 %v508
    %v1817 = vunpack.c.h.b16 %v508
    %v1818 = vunpack.c.l.b16 %v509
    %v1819 = vunpack.c.h.b16 %v509
    %v1820 = vunpack.c.l.b16 %v510
    %v1821 = vunpack.c.h.b16 %v510
    %v1822 = vunpack.c.l.b16 %v511
    %v1823 = vunpack.c.h.b16 %v511
    %v1824 = vunpack.c.l.b16 %v512
    %v1825 = vunpack.c.h.b16 %v512
    %v1826 = vunpack.c.l.b16 %v513
    %v1827 = vunpack.c.h.b16 %v513
    %v1828 = vunpack.c.l.b16 %v514
    %v1829 = vunpack.c.h.b16 %v514
    %v1830 = vunpack.c.l.b16 %v515
    %v1831 = vunpack.c.h.b16 %v515
    %v1832 = vunpack.c.l.b16 %v516
    %v1833 = vunpack.c.h.b16 %v516
    %v1834 = vunpack.c.l.b16 %v517
    %v1835 = vunpack.c.h.b16 %v517
    %v1836 = vunpack.c.l.b16 %v518
    %v1837 = vunpack.c.h.b16 %v518
    %v1838 = vunpack.c.l.b16 %v519
    %v1839 = vunpack.c.h.b16 %v519
    %v1840 = vunpack.c.l.b16 %v520
    %v1841 = vunpack.c.h.b16 %v520
    %v1842 = vunpack.c.l.b16 %v521
    %v1843 = vunpack.c.h.b16 %v521
    %v1844 = vunpack.c.l.b16 %v522
    %v1845 = vunpack.c.h.b16 %v522
    %v1846 = vunpack.c.l.b16 %v523
    %v1847 = vunpack.c.h.b16 %v523
    %v1848 = vunpack.c.l.b16 %v524
    %v1849 = vunpack.c.h.b16 %v524
    %v1850 = vunpack.c.l.b16 %v525
    %v1851 = vunpack.c.h.b16 %v525
    %v1852 = vunpack.c.l.b16 %v526
    %v1853 = vunpack.c.h.b16 %v526
    %v1854 = vunpack.c.l.b16 %v527
    %v1855 = vunpack.c.h.b16 %v527
    %v1856 = vunpack.c.l.b16 %v528
    %v1857 = vunpack.c.h.b16 %v528
    %v1858 = vunpack.c.l.b16 %v529
    %v1859 = vunpack.c.h.b16 %v529
    %v1860 = vunpack.c.l.b16 %v530
    %v1861 = vunpack.c.h.b16 %v530
    %v1862 = vunpack.c.l.b16 %v531
    %v1863 = vunpack.c.h.b16 %v531
    %v1864 = vunpack.c.l.b16 %v532
    %v1865 = vunpack.c.h.b16 %v532
    %v1866 = vunpack.c.l.b16 %v533
    %v1867 = vunpack.c.h.b16 %v533
    %v1868 = vunpack.c.l.b16 %v534
    %v1869 = vunpack.c.h.b16 %v534
    %v1870 = vunpack.c.l.b16 %v535
    %v1871 = vunpack.c.h.b16 %v535
    %v1872 = vunpack.c.l.b16 %v536
    %v1873 = vunpack.c.h.b16 %v536
    %v1874 = vunpack.c.l.b16 %v537
    %v1875 = vunpack.c.h.b16 %v537
    %v1876 = vunpack.c.l.b16 %v538
    %v1877 = vunpack.c.h.b16 %v538
    %v1878 = vunpack.c.l.b16 %v539
    %v1879 = vunpack.c.h.b16 %v539
    %v1880 = vunpack.c.l.b16 %v540
    %v1881 = vunpack.c.h.b16 %v540
    %v1882 = vunpack.c.l.b16 %v541
    %v1883 = vunpack.c.h.b16 %v541
    %v1884 = vunpack.c.l.b16 %v542
    %v1885 = vunpack.c.h.b16 %v542
    %v1886 = vunpack.c.l.b16 %v543
    %v1887 = vunpack.c.h.b16 %v543
    %v1888 = vunpack.c.l.b16 %v544
    %v1889 = vunpack.c.h.b16 %v544
    %v1890 = vunpack.c.l.b16 %v545
    %v1891 = vunpack.c.h.b16 %v545
    %v1892 = vunpack.c.l.b16 %v546
    %v1893 = vunpack.c.h.b16 %v546
    %v1894 = vunpack.c.l.b16 %v547
    %v1895 = vunpack.c.h.b16 %v547
    %v1896 = vunpack.c.l.b16 %v548
    %v1897 = vunpack.c.h.b16 %v548
    %v1898 = vunpack.c.l.b16 %v549
    %v1899 = vunpack.c.h.b16 %v549
    %v1900 = vunpack.c.l.b16 %v550
    %v1901 = vunpack.c.h.b16 %v550
    %v1902 = vunpack.c.l.b16 %v551
    %v1903 = vunpack.c.h.b16 %v551
    %v1904 = vunpack.c.l.b16 %v552
    %v1905 = vunpack.c.h.b16 %v552
    %v1906 = vunpack.c.l.b16 %v553
    %v1907 = vunpack.c.h.b16 %v553
    %v1908 = vunpack.c.l.b16 %v554
    %v1909 = vunpack.c.h.b16 %v554
    %v1910 = vunpack.c.l.b16 %v555
    %v1911 = vunpack.c.h.b16 %v555
    %v1912 = vunpack.c.l.b16 %v556
    %v1913 = vunpack.c.h.b16 %v556
    %v1914 = vunpack.c.l.b16 %v557
    %v1915 = vunpack.c.h.b16 %v557
    %v1916 = vunpack.c.l.b16 %v558
    %v1917 = vunpack.c.h.b16 %v558
    %v1918 = vunpack.c.l.b16 %v559
    %v1919 = vunpack.c.h.b16 %v559
    %v1920 = vunpack.c.l.b16 %v560
    %v1921 = vunpack.c.h.b16 %v560
    %v1922 = vunpack.c.l.b16 %v561
    %v1923 = vunpack.c.h.b16 %v561
    %v1924 = vunpack.c.l.b16 %v562
    %v1925 = vunpack.c.h.b16 %v562
    %v1926 = vunpack.c.l.b16 %v563
    %v1927 = vunpack.c.h.b16 %v563
    %v1928 = vunpack.c.l.b16 %v564
    %v1929 = vunpack.c.h.b16 %v564
    %v1930 = vunpack.c.l.b16 %v565
    %v1931 = vunpack.c.h.b16 %v565
    %v1932 = vunpack.c.l.b16 %v566
    %v1933 = vunpack.c.h.b16 %v566
    %v1934 = vunpack.c.l.b16 %v567
    %v1935 = vunpack.c.h.b16 %v567
    %v1936 = vunpack.c.l.b16 %v568
    %v1937 = vunpack.c.h.b16 %v568
    %v1938 = vunpack.c.l.b16 %v569
    %v1939 = vunpack.c.h.b16 %v569
    %v1940 = vunpack.c.l.b16 %v570
    %v1941 = vunpack.c.h.b16 %v570
    %v1942 = vunpack.c.l.b16 %v571
    %v1943 = vunpack.c.h.b16 %v571
    %v1944 = vunpack.c.l.b16 %v572
    %v1945 = vunpack.c.h.b16 %v572
    %v1946 = vunpack.c.l.b16 %v573
    %v1947 = vunpack.c.h.b16 %v573
    %v1948 = vunpack.c.l.b16 %v574
    %v1949 = vunpack.c.h.b16 %v574
    %v1950 = vunpack.c.l.b16 %v575
    %v1951 = vunpack.c.h.b16 %v575
    %v1952 = vunpack.c.l.b16 %v576
    %v1953 = vunpack.c.h.b16 %v576
    %v1954 = vunpack.c.l.b16 %v577
    %v1955 = vunpack.c.h.b16 %v577
    %v1956 = vunpack.c.l.b16 %v578
    %v1957 = vunpack.c.h.b16 %v578
    %v1958 = vunpack.c.l.b16 %v579
    %v1959 = vunpack.c.h.b16 %v579
    %v1960 = vunpack.c.l.b16 %v580
    %v1961 = vunpack.c.h.b16 %v580
    %v1962 = vunpack.c.l.b16 %v581
    %v1963 = vunpack.c.h.b16 %v581
    %v1964 = vunpack.c.l.b16 %v582
    %v1965 = vunpack.c.h.b16 %v582
    %v1966 = vunpack.c.l.b16 %v583
    %v1967 = vunpack.c.h.b16 %v583
    %v1968 = vunpack.c.l.b16 %v584
    %v1969 = vunpack.c.h.b16 %v584
    %v1970 = vunpack.c.l.b16 %v585
    %v1971 = vunpack.c.h.b16 %v585
    %v1972 = vunpack.c.l.b16 %v586
    %v1973 = vunpack.c.h.b16 %v586
    %v1974 = vunpack.c.l.b16 %v587
    %v1975 = vunpack.c.h.b16 %v587
    %v1976 = vunpack.c.l.b16 %v588
    %v1977 = vunpack.c.h.b16 %v588
    %v1978 = vunpack.c.l.b16 %v589
    %v1979 = vunpack.c.h.b16 %v589
    %v1980 = vunpack.c.l.b16 %v590
    %v1981 = vunpack.c.h.b16 %v590
    %v1982 = vunpack.c.l.b16 %v591
    %v1983 = vunpack.c.h.b16 %v591
    %v1984 = vunpack.c.l.b16 %v592
    %v1985 = vunpack.c.h.b16 %v592
    %v1986 = vunpack.c.l.b16 %v593
    %v1987 = vunpack.c.h.b16 %v593
    %v1988 = vunpack.c.l.b16 %v594
    %v1989 = vunpack.c.h.b16 %v594
    %v1990 = vunpack.c.l.b16 %v595
    %v1991 = vunpack.c.h.b16 %v595
    %v1992 = vunpack.c.l.b16 %v596
    %v1993 = vunpack.c.h.b16 %v596
    %v1994 = vunpack.c.l.b16 %v597
    %v1995 = vunpack.c.h.b16 %v597
    %v1996 = vunpack.c.l.b16 %v598
    %v1997 = vunpack.c.h.b16 %v598
    %v1998 = vunpack.c.l.b16 %v599
    %v1999 = vunpack.c.h.b16 %v599
    %v2000 = vpack.c.b16 %v1224, %v1216
    %v2001 = vpack.c.b16 %v1225, %v1217
    %v2002 = vpack.c.b16 %v1226, %v1218
    %v2003 = vpack.c.b16 %v1227, %v1219
    %v2004 = vpack.c.b16 %v1228, %v1220
    %v2005 = vpack.c.b16 %v1229, %v1221
    %v2006 = vpack.c.b16 %v1230, %v1222
    %v2007 = vpack.c.b16 %v1231, %v1223
    %v2008 = vpack.c.b16 %v1240, %v1232
    %v2009 = vpack.c.b16 %v1241, %v1233
    %v2010 = vpack.c.b16 %v1242, %v1234
    %v2011 = vpack.c.b16 %v1243, %v1235
    %v2012 = vpack.c.b16 %v1244, %v1236
    %v2013 = vpack.c.b16 %v1245, %v1237
    %v2014 = vpack.c.b16 %v1246, %v1238
    %v2015 = vpack.c.b16 %v1247, %v1239
    %v2016 = vpack.c.b16 %v1256, %v1248
    %v2017 = vpack.c.b16 %v1257, %v1249
    %v2018 = vpack.c.b16 %v1258, %v1250
    %v2019 = vpack.c.b16 %v1259, %v1251
    %v2020 = vpack.c.b16 %v1260, %v1252
    %v2021 = vpack.c.b16 %v1261, %v1253
    %v2022 = vpack.c.b16 %v1262, %v1254
    %v2023 = vpack.c.b16 %v1263, %v1255
    %v2024 = vpack.c.b16 %v1272, %v1264
    %v2025 = vpack.c.b16 %v1273, %v1265
    %v2026 = vpack.c.b16 %v1274, %v1266
    %v2027 = vpack.c.b16 %v1275, %v1267
    %v2028 = vpack.c.b16 %v1276, %v1268
    %v2029 = vpack.c.b16 %v1277, %v1269
    %v2030 = vpack.c.b16 %v1278, %v1270
    %v2031 = vpack.c.b16 %v1279, %v1271
    %v2032 = vpack.c.b16 %v1288, %v1280
    %v2033 = vpack.c.b16 %v1289, %v1281
    %v2034 = vpack.c.b16 %v1290, %v1282
    %v2035 = vpack.c.b16 %v1291, %v1283
    %v2036 = vpack.c.b16 %v1292, %v1284
    %v2037 = vpack.c.b16 %v1293, %v1285
    %v2038 = vpack.c.b16 %v1294, %v1286
    %v2039 = vpack.c.b16 %v1295, %v1287
    %v2040 = vpack.c.b16 %v1304, %v1296
    %v2041 = vpack.c.b16 %v1305, %v1297
    %v2042 = vpack.c.b16 %v1306, %v1298
    %v2043 = vpack.c.b16 %v1307, %v1299
    %v2044 = vpack.c.b16 %v1308, %v1300
    %v2045 = vpack.c.b16 %v1309, %v1301
    %v2046 = vpack.c.b16 %v1310, %v1302
    %v2047 = vpack.c.b16 %v1311, %v1303
    %v2048 = vpack.c.b16 %v1320, %v1312
    %v2049 = vpack.c.b16 %v1321, %v1313
    %v2050 = vpack.c.b16 %v1322, %v1314
    %v2051 = vpack.c.b16 %v1323, %v1315
    %v2052 = vpack.c.b16 %v1324, %v1316
    %v2053 = vpack.c.b16 %v1325, %v1317
    %v2054 = vpack.c.b16 %v1326, %v1318
    %v2055 = vpack.c.b16 %v1327, %v1319
    %v2056 = vpack.c.b16 %v1336, %v1328
    %v2057 = vpack.c.b16 %v1337, %v1329
    %v2058 = vpack.c.b16 %v1338, %v1330
    %v2059 = vpack.c.b16 %v1339, %v1331
    %v2060 = vpack.c.b16 %v1340, %v1332
    %v2061 = vpack.c.b16 %v1341, %v1333
    %v2062 = vpack.c.b16 %v1342, %v1334
    %v2063 = vpack.c.b16 %v1343, %v1335
    %v2064 = vpack.c.b16 %v1352, %v1344
    %v2065 = vpack.c.b16 %v1353, %v1345
    %v2066 = vpack.c.b16 %v1354, %v1346
    %v2067 = vpack.c.b16 %v1355, %v1347
    %v2068 = vpack.c.b16 %v1356, %v1348
    %v2069 = vpack.c.b16 %v1357, %v1349
    %v2070 = vpack.c.b16 %v1358, %v1350
    %v2071 = vpack.c.b16 %v1359, %v1351
    %v2072 = vpack.c.b16 %v1368, %v1360
    %v2073 = vpack.c.b16 %v1369, %v1361
    %v2074 = vpack.c.b16 %v1370, %v1362
    %v2075 = vpack.c.b16 %v1371, %v1363
    %v2076 = vpack.c.b16 %v1372, %v1364
    %v2077 = vpack.c.b16 %v1373, %v1365
    %v2078 = vpack.c.b16 %v1374, %v1366
    %v2079 = vpack.c.b16 %v1375, %v1367
    %v2080 = vpack.c.b16 %v1384, %v1376
    %v2081 = vpack.c.b16 %v1385, %v1377
    %v2082 = vpack.c.b16 %v1386, %v1378
    %v2083 = vpack.c.b16 %v1387, %v1379
    %v2084 = vpack.c.b16 %v1388, %v1380
    %v2085 = vpack.c.b16 %v1389, %v1381
    %v2086 = vpack.c.b16 %v1390, %v1382
    %v2087 = vpack.c.b16 %v1391, %v1383
    %v2088 = vpack.c.b16 %v1400, %v1392
    %v2089 = vpack.c.b16 %v1401, %v1393
    %v2090 = vpack.c.b16 %v1402, %v1394
    %v2091 = vpack.c.b16 %v1403, %v1395
    %v2092 = vpack.c.b16 %v1404, %v1396
    %v2093 = vpack.c.b16 %v1405, %v1397
    %v2094 = vpack.c.b16 %v1406, %v1398
    %v2095 = vpack.c.b16 %v1407, %v1399
    %v2096 = vpack.c.b16 %v1416, %v1408
    %v2097 = vpack.c.b16 %v1417, %v1409
    %v2098 = vpack.c.b16 %v1418, %v1410
    %v2099 = vpack.c.b16 %v1419, %v1411
    %v2100 = vpack.c.b16 %v1420, %v1412
    %v2101 = vpack.c.b16 %v1421, %v1413
    %v2102 = vpack.c.b16 %v1422, %v1414
    %v2103 = vpack.c.b16 %v1423, %v1415
    %v2104 = vpack.c.b16 %v1432, %v1424
    %v2105 = vpack.c.b16 %v1433, %v1425
    %v2106 = vpack.c.b16 %v1434, %v1426
    %v2107 = vpack.c.b16 %v1435, %v1427
    %v2108 = vpack.c.b16 %v1436, %v1428
    %v2109 = vpack.c.b16 %v1437, %v1429
    %v2110 = vpack.c.b16 %v1438, %v1430
    %v2111 = vpack.c.b16 %v1439, %v1431
    %v2112 = vpack.c.b16 %v1448, %v1440
    %v2113 = vpack.c.b16 %v1449, %v1441
    %v2114 = vpack.c.b16 %v1450, %v1442
    %v2115 = vpack.c.b16 %v1451, %v1443
    %v2116 = vpack.c.b16 %v1452, %v1444
    %v2117 = vpack.c.b16 %v1453, %v1445
    %v2118 = vpack.c.b16 %v1454, %v1446
    %v2119 = vpack.c.b16 %v1455, %v1447
    %v2120 = vpack.c.b16 %v1464, %v1456
    %v2121 = vpack.c.b16 %v1465, %v1457
    %v2122 = vpack.c.b16 %v1466, %v1458
    %v2123 = vpack.c.b16 %v1467, %v1459
    %v2124 = vpack.c.b16 %v1468, %v1460
    %v2125 = vpack.c.b16 %v1469, %v1461
    %v2126 = vpack.c.b16 %v1470, %v1462
    %v2127 = vpack.c.b16 %v1471, %v1463
    %v2128 = vpack.c.b16 %v1480, %v1472
    %v2129 = vpack.c.b16 %v1481, %v1473
    %v2130 = vpack.c.b16 %v1482, %v1474
    %v2131 = vpack.c.b16 %v1483, %v1475
    %v2132 = vpack.c.b16 %v1484, %v1476
    %v2133 = vpack.c.b16 %v1485, %v1477
    %v2134 = vpack.c.b16 %v1486, %v1478
    %v2135 = vpack.c.b16 %v1487, %v1479
    %v2136 = vpack.c.b16 %v1496, %v1488
    %v2137 = vpack.c.b16 %v1497, %v1489
    %v2138 = vpack.c.b16 %v1498, %v1490
    %v2139 = vpack.c.b16 %v1499, %v1491
    %v2140 = vpack.c.b16 %v1500, %v1492
    %v2141 = vpack.c.b16 %v1501, %v1493
    %v2142 = vpack.c.b16 %v1502, %v1494
    %v2143 = vpack.c.b16 %v1503, %v1495
    %v2144 = vpack.c.b16 %v1512, %v1504
    %v2145 = vpack.c.b16 %v1513, %v1505
    %v2146 = vpack.c.b16 %v1514, %v1506
    %v2147 = vpack.c.b16 %v1515, %v1507
    %v2148 = vpack.c.b16 %v1516, %v1508
    %v2149 = vpack.c.b16 %v1517, %v1509
    %v2150 = vpack.c.b16 %v1518, %v1510
    %v2151 = vpack.c.b16 %v1519, %v1511
    %v2152 = vpack.c.b16 %v1528, %v1520
    %v2153 = vpack.c.b16 %v1529, %v1521
    %v2154 = vpack.c.b16 %v1530, %v1522
    %v2155 = vpack.c.b16 %v1531, %v1523
    %v2156 = vpack.c.b16 %v1532, %v1524
    %v2157 = vpack.c.b16 %v1533, %v1525
    %v2158 = vpack.c.b16 %v1534, %v1526
    %v2159 = vpack.c.b16 %v1535, %v1527
    %v2160 = vpack.c.b16 %v1544, %v1536
    %v2161 = vpack.c.b16 %v1545, %v1537
    %v2162 = vpack.c.b16 %v1546, %v1538
    %v2163 = vpack.c.b16 %v1547, %v1539
    %v2164 = vpack.c.b16 %v1548, %v1540
    %v2165 = vpack.c.b16 %v1549, %v1541
    %v2166 = vpack.c.b16 %v1550, %v1542
    %v2167 = vpack.c.b16 %v1551, %v1543
    %v2168 = vpack.c.b16 %v1560, %v1552
    %v2169 = vpack.c.b16 %v1561, %v1553
    %v2170 = vpack.c.b16 %v1562, %v1554
    %v2171 = vpack.c.b16 %v1563, %v1555
    %v2172 = vpack.c.b16 %v1564, %v1556
    %v2173 = vpack.c.b16 %v1565, %v1557
    %v2174 = vpack.c.b16 %v1566, %v1558
    %v2175 = vpack.c.b16 %v1567, %v1559
    %v2176 = vpack.c.b16 %v1576, %v1568
    %v2177 = vpack.c.b16 %v1577, %v1569
    %v2178 = vpack.c.b16 %v1578, %v1570
    %v2179 = vpack.c.b16 %v1579, %v1571
    %v2180 = vpack.c.b16 %v1580, %v1572
    %v2181 = vpack.c.b16 %v1581, %v1573
    %v2182 = vpack.c.b16 %v1582, %v1574
    %v2183 = vpack.c.b16 %v1583, %v1575
    %v2184 = vpack.c.b16 %v1592, %v1584
    %v2185 = vpack.c.b16 %v1593, %v1585
    %v2186 = vpack.c.b16 %v1594, %v1586
    %v2187 = vpack.c.b16 %v1595, %v1587
    %v2188 = vpack.c.b16 %v1596, %v1588
    %v2189 = vpack.c.b16 %v1597, %v1589
    %v2190 = vpack.c.b16 %v1598, %v1590
    %v2191 = vpack.c.b16 %v1599, %v1591
    %v2192 = vpack.c.b16 %v1608, %v1600
    %v2193 = vpack.c.b16 %v1609, %v1601
    %v2194 = vpack.c.b16 %v1610, %v1602
    %v2195 = vpack.c.b16 %v1611, %v1603
    %v2196 = vpack.c.b16 %v1612, %v1604
    %v2197 = vpack.c.b16 %v1613, %v1605
    %v2198 = vpack.c.b16 %v1614, %v1606
    %v2199 = vpack.c.b16 %v1615, %v1607
    %v2200 = vpack.c.b16 %v1624, %v1616
    %v2201 = vpack.c.b16 %v1625, %v1617
    %v2202 = vpack.c.b16 %v1626, %v1618
    %v2203 = vpack.c.b16 %v1627, %v1619
    %v2204 = vpack.c.b16 %v1628, %v1620
    %v2205 = vpack.c.b16 %v1629, %v1621
    %v2206 = vpack.c.b16 %v1630, %v1622
    %v2207 = vpack.c.b16 %v1631, %v1623
    %v2208 = vpack.c.b16 %v1640, %v1632
    %v2209 = vpack.c.b16 %v1641, %v1633
    %v2210 = vpack.c.b16 %v1642, %v1634
    %v2211 = vpack.c.b16 %v1643, %v1635
    %v2212 = vpack.c.b16 %v1644, %v1636
    %v2213 = vpack.c.b16 %v1645, %v1637
    %v2214 = vpack.c.b16 %v1646, %v1638
    %v2215 = vpack.c.b16 %v1647, %v1639
    %v2216 = vpack.c.b16 %v1656, %v1648
    %v2217 = vpack.c.b16 %v1657, %v1649
    %v2218 = vpack.c.b16 %v1658, %v1650
    %v2219 = vpack.c.b16 %v1659, %v1651
    %v2220 = vpack.c.b16 %v1660, %v1652
    %v2221 = vpack.c.b16 %v1661, %v1653
    %v2222 = vpack.c.b16 %v1662, %v1654
    %v2223 = vpack.c.b16 %v1663, %v1655
    %v2224 = vpack.c.b16 %v1672, %v1664
    %v2225 = vpack.c.b16 %v1673, %v1665
    %v2226 = vpack.c.b16 %v1674, %v1666
    %v2227 = vpack.c.b16 %v1675, %v1667
    %v2228 = vpack.c.b16 %v1676, %v1668
    %v2229 = vpack.c.b16 %v1677, %v1669
    %v2230 = vpack.c.b16 %v1678, %v1670
    %v2231 = vpack.c.b16 %v1679, %v1671
    %v2232 = vpack.c.b16 %v1688, %v1680
    %v2233 = vpack.c.b16 %v1689, %v1681
    %v2234 = vpack.c.b16 %v1690, %v1682
    %v2235 = vpack.c.b16 %v1691, %v1683
    %v2236 = vpack.c.b16 %v1692, %v1684
    %v2237 = vpack.c.b16 %v1693, %v1685
    %v2238 = vpack.c.b16 %v1694, %v1686
    %v2239 = vpack.c.b16 %v1695, %v1687
    %v2240 = vpack.c.b16 %v1704, %v1696
    %v2241 = vpack.c.b16 %v1705, %v1697
    %v2242 = vpack.c.b16 %v1706, %v1698
    %v2243 = vpack.c.b16 %v1707, %v1699
    %v2244 = vpack.c.b16 %v1708, %v1700
    %v2245 = vpack.c.b16 %v1709, %v1701
    %v2246 = vpack.c.b16 %v1710, %v1702
    %v2247 = vpack.c.b16 %v1711, %v1703
    %v2248 = vpack.c.b16 %v1720, %v1712
    %v2249 = vpack.c.b16 %v1721, %v1713
    %v2250 = vpack.c.b16 %v1722, %v1714
    %v2251 = vpack.c.b16 %v1723, %v1715
    %v2252 = vpack.c.b16 %v1724, %v1716
    %v2253 = vpack.c.b16 %v1725, %v1717
    %v2254 = vpack.c.b16 %v1726, %v1718
    %v2255 = vpack.c.b16 %v1727, %v1719
    %v2256 = vpack.c.b16 %v1736, %v1728
    %v2257 = vpack.c.b16 %v1737, %v1729
    %v2258 = vpack.c.b16 %v1738, %v1730
    %v2259 = vpack.c.b16 %v1739, %v1731
    %v2260 = vpack.c.b16 %v1740, %v1732
    %v2261 = vpack.c.b16 %v1741, %v1733
    %v2262 = vpack.c.b16 %v1742, %v1734
    %v2263 = vpack.c.b16 %v1743, %v1735
    %v2264 = vpack.c.b16 %v1752, %v1744
    %v2265 = vpack.c.b16 %v1753, %v1745
    %v2266 = vpack.c.b16 %v1754, %v1746
    %v2267 = vpack.c.b16 %v1755, %v1747
    %v2268 = vpack.c.b16 %v1756, %v1748
    %v2269 = vpack.c.b16 %v1757, %v1749
    %v2270 = vpack.c.b16 %v1758, %v1750
    %v2271 = vpack.c.b16 %v1759, %v1751
    %v2272 = vpack.c.b16 %v1768, %v1760
    %v2273 = vpack.c.b16 %v1769, %v1761
    %v2274 = vpack.c.b16 %v1770, %v1762
    %v2275 = vpack.c.b16 %v1771, %v1763
    %v2276 = vpack.c.b16 %v1772, %v1764
    %v2277 = vpack.c.b16 %v1773, %v1765
    %v2278 = vpack.c.b16 %v1774, %v1766
    %v2279 = vpack.c.b16 %v1775, %v1767
    %v2280 = vpack.c.b16 %v1784, %v1776
    %v2281 = vpack.c.b16 %v1785, %v1777
    %v2282 = vpack.c.b16 %v1786, %v1778
    %v2283 = vpack.c.b16 %v1787, %v1779
    %v2284 = vpack.c.b16 %v1788, %v1780
    %v2285 = vpack.c.b16 %v1789, %v1781
    %v2286 = vpack.c.b16 %v1790, %v1782
    %v2287 = vpack.c.b16 %v1791, %v1783
    %v2288 = vpack.c.b16 %v1800, %v1792
    %v2289 = vpack.c.b16 %v1801, %v1793
    %v2290 = vpack.c.b16 %v1802, %v1794
    %v2291 = vpack.c.b16 %v1803, %v1795
    %v2292 = vpack.c.b16 %v1804, %v1796
    %v2293 = vpack.c.b16 %v1805, %v1797
    %v2294 = vpack.c.b16 %v1806, %v1798
    %v2295 = vpack.c.b16 %v1807, %v1799
    %v2296 = vpack.c.b16 %v1816, %v1808
    %v2297 = vpack.c.b16 %v1817, %v1809
    %v2298 = vpack.c.b16 %v1818, %v1810
    %v2299 = vpack.c.b16 %v1819, %v1811
    %v2300 = vpack.c.b16 %v1820, %v1812
    %v2301 = vpack.c.b16 %v1821, %v1813
    %v2302 = vpack.c.b16 %v1822, %v1814
    %v2303 = vpack.c.b16 %v1823, %v1815
    %v2304 = vpack.c.b16 %v1832, %v1824
    %v2305 = vpack.c.b16 %v1833, %v1825
    %v2306 = vpack.c.b16 %v1834, %v1826
    %v2307 = vpack.c.b16 %v1835, %v1827
    %v2308 = vpack.c.b16 %v1836, %v1828
    %v2309 = vpack.c.b16 %v1837, %v1829
    %v2310 = vpack.c.b16 %v1838, %v1830
    %v2311 = vpack.c.b16 %v1839, %v1831
    %v2312 = vpack.c.b16 %v1848, %v1840
    %v2313 = vpack.c.b16 %v1849, %v1841
    %v2314 = vpack.c.b16 %v1850, %v1842
    %v2315 = vpack.c.b16 %v1851, %v1843
    %v2316 = vpack.c.b16 %v1852, %v1844
    %v2317 = vpack.c.b16 %v1853, %v1845
    %v2318 = vpack.c.b16 %v1854, %v1846
    %v2319 = vpack.c.b16 %v1855, %v1847
    %v2320 = vpack.c.b16 %v1864, %v1856
    %v2321 = vpack.c.b16 %v1865, %v1857
    %v2322 = vpack.c.b16 %v1866, %v1858
    %v2323 = vpack.c.b16 %v1867, %v1859
    %v2324 = vpack.c.b16 %v1868, %v1860
    %v2325 = vpack.c.b16 %v1869, %v1861
    %v2326 = vpack.c.b16 %v1870, %v1862
    %v2327 = vpack.c.b16 %v1871, %v1863
    %v2328 = vpack.c.b16 %v1880, %v1872
    %v2329 = vpack.c.b16 %v1881, %v1873
    %v2330 = vpack.c.b16 %v1882, %v1874
    %v2331 = vpack.c.b16 %v1883, %v1875
    %v2332 = vpack.c.b16 %v1884, %v1876
    %v2333 = vpack.c.b16 %v1885, %v1877
    %v2334 = vpack.c.b16 %v1886, %v1878
    %v2335 = vpack.c.b16 %v1887, %v1879
    %v2336 = vpack.c.b16 %v1896, %v1888
    %v2337 = vpack.c.b16 %v1897, %v1889
    %v2338 = vpack.c.b16 %v1898, %v1890
    %v2339 = vpack.c.b16 %v1899, %v1891
    %v2340 = vpack.c.b16 %v1900, %v1892
    %v2341 = vpack.c.b16 %v1901, %v1893
    %v2342 = vpack.c.b16 %v1902, %v1894
    %v2343 = vpack.c.b16 %v1903, %v1895
    %v2344 = vpack.c.b16 %v1912, %v1904
    %v2345 = vpack.c.b16 %v1913, %v1905
    %v2346 = vpack.c.b16 %v1914, %v1906
    %v2347 = vpack.c.b16 %v1915, %v1907
    %v2348 = vpack.c.b16 %v1916, %v1908
    %v2349 = vpack.c.b16 %v1917, %v1909
    %v2350 = vpack.c.b16 %v1918, %v1910
    %v2351 = vpack.c.b16 %v1919, %v1911
    %v2352 = vpack.c.b16 %v1928, %v1920
    %v2353 = vpack.c.b16 %v1929, %v1921
    %v2354 = vpack.c.b16 %v1930, %v1922
    %v2355 = vpack.c.b16 %v1931, %v1923
    %v2356 = vpack.c.b16 %v1932, %v1924
    %v2357 = vpack.c.b16 %v1933, %v1925
    %v2358 = vpack.c.b16 %v1934, %v1926
    %v2359 = vpack.c.b16 %v1935, %v1927
    %v2360 = vpack.c.b16 %v1944, %v1936
    %v2361 = vpack.c.b16 %v1945, %v1937
    %v2362 = vpack.c.b16 %v1946, %v1938
    %v2363 = vpack.c.b16 %v1947, %v1939
    %v2364 = vpack.c.b16 %v1948, %v1940
    %v2365 = vpack.c.b16 %v1949, %v1941
    %v2366 = vpack.c.b16 %v1950, %v1942
    %v2367 = vpack.c.b16 %v1951, %v1943
    %v2368 = vpack.c.b16 %v1960, %v1952
    %v2369 = vpack.c.b16 %v1961, %v1953
    %v2370 = vpack.c.b16 %v1962, %v1954
    %v2371 = vpack.c.b16 %v1963, %v1955
    %v2372 = vpack.c.b16 %v1964, %v1956
    %v2373 = vpack.c.b16 %v1965, %v1957
    %v2374 = vpack.c.b16 %v1966, %v1958
    %v2375 = vpack.c.b16 %v1967, %v1959
    %v2376 = vpack.c.b16 %v1976, %v1968
    %v2377 = vpack.c.b16 %v1977, %v1969
    %v2378 = vpack.c.b16 %v1978, %v1970
    %v2379 = vpack.c.b16 %v1979, %v1971
    %v2380 = vpack.c.b16 %v1980, %v1972
    %v2381 = vpack.c.b16 %v1981, %v1973
    %v2382 = vpack.c.b16 %v1982, %v1974
    %v2383 = vpack.c.b16 %v1983, %v1975
    %v2384 = vpack.c.b16 %v1992, %v1984
    %v2385 = vpack.c.b16 %v1993, %v1985
    %v2386 = vpack.c.b16 %v1994, %v1986
    %v2387 = vpack.c.b16 %v1995, %v1987
    %v2388 = vpack.c.b16 %v1996, %v1988
    %v2389 = vpack.c.b16 %v1997, %v1989
    %v2390 = vpack.c.b16 %v1998, %v1990
    %v2391 = vpack.c.b16 %v1999, %v1991
    %v2785 = vsel %vm648, %v204, 0
    %2787 = vmatprep.subr.bf16.mxu0 %v2001
    %2788 = vmatpush1.bf16.msra.mxu0 %v2000
    %2789 = vmatprep.subr.bf16.mxu0 %v2009
    %2790 = vmatpush1.bf16.msra.mxu0 %v2008
    %2791 = vmatprep.subr.bf16.mxu0 %v2017
    %2792 = vmatpush1.bf16.msra.mxu0 %v2016
    %2793 = vmatprep.subr.bf16.mxu0 %v2025
    %2794 = vmatpush1.bf16.msra.mxu0 %v2024
    %2795 = vmatprep.subr.bf16.mxu0 %v2033
    %2796 = vmatpush1.bf16.msra.mxu0 %v2032
    %2797 = vmatprep.subr.bf16.mxu0 %v2041
    %2798 = vmatpush1.bf16.msra.mxu0 %v2040
    %2799 = vmatprep.subr.bf16.mxu0 %v2049
    %2800 = vmatpush1.bf16.msra.mxu0 %v2048
    %2801 = vmatprep.subr.bf16.mxu0 %v2057
    %2802 = vmatpush1.bf16.msra.mxu0 %v2056
    %2803 = vmatprep.subr.bf16.mxu0 %v2065
    %2804 = vmatpush1.bf16.msra.mxu0 %v2064
    %2805 = vmatprep.subr.bf16.mxu0 %v2073
    %2806 = vmatpush1.bf16.msra.mxu0 %v2072
    %2807 = vmatprep.subr.bf16.mxu0 %v2081
    %2808 = vmatpush1.bf16.msra.mxu0 %v2080
    %2809 = vmatprep.subr.bf16.mxu0 %v2089
    %2810 = vmatpush1.bf16.msra.mxu0 %v2088
    %2811 = vmatprep.subr.bf16.mxu0 %v2097
    %2812 = vmatpush1.bf16.msra.mxu0 %v2096
    %2813 = vmatprep.subr.bf16.mxu0 %v2105
    %2814 = vmatpush1.bf16.msra.mxu0 %v2104
    %2815 = vmatprep.subr.bf16.mxu0 %v2113
    %2816 = vmatpush1.bf16.msra.mxu0 %v2112
    %2817 = vmatprep.subr.bf16.mxu0 %v2121
    %2818 = vmatpush1.bf16.msra.mxu0 %v2120
    %2819 = vmatprep.mubr.bf16.mxu0 %v199
    %2820 = vmatmul.mubr.bf16.gmra.mrb[0].mxu0 %v198
    %v2821 = vpop.f32.mrb[0].mxu0
    %v2822 = vadd.f32 %v687, %v2821
    %v2823 = vpop.f32.mrb[0].mxu0
    %v2824 = vadd.f32 %v689, %v2823
    %v2825 = vpop.f32.mrb[0].mxu0
    %v2826 = vadd.f32 %v691, %v2825
    %v2827 = vpop.f32.mrb[0].mxu0
    %v2828 = vadd.f32 %v693, %v2827
    %2829 = vdwg.mxu0
    %2830 = vmatprep.subr.bf16.mxu0 %v2129
    %2831 = vmatpush1.bf16.msra.mxu0 %v2128
    %2832 = vmatprep.subr.bf16.mxu0 %v2137
    %2833 = vmatpush1.bf16.msra.mxu0 %v2136
    %2834 = vmatprep.subr.bf16.mxu0 %v2145
    %2835 = vmatpush1.bf16.msra.mxu0 %v2144
    %2836 = vmatprep.subr.bf16.mxu0 %v2153
    %2837 = vmatpush1.bf16.msra.mxu0 %v2152
    %2838 = vmatprep.subr.bf16.mxu0 %v2161
    %2839 = vmatpush1.bf16.msra.mxu0 %v2160
    %2840 = vmatprep.subr.bf16.mxu0 %v2169
    %2841 = vmatpush1.bf16.msra.mxu0 %v2168
    %2842 = vmatprep.subr.bf16.mxu0 %v2177
    %2843 = vmatpush1.bf16.msra.mxu0 %v2176
    %2844 = vmatprep.subr.bf16.mxu0 %v2185
    %2845 = vmatpush1.bf16.msra.mxu0 %v2184
    %2846 = vmatprep.subr.bf16.mxu0 %v2193
    %2847 = vmatpush1.bf16.msra.mxu0 %v2192
    %2848 = vmatprep.subr.bf16.mxu0 %v2201
    %2849 = vmatpush1.bf16.msra.mxu0 %v2200
    %2850 = vmatprep.subr.bf16.mxu0 %v2209
    %2851 = vmatpush1.bf16.msra.mxu0 %v2208
    %2852 = vmatprep.subr.bf16.mxu0 %v2217
    %2853 = vmatpush1.bf16.msra.mxu0 %v2216
    %2854 = vmatprep.subr.bf16.mxu0 %v2225
    %2855 = vmatpush1.bf16.msra.mxu0 %v2224
    %2856 = vmatprep.subr.bf16.mxu0 %v2233
    %2857 = vmatpush1.bf16.msra.mxu0 %v2232
    %2858 = vmatprep.subr.bf16.mxu0 %v2241
    %2859 = vmatpush1.bf16.msra.mxu0 %v2240
    %2860 = vmatprep.subr.bf16.mxu0 %v2249
    %2861 = vmatpush1.bf16.msra.mxu0 %v2248
    %2862 = vmatprep.mubr.bf16.mxu0 %v201
    %2863 = vmatmul.mubr.bf16.gmra.mrb[0].mxu0 %v200
    %v2864 = vpop.f32.mrb[0].mxu0
    %v2865 = vadd.f32 %v2822, %v2864
    %v2866 = vpop.f32.mrb[0].mxu0
    %v2867 = vadd.f32 %v2824, %v2866
    %v2868 = vpop.f32.mrb[0].mxu0
    %v2869 = vadd.f32 %v2826, %v2868
    %v2870 = vpop.f32.mrb[0].mxu0
    %v2871 = vadd.f32 %v2828, %v2870
    %2872 = vdwg.mxu0
    %2873 = vmatprep.subr.bf16.mxu0 %v2257
    %2874 = vmatpush1.bf16.msra.mxu0 %v2256
    %2875 = vmatprep.subr.bf16.mxu0 %v2265
    %2876 = vmatpush1.bf16.msra.mxu0 %v2264
    %2877 = vmatprep.subr.bf16.mxu0 %v2273
    %2878 = vmatpush1.bf16.msra.mxu0 %v2272
    %2879 = vmatprep.subr.bf16.mxu0 %v2281
    %2880 = vmatpush1.bf16.msra.mxu0 %v2280
    %2881 = vmatprep.subr.bf16.mxu0 %v2289
    %2882 = vmatpush1.bf16.msra.mxu0 %v2288
    %2883 = vmatprep.subr.bf16.mxu0 %v2297
    %2884 = vmatpush1.bf16.msra.mxu0 %v2296
    %2885 = vmatprep.subr.bf16.mxu0 %v2305
    %2886 = vmatpush1.bf16.msra.mxu0 %v2304
    %2887 = vmatprep.subr.bf16.mxu0 %v2313
    %2888 = vmatpush1.bf16.msra.mxu0 %v2312
    %2889 = vmatprep.subr.bf16.mxu0 %v2321
    %2890 = vmatpush1.bf16.msra.mxu0 %v2320
    %2891 = vmatprep.subr.bf16.mxu0 %v2329
    %2892 = vmatpush1.bf16.msra.mxu0 %v2328
    %2893 = vmatprep.subr.bf16.mxu0 %v2337
    %2894 = vmatpush1.bf16.msra.mxu0 %v2336
    %2895 = vmatprep.subr.bf16.mxu0 %v2345
    %2896 = vmatpush1.bf16.msra.mxu0 %v2344
    %2897 = vmatprep.subr.bf16.mxu0 %v2353
    %2898 = vmatpush1.bf16.msra.mxu0 %v2352
    %2899 = vmatprep.subr.bf16.mxu0 %v2361
    %2900 = vmatpush1.bf16.msra.mxu0 %v2360
    %2901 = vmatprep.subr.bf16.mxu0 %v2369
    %2902 = vmatpush1.bf16.msra.mxu0 %v2368
    %2903 = vmatprep.subr.bf16.mxu0 %v2377
    %2904 = vmatpush1.bf16.msra.mxu0 %v2376
    %2905 = vmatprep.mubr.bf16.mxu0 %v203
    %2906 = vmatmul.mubr.bf16.gmra.mrb[0].mxu0 %v202
    %v2907 = vpop.f32.mrb[0].mxu0
    %v2908 = vadd.f32 %v2865, %v2907
    %v2909 = vpop.f32.mrb[0].mxu0
    %v2910 = vadd.f32 %v2867, %v2909
    %v2911 = vpop.f32.mrb[0].mxu0
    %v2912 = vadd.f32 %v2869, %v2911
    %v2913 = vpop.f32.mrb[0].mxu0
    %v2914 = vadd.f32 %v2871, %v2913
    %2915 = vdwg.mxu0
    %2916 = vmatprep.subr.bf16.mxu0 %v2385
    %2917 = vmatpush1.bf16.msra.mxu0 %v2384
    %2918 = vmatprep.subr.bf16.mxu0 0
    %2919 = vmatpush1.bf16.msra.mxu0 0
    %2920 = vmatprep.subr.bf16.mxu0 0
    %2921 = vmatpush1.bf16.msra.mxu0 0
    %2922 = vmatprep.subr.bf16.mxu0 0
    %2923 = vmatpush1.bf16.msra.mxu0 0
    %2924 = vmatprep.subr.bf16.mxu0 0
    %2925 = vmatpush1.bf16.msra.mxu0 0
    %2926 = vmatprep.subr.bf16.mxu0 0
    %2927 = vmatpush1.bf16.msra.mxu0 0
    %2928 = vmatprep.subr.bf16.mxu0 0
    %2929 = vmatpush1.bf16.msra.mxu0 0
    %2930 = vmatprep.subr.bf16.mxu0 0
    %2931 = vmatpush1.bf16.msra.mxu0 0
    %2932 = vmatprep.subr.bf16.mxu0 0
    %2933 = vmatpush1.bf16.msra.mxu0 0
    %2934 = vmatprep.subr.bf16.mxu0 0
    %2935 = vmatpush1.bf16.msra.mxu0 0
    %2936 = vmatprep.subr.bf16.mxu0 0
    %2937 = vmatpush1.bf16.msra.mxu0 0
    %2938 = vmatprep.subr.bf16.mxu0 0
    %2939 = vmatpush1.bf16.msra.mxu0 0
    %2940 = vmatprep.subr.bf16.mxu0 0
    %2941 = vmatpush1.bf16.msra.mxu0 0
    %2942 = vmatprep.subr.bf16.mxu0 0
    %2943 = vmatpush1.bf16.msra.mxu0 0
    %2944 = vmatprep.subr.bf16.mxu0 0
    %2945 = vmatpush1.bf16.msra.mxu0 0
    %2946 = vmatprep.subr.bf16.mxu0 0
    %2947 = vmatpush1.bf16.msra.mxu0 0
    %2948 = vmatprep.mubr.bf16.mxu0 0
    %2949 = vmatmul.mubr.bf16.gmra.mrb[0].mxu0 %v2785
    %v2950 = vpop.f32.mrb[0].mxu0
    %v2951 = vadd.f32 %v2908, %v2950
    %v2952 = vpop.f32.mrb[0].mxu0
    %v2953 = vadd.f32 %v2910, %v2952
    %v2954 = vpop.f32.mrb[0].mxu0
    %v2955 = vadd.f32 %v2912, %v2954
    %v2956 = vpop.f32.mrb[0].mxu0
    %v2957 = vadd.f32 %v2914, %v2956
    %2958 = vdwg.mxu0
    %2959 = vmatprep.subr.bf16.mxu0 %v2003
    %2960 = vmatpush1.bf16.msra.mxu0 %v2002
    %2961 = vmatprep.subr.bf16.mxu0 %v2011
    %2962 = vmatpush1.bf16.msra.mxu0 %v2010
    %2963 = vmatprep.subr.bf16.mxu0 %v2019
    %2964 = vmatpush1.bf16.msra.mxu0 %v2018
    %2965 = vmatprep.subr.bf16.mxu0 %v2027
    %2966 = vmatpush1.bf16.msra.mxu0 %v2026
    %2967 = vmatprep.subr.bf16.mxu0 %v2035
    %2968 = vmatpush1.bf16.msra.mxu0 %v2034
    %2969 = vmatprep.subr.bf16.mxu0 %v2043
    %2970 = vmatpush1.bf16.msra.mxu0 %v2042
    %2971 = vmatprep.subr.bf16.mxu0 %v2051
    %2972 = vmatpush1.bf16.msra.mxu0 %v2050
    %2973 = vmatprep.subr.bf16.mxu0 %v2059
    %2974 = vmatpush1.bf16.msra.mxu0 %v2058
    %2975 = vmatprep.subr.bf16.mxu0 %v2067
    %2976 = vmatpush1.bf16.msra.mxu0 %v2066
    %2977 = vmatprep.subr.bf16.mxu0 %v2075
    %2978 = vmatpush1.bf16.msra.mxu0 %v2074
    %2979 = vmatprep.subr.bf16.mxu0 %v2083
    %2980 = vmatpush1.bf16.msra.mxu0 %v2082
    %2981 = vmatprep.subr.bf16.mxu0 %v2091
    %2982 = vmatpush1.bf16.msra.mxu0 %v2090
    %2983 = vmatprep.subr.bf16.mxu0 %v2099
    %2984 = vmatpush1.bf16.msra.mxu0 %v2098
    %2985 = vmatprep.subr.bf16.mxu0 %v2107
    %2986 = vmatpush1.bf16.msra.mxu0 %v2106
    %2987 = vmatprep.subr.bf16.mxu0 %v2115
    %2988 = vmatpush1.bf16.msra.mxu0 %v2114
    %2989 = vmatprep.subr.bf16.mxu0 %v2123
    %2990 = vmatpush1.bf16.msra.mxu0 %v2122
    %2991 = vmatprep.mubr.bf16.mxu0 %v199
    %2992 = vmatmul.mubr.bf16.gmra.mrb[0].mxu0 %v198
    %v2993 = vpop.f32.mrb[0].mxu0
    %v2994 = vadd.f32 %v730, %v2993
    %v2995 = vpop.f32.mrb[0].mxu0
    %v2996 = vadd.f32 %v732, %v2995
    %v2997 = vpop.f32.mrb[0].mxu0
    %v2998 = vadd.f32 %v734, %v2997
    %v2999 = vpop.f32.mrb[0].mxu0
    %v3000 = vadd.f32 %v736, %v2999
    %3001 = vdwg.mxu0
    %3002 = vmatprep.subr.bf16.mxu0 %v2131
    %3003 = vmatpush1.bf16.msra.mxu0 %v2130
    %3004 = vmatprep.subr.bf16.mxu0 %v2139
    %3005 = vmatpush1.bf16.msra.mxu0 %v2138
    %3006 = vmatprep.subr.bf16.mxu0 %v2147
    %3007 = vmatpush1.bf16.msra.mxu0 %v2146
    %3008 = vmatprep.subr.bf16.mxu0 %v2155
    %3009 = vmatpush1.bf16.msra.mxu0 %v2154
    %3010 = vmatprep.subr.bf16.mxu0 %v2163
    %3011 = vmatpush1.bf16.msra.mxu0 %v2162
    %3012 = vmatprep.subr.bf16.mxu0 %v2171
    %3013 = vmatpush1.bf16.msra.mxu0 %v2170
    %3014 = vmatprep.subr.bf16.mxu0 %v2179
    %3015 = vmatpush1.bf16.msra.mxu0 %v2178
    %3016 = vmatprep.subr.bf16.mxu0 %v2187
    %3017 = vmatpush1.bf16.msra.mxu0 %v2186
    %3018 = vmatprep.subr.bf16.mxu0 %v2195
    %3019 = vmatpush1.bf16.msra.mxu0 %v2194
    %3020 = vmatprep.subr.bf16.mxu0 %v2203
    %3021 = vmatpush1.bf16.msra.mxu0 %v2202
    %3022 = vmatprep.subr.bf16.mxu0 %v2211
    %3023 = vmatpush1.bf16.msra.mxu0 %v2210
    %3024 = vmatprep.subr.bf16.mxu0 %v2219
    %3025 = vmatpush1.bf16.msra.mxu0 %v2218
    %3026 = vmatprep.subr.bf16.mxu0 %v2227
    %3027 = vmatpush1.bf16.msra.mxu0 %v2226
    %3028 = vmatprep.subr.bf16.mxu0 %v2235
    %3029 = vmatpush1.bf16.msra.mxu0 %v2234
    %3030 = vmatprep.subr.bf16.mxu0 %v2243
    %3031 = vmatpush1.bf16.msra.mxu0 %v2242
    %3032 = vmatprep.subr.bf16.mxu0 %v2251
    %3033 = vmatpush1.bf16.msra.mxu0 %v2250
    %3034 = vmatprep.mubr.bf16.mxu0 %v201
    %3035 = vmatmul.mubr.bf16.gmra.mrb[0].mxu0 %v200
    %v3036 = vpop.f32.mrb[0].mxu0
    %v3037 = vadd.f32 %v2994, %v3036
    %v3038 = vpop.f32.mrb[0].mxu0
    %v3039 = vadd.f32 %v2996, %v3038
    %v3040 = vpop.f32.mrb[0].mxu0
    %v3041 = vadd.f32 %v2998, %v3040
    %v3042 = vpop.f32.mrb[0].mxu0
    %v3043 = vadd.f32 %v3000, %v3042
    %3044 = vdwg.mxu0
    %3045 = vmatprep.subr.bf16.mxu0 %v2259
    %3046 = vmatpush1.bf16.msra.mxu0 %v2258
    %3047 = vmatprep.subr.bf16.mxu0 %v2267
    %3048 = vmatpush1.bf16.msra.mxu0 %v2266
    %3049 = vmatprep.subr.bf16.mxu0 %v2275
    %3050 = vmatpush1.bf16.msra.mxu0 %v2274
    %3051 = vmatprep.subr.bf16.mxu0 %v2283
    %3052 = vmatpush1.bf16.msra.mxu0 %v2282
    %3053 = vmatprep.subr.bf16.mxu0 %v2291
    %3054 = vmatpush1.bf16.msra.mxu0 %v2290
    %3055 = vmatprep.subr.bf16.mxu0 %v2299
    %3056 = vmatpush1.bf16.msra.mxu0 %v2298
    %3057 = vmatprep.subr.bf16.mxu0 %v2307
    %3058 = vmatpush1.bf16.msra.mxu0 %v2306
    %3059 = vmatprep.subr.bf16.mxu0 %v2315
    %3060 = vmatpush1.bf16.msra.mxu0 %v2314
    %3061 = vmatprep.subr.bf16.mxu0 %v2323
    %3062 = vmatpush1.bf16.msra.mxu0 %v2322
    %3063 = vmatprep.subr.bf16.mxu0 %v2331
    %3064 = vmatpush1.bf16.msra.mxu0 %v2330
    %3065 = vmatprep.subr.bf16.mxu0 %v2339
    %3066 = vmatpush1.bf16.msra.mxu0 %v2338
    %3067 = vmatprep.subr.bf16.mxu0 %v2347
    %3068 = vmatpush1.bf16.msra.mxu0 %v2346
    %3069 = vmatprep.subr.bf16.mxu0 %v2355
    %3070 = vmatpush1.bf16.msra.mxu0 %v2354
    %3071 = vmatprep.subr.bf16.mxu0 %v2363
    %3072 = vmatpush1.bf16.msra.mxu0 %v2362
    %3073 = vmatprep.subr.bf16.mxu0 %v2371
    %3074 = vmatpush1.bf16.msra.mxu0 %v2370
    %3075 = vmatprep.subr.bf16.mxu0 %v2379
    %3076 = vmatpush1.bf16.msra.mxu0 %v2378
    %3077 = vmatprep.mubr.bf16.mxu0 %v203
    %3078 = vmatmul.mubr.bf16.gmra.mrb[0].mxu0 %v202
    %v3079 = vpop.f32.mrb[0].mxu0
    %v3080 = vadd.f32 %v3037, %v3079
    %v3081 = vpop.f32.mrb[0].mxu0
    %v3082 = vadd.f32 %v3039, %v3081
    %v3083 = vpop.f32.mrb[0].mxu0
    %v3084 = vadd.f32 %v3041, %v3083
    %v3085 = vpop.f32.mrb[0].mxu0
    %v3086 = vadd.f32 %v3043, %v3085
    %3087 = vdwg.mxu0
    %3088 = vmatprep.subr.bf16.mxu0 %v2387
    %3089 = vmatpush1.bf16.msra.mxu0 %v2386
    %3090 = vmatprep.subr.bf16.mxu0 0
    %3091 = vmatpush1.bf16.msra.mxu0 0
    %3092 = vmatprep.subr.bf16.mxu0 0
    %3093 = vmatpush1.bf16.msra.mxu0 0
    %3094 = vmatprep.subr.bf16.mxu0 0
    %3095 = vmatpush1.bf16.msra.mxu0 0
    %3096 = vmatprep.subr.bf16.mxu0 0
    %3097 = vmatpush1.bf16.msra.mxu0 0
    %3098 = vmatprep.subr.bf16.mxu0 0
    %3099 = vmatpush1.bf16.msra.mxu0 0
    %3100 = vmatprep.subr.bf16.mxu0 0
    %3101 = vmatpush1.bf16.msra.mxu0 0
    %3102 = vmatprep.subr.bf16.mxu0 0
    %3103 = vmatpush1.bf16.msra.mxu0 0
    %3104 = vmatprep.subr.bf16.mxu0 0
    %3105 = vmatpush1.bf16.msra.mxu0 0
    %3106 = vmatprep.subr.bf16.mxu0 0
    %3107 = vmatpush1.bf16.msra.mxu0 0
    %3108 = vmatprep.subr.bf16.mxu0 0
    %3109 = vmatpush1.bf16.msra.mxu0 0
    %3110 = vmatprep.subr.bf16.mxu0 0
    %3111 = vmatpush1.bf16.msra.mxu0 0
    %3112 = vmatprep.subr.bf16.mxu0 0
    %3113 = vmatpush1.bf16.msra.mxu0 0
    %3114 = vmatprep.subr.bf16.mxu0 0
    %3115 = vmatpush1.bf16.msra.mxu0 0
    %3116 = vmatprep.subr.bf16.mxu0 0
    %3117 = vmatpush1.bf16.msra.mxu0 0
    %3118 = vmatprep.subr.bf16.mxu0 0
    %3119 = vmatpush1.bf16.msra.mxu0 0
    %3120 = vmatprep.mubr.bf16.mxu0 0
    %3121 = vmatmul.mubr.bf16.gmra.mrb[0].mxu0 %v2785
    %v3122 = vpop.f32.mrb[0].mxu0
    %v3123 = vadd.f32 %v3080, %v3122
    %v3124 = vpop.f32.mrb[0].mxu0
    %v3125 = vadd.f32 %v3082, %v3124
    %v3126 = vpop.f32.mrb[0].mxu0
    %v3127 = vadd.f32 %v3084, %v3126
    %v3128 = vpop.f32.mrb[0].mxu0
    %v3129 = vadd.f32 %v3086, %v3128
    %3130 = vdwg.mxu0
    %3131 = vmatprep.subr.bf16.mxu0 %v2005
    %3132 = vmatpush1.bf16.msra.mxu0 %v2004
    %3133 = vmatprep.subr.bf16.mxu0 %v2013
    %3134 = vmatpush1.bf16.msra.mxu0 %v2012
    %3135 = vmatprep.subr.bf16.mxu0 %v2021
    %3136 = vmatpush1.bf16.msra.mxu0 %v2020
    %3137 = vmatprep.subr.bf16.mxu0 %v2029
    %3138 = vmatpush1.bf16.msra.mxu0 %v2028
    %3139 = vmatprep.subr.bf16.mxu0 %v2037
    %3140 = vmatpush1.bf16.msra.mxu0 %v2036
    %3141 = vmatprep.subr.bf16.mxu0 %v2045
    %3142 = vmatpush1.bf16.msra.mxu0 %v2044
    %3143 = vmatprep.subr.bf16.mxu0 %v2053
    %3144 = vmatpush1.bf16.msra.mxu0 %v2052
    %3145 = vmatprep.subr.bf16.mxu0 %v2061
    %3146 = vmatpush1.bf16.msra.mxu0 %v2060
    %3147 = vmatprep.subr.bf16.mxu0 %v2069
    %3148 = vmatpush1.bf16.msra.mxu0 %v2068
    %3149 = vmatprep.subr.bf16.mxu0 %v2077
    %3150 = vmatpush1.bf16.msra.mxu0 %v2076
    %3151 = vmatprep.subr.bf16.mxu0 %v2085
    %3152 = vmatpush1.bf16.msra.mxu0 %v2084
    %3153 = vmatprep.subr.bf16.mxu0 %v2093
    %3154 = vmatpush1.bf16.msra.mxu0 %v2092
    %3155 = vmatprep.subr.bf16.mxu0 %v2101
    %3156 = vmatpush1.bf16.msra.mxu0 %v2100
    %3157 = vmatprep.subr.bf16.mxu0 %v2109
    %3158 = vmatpush1.bf16.msra.mxu0 %v2108
    %3159 = vmatprep.subr.bf16.mxu0 %v2117
    %3160 = vmatpush1.bf16.msra.mxu0 %v2116
    %3161 = vmatprep.subr.bf16.mxu0 %v2125
    %3162 = vmatpush1.bf16.msra.mxu0 %v2124
    %3163 = vmatprep.mubr.bf16.mxu0 %v199
    %3164 = vmatmul.mubr.bf16.gmra.mrb[0].mxu0 %v198
    %v3165 = vpop.f32.mrb[0].mxu0
    %v3166 = vadd.f32 %v773, %v3165
    %v3167 = vpop.f32.mrb[0].mxu0
    %v3168 = vadd.f32 %v775, %v3167
    %v3169 = vpop.f32.mrb[0].mxu0
    %v3170 = vadd.f32 %v777, %v3169
    %v3171 = vpop.f32.mrb[0].mxu0
    %v3172 = vadd.f32 %v779, %v3171
    %3173 = vdwg.mxu0
    %3174 = vmatprep.subr.bf16.mxu0 %v2133
    %3175 = vmatpush1.bf16.msra.mxu0 %v2132
    %3176 = vmatprep.subr.bf16.mxu0 %v2141
    %3177 = vmatpush1.bf16.msra.mxu0 %v2140
    %3178 = vmatprep.subr.bf16.mxu0 %v2149
    %3179 = vmatpush1.bf16.msra.mxu0 %v2148
    %3180 = vmatprep.subr.bf16.mxu0 %v2157
    %3181 = vmatpush1.bf16.msra.mxu0 %v2156
    %3182 = vmatprep.subr.bf16.mxu0 %v2165
    %3183 = vmatpush1.bf16.msra.mxu0 %v2164
    %3184 = vmatprep.subr.bf16.mxu0 %v2173
    %3185 = vmatpush1.bf16.msra.mxu0 %v2172
    %3186 = vmatprep.subr.bf16.mxu0 %v2181
    %3187 = vmatpush1.bf16.msra.mxu0 %v2180
    %3188 = vmatprep.subr.bf16.mxu0 %v2189
    %3189 = vmatpush1.bf16.msra.mxu0 %v2188
    %3190 = vmatprep.subr.bf16.mxu0 %v2197
    %3191 = vmatpush1.bf16.msra.mxu0 %v2196
    %3192 = vmatprep.subr.bf16.mxu0 %v2205
    %3193 = vmatpush1.bf16.msra.mxu0 %v2204
    %3194 = vmatprep.subr.bf16.mxu0 %v2213
    %3195 = vmatpush1.bf16.msra.mxu0 %v2212
    %3196 = vmatprep.subr.bf16.mxu0 %v2221
    %3197 = vmatpush1.bf16.msra.mxu0 %v2220
    %3198 = vmatprep.subr.bf16.mxu0 %v2229
    %3199 = vmatpush1.bf16.msra.mxu0 %v2228
    %3200 = vmatprep.subr.bf16.mxu0 %v2237
    %3201 = vmatpush1.bf16.msra.mxu0 %v2236
    %3202 = vmatprep.subr.bf16.mxu0 %v2245
    %3203 = vmatpush1.bf16.msra.mxu0 %v2244
    %3204 = vmatprep.subr.bf16.mxu0 %v2253
    %3205 = vmatpush1.bf16.msra.mxu0 %v2252
    %3206 = vmatprep.mubr.bf16.mxu0 %v201
    %3207 = vmatmul.mubr.bf16.gmra.mrb[0].mxu0 %v200
    %v3208 = vpop.f32.mrb[0].mxu0
    %v3209 = vadd.f32 %v3166, %v3208
    %v3210 = vpop.f32.mrb[0].mxu0
    %v3211 = vadd.f32 %v3168, %v3210
    %v3212 = vpop.f32.mrb[0].mxu0
    %v3213 = vadd.f32 %v3170, %v3212
    %v3214 = vpop.f32.mrb[0].mxu0
    %v3215 = vadd.f32 %v3172, %v3214
    %3216 = vdwg.mxu0
    %3217 = vmatprep.subr.bf16.mxu0 %v2261
    %3218 = vmatpush1.bf16.msra.mxu0 %v2260
    %3219 = vmatprep.subr.bf16.mxu0 %v2269
    %3220 = vmatpush1.bf16.msra.mxu0 %v2268
    %3221 = vmatprep.subr.bf16.mxu0 %v2277
    %3222 = vmatpush1.bf16.msra.mxu0 %v2276
    %3223 = vmatprep.subr.bf16.mxu0 %v2285
    %3224 = vmatpush1.bf16.msra.mxu0 %v2284
    %3225 = vmatprep.subr.bf16.mxu0 %v2293
    %3226 = vmatpush1.bf16.msra.mxu0 %v2292
    %3227 = vmatprep.subr.bf16.mxu0 %v2301
    %3228 = vmatpush1.bf16.msra.mxu0 %v2300
    %3229 = vmatprep.subr.bf16.mxu0 %v2309
    %3230 = vmatpush1.bf16.msra.mxu0 %v2308
    %3231 = vmatprep.subr.bf16.mxu0 %v2317
    %3232 = vmatpush1.bf16.msra.mxu0 %v2316
    %3233 = vmatprep.subr.bf16.mxu0 %v2325
    %3234 = vmatpush1.bf16.msra.mxu0 %v2324
    %3235 = vmatprep.subr.bf16.mxu0 %v2333
    %3236 = vmatpush1.bf16.msra.mxu0 %v2332
    %3237 = vmatprep.subr.bf16.mxu0 %v2341
    %3238 = vmatpush1.bf16.msra.mxu0 %v2340
    %3239 = vmatprep.subr.bf16.mxu0 %v2349
    %3240 = vmatpush1.bf16.msra.mxu0 %v2348
    %3241 = vmatprep.subr.bf16.mxu0 %v2357
    %3242 = vmatpush1.bf16.msra.mxu0 %v2356
    %3243 = vmatprep.subr.bf16.mxu0 %v2365
    %3244 = vmatpush1.bf16.msra.mxu0 %v2364
    %3245 = vmatprep.subr.bf16.mxu0 %v2373
    %3246 = vmatpush1.bf16.msra.mxu0 %v2372
    %3247 = vmatprep.subr.bf16.mxu0 %v2381
    %3248 = vmatpush1.bf16.msra.mxu0 %v2380
    %3249 = vmatprep.mubr.bf16.mxu0 %v203
    %3250 = vmatmul.mubr.bf16.gmra.mrb[0].mxu0 %v202
    %v3251 = vpop.f32.mrb[0].mxu0
    %v3252 = vadd.f32 %v3209, %v3251
    %v3253 = vpop.f32.mrb[0].mxu0
    %v3254 = vadd.f32 %v3211, %v3253
    %v3255 = vpop.f32.mrb[0].mxu0
    %v3256 = vadd.f32 %v3213, %v3255
    %v3257 = vpop.f32.mrb[0].mxu0
    %v3258 = vadd.f32 %v3215, %v3257
    %3259 = vdwg.mxu0
    %3260 = vmatprep.subr.bf16.mxu0 %v2389
    %3261 = vmatpush1.bf16.msra.mxu0 %v2388
    %3262 = vmatprep.subr.bf16.mxu0 0
    %3263 = vmatpush1.bf16.msra.mxu0 0
    %3264 = vmatprep.subr.bf16.mxu0 0
    %3265 = vmatpush1.bf16.msra.mxu0 0
    %3266 = vmatprep.subr.bf16.mxu0 0
    %3267 = vmatpush1.bf16.msra.mxu0 0
    %3268 = vmatprep.subr.bf16.mxu0 0
    %3269 = vmatpush1.bf16.msra.mxu0 0
    %3270 = vmatprep.subr.bf16.mxu0 0
    %3271 = vmatpush1.bf16.msra.mxu0 0
    %3272 = vmatprep.subr.bf16.mxu0 0
    %3273 = vmatpush1.bf16.msra.mxu0 0
    %3274 = vmatprep.subr.bf16.mxu0 0
    %3275 = vmatpush1.bf16.msra.mxu0 0
    %3276 = vmatprep.subr.bf16.mxu0 0
    %3277 = vmatpush1.bf16.msra.mxu0 0
    %3278 = vmatprep.subr.bf16.mxu0 0
    %3279 = vmatpush1.bf16.msra.mxu0 0
    %3280 = vmatprep.subr.bf16.mxu0 0
    %3281 = vmatpush1.bf16.msra.mxu0 0
    %3282 = vmatprep.subr.bf16.mxu0 0
    %3283 = vmatpush1.bf16.msra.mxu0 0
    %3284 = vmatprep.subr.bf16.mxu0 0
    %3285 = vmatpush1.bf16.msra.mxu0 0
    %3286 = vmatprep.subr.bf16.mxu0 0
    %3287 = vmatpush1.bf16.msra.mxu0 0
    %3288 = vmatprep.subr.bf16.mxu0 0
    %3289 = vmatpush1.bf16.msra.mxu0 0
    %3290 = vmatprep.subr.bf16.mxu0 0
    %3291 = vmatpush1.bf16.msra.mxu0 0
    %3292 = vmatprep.mubr.bf16.mxu0 0
    %3293 = vmatmul.mubr.bf16.gmra.mrb[0].mxu0 %v2785
    %v3294 = vpop.f32.mrb[0].mxu0
    %v3295 = vadd.f32 %v3252, %v3294
    %v3296 = vpop.f32.mrb[0].mxu0
    %v3297 = vadd.f32 %v3254, %v3296
    %v3298 = vpop.f32.mrb[0].mxu0
    %v3299 = vadd.f32 %v3256, %v3298
    %v3300 = vpop.f32.mrb[0].mxu0
    %v3301 = vadd.f32 %v3258, %v3300
    %3302 = vdwg.mxu0
    %3303 = vmatprep.subr.bf16.mxu0 %v2007
    %3304 = vmatpush1.bf16.msra.mxu0 %v2006
    %3305 = vmatprep.subr.bf16.mxu0 %v2015
    %3306 = vmatpush1.bf16.msra.mxu0 %v2014
    %3307 = vmatprep.subr.bf16.mxu0 %v2023
    %3308 = vmatpush1.bf16.msra.mxu0 %v2022
    %3309 = vmatprep.subr.bf16.mxu0 %v2031
    %3310 = vmatpush1.bf16.msra.mxu0 %v2030
    %3311 = vmatprep.subr.bf16.mxu0 %v2039
    %3312 = vmatpush1.bf16.msra.mxu0 %v2038
    %3313 = vmatprep.subr.bf16.mxu0 %v2047
    %3314 = vmatpush1.bf16.msra.mxu0 %v2046
    %3315 = vmatprep.subr.bf16.mxu0 %v2055
    %3316 = vmatpush1.bf16.msra.mxu0 %v2054
    %3317 = vmatprep.subr.bf16.mxu0 %v2063
    %3318 = vmatpush1.bf16.msra.mxu0 %v2062
    %3319 = vmatprep.subr.bf16.mxu0 %v2071
    %3320 = vmatpush1.bf16.msra.mxu0 %v2070
    %3321 = vmatprep.subr.bf16.mxu0 %v2079
    %3322 = vmatpush1.bf16.msra.mxu0 %v2078
    %3323 = vmatprep.subr.bf16.mxu0 %v2087
    %3324 = vmatpush1.bf16.msra.mxu0 %v2086
    %3325 = vmatprep.subr.bf16.mxu0 %v2095
    %3326 = vmatpush1.bf16.msra.mxu0 %v2094
    %3327 = vmatprep.subr.bf16.mxu0 %v2103
    %3328 = vmatpush1.bf16.msra.mxu0 %v2102
    %3329 = vmatprep.subr.bf16.mxu0 %v2111
    %3330 = vmatpush1.bf16.msra.mxu0 %v2110
    %3331 = vmatprep.subr.bf16.mxu0 %v2119
    %3332 = vmatpush1.bf16.msra.mxu0 %v2118
    %3333 = vmatprep.subr.bf16.mxu0 %v2127
    %3334 = vmatpush1.bf16.msra.mxu0 %v2126
    %3335 = vmatprep.mubr.bf16.mxu0 %v199
    %3336 = vmatmul.mubr.bf16.gmra.mrb[0].mxu0 %v198
    %v3337 = vpop.f32.mrb[0].mxu0
    %v3338 = vadd.f32 %v816, %v3337
    %v3339 = vpop.f32.mrb[0].mxu0
    %v3340 = vadd.f32 %v818, %v3339
    %v3341 = vpop.f32.mrb[0].mxu0
    %v3342 = vadd.f32 %v820, %v3341
    %v3343 = vpop.f32.mrb[0].mxu0
    %v3344 = vadd.f32 %v822, %v3343
    %3345 = vdwg.mxu0
    %3346 = vmatprep.subr.bf16.mxu0 %v2135
    %3347 = vmatpush1.bf16.msra.mxu0 %v2134
    %3348 = vmatprep.subr.bf16.mxu0 %v2143
    %3349 = vmatpush1.bf16.msra.mxu0 %v2142
    %3350 = vmatprep.subr.bf16.mxu0 %v2151
    %3351 = vmatpush1.bf16.msra.mxu0 %v2150
    %3352 = vmatprep.subr.bf16.mxu0 %v2159
    %3353 = vmatpush1.bf16.msra.mxu0 %v2158
    %3354 = vmatprep.subr.bf16.mxu0 %v2167
    %3355 = vmatpush1.bf16.msra.mxu0 %v2166
    %3356 = vmatprep.subr.bf16.mxu0 %v2175
    %3357 = vmatpush1.bf16.msra.mxu0 %v2174
    %3358 = vmatprep.subr.bf16.mxu0 %v2183
    %3359 = vmatpush1.bf16.msra.mxu0 %v2182
    %3360 = vmatprep.subr.bf16.mxu0 %v2191
    %3361 = vmatpush1.bf16.msra.mxu0 %v2190
    %3362 = vmatprep.subr.bf16.mxu0 %v2199
    %3363 = vmatpush1.bf16.msra.mxu0 %v2198
    %3364 = vmatprep.subr.bf16.mxu0 %v2207
    %3365 = vmatpush1.bf16.msra.mxu0 %v2206
    %3366 = vmatprep.subr.bf16.mxu0 %v2215
    %3367 = vmatpush1.bf16.msra.mxu0 %v2214
    %3368 = vmatprep.subr.bf16.mxu0 %v2223
    %3369 = vmatpush1.bf16.msra.mxu0 %v2222
    %3370 = vmatprep.subr.bf16.mxu0 %v2231
    %3371 = vmatpush1.bf16.msra.mxu0 %v2230
    %3372 = vmatprep.subr.bf16.mxu0 %v2239
    %3373 = vmatpush1.bf16.msra.mxu0 %v2238
    %3374 = vmatprep.subr.bf16.mxu0 %v2247
    %3375 = vmatpush1.bf16.msra.mxu0 %v2246
    %3376 = vmatprep.subr.bf16.mxu0 %v2255
    %3377 = vmatpush1.bf16.msra.mxu0 %v2254
    %3378 = vmatprep.mubr.bf16.mxu0 %v201
    %3379 = vmatmul.mubr.bf16.gmra.mrb[0].mxu0 %v200
    %v3380 = vpop.f32.mrb[0].mxu0
    %v3381 = vadd.f32 %v3338, %v3380
    %v3382 = vpop.f32.mrb[0].mxu0
    %v3383 = vadd.f32 %v3340, %v3382
    %v3384 = vpop.f32.mrb[0].mxu0
    %v3385 = vadd.f32 %v3342, %v3384
    %v3386 = vpop.f32.mrb[0].mxu0
    %v3387 = vadd.f32 %v3344, %v3386
    %3388 = vdwg.mxu0
    %3389 = vmatprep.subr.bf16.mxu0 %v2263
    %3390 = vmatpush1.bf16.msra.mxu0 %v2262
    %3391 = vmatprep.subr.bf16.mxu0 %v2271
    %3392 = vmatpush1.bf16.msra.mxu0 %v2270
    %3393 = vmatprep.subr.bf16.mxu0 %v2279
    %3394 = vmatpush1.bf16.msra.mxu0 %v2278
    %3395 = vmatprep.subr.bf16.mxu0 %v2287
    %3396 = vmatpush1.bf16.msra.mxu0 %v2286
    %3397 = vmatprep.subr.bf16.mxu0 %v2295
    %3398 = vmatpush1.bf16.msra.mxu0 %v2294
    %3399 = vmatprep.subr.bf16.mxu0 %v2303
    %3400 = vmatpush1.bf16.msra.mxu0 %v2302
    %3401 = vmatprep.subr.bf16.mxu0 %v2311
    %3402 = vmatpush1.bf16.msra.mxu0 %v2310
    %3403 = vmatprep.subr.bf16.mxu0 %v2319
    %3404 = vmatpush1.bf16.msra.mxu0 %v2318
    %3405 = vmatprep.subr.bf16.mxu0 %v2327
    %3406 = vmatpush1.bf16.msra.mxu0 %v2326
    %3407 = vmatprep.subr.bf16.mxu0 %v2335
    %3408 = vmatpush1.bf16.msra.mxu0 %v2334
    %3409 = vmatprep.subr.bf16.mxu0 %v2343
    %3410 = vmatpush1.bf16.msra.mxu0 %v2342
    %3411 = vmatprep.subr.bf16.mxu0 %v2351
    %3412 = vmatpush1.bf16.msra.mxu0 %v2350
    %3413 = vmatprep.subr.bf16.mxu0 %v2359
    %3414 = vmatpush1.bf16.msra.mxu0 %v2358
    %3415 = vmatprep.subr.bf16.mxu0 %v2367
    %3416 = vmatpush1.bf16.msra.mxu0 %v2366
    %3417 = vmatprep.subr.bf16.mxu0 %v2375
    %3418 = vmatpush1.bf16.msra.mxu0 %v2374
    %3419 = vmatprep.subr.bf16.mxu0 %v2383
    %3420 = vmatpush1.bf16.msra.mxu0 %v2382
    %3421 = vmatprep.mubr.bf16.mxu0 %v203
    %3422 = vmatmul.mubr.bf16.gmra.mrb[0].mxu0 %v202
    %v3423 = vpop.f32.mrb[0].mxu0
    %v3424 = vadd.f32 %v3381, %v3423
    %v3425 = vpop.f32.mrb[0].mxu0
    %v3426 = vadd.f32 %v3383, %v3425
    %v3427 = vpop.f32.mrb[0].mxu0
    %v3428 = vadd.f32 %v3385, %v3427
    %v3429 = vpop.f32.mrb[0].mxu0
    %v3430 = vadd.f32 %v3387, %v3429
    %3431 = vdwg.mxu0
    %3432 = vmatprep.subr.bf16.mxu0 %v2391
    %3433 = vmatpush1.bf16.msra.mxu0 %v2390
    %3434 = vmatprep.subr.bf16.mxu0 0
    %3435 = vmatpush1.bf16.msra.mxu0 0
    %3436 = vmatprep.subr.bf16.mxu0 0
    %3437 = vmatpush1.bf16.msra.mxu0 0
    %3438 = vmatprep.subr.bf16.mxu0 0
    %3439 = vmatpush1.bf16.msra.mxu0 0
    %3440 = vmatprep.subr.bf16.mxu0 0
    %3441 = vmatpush1.bf16.msra.mxu0 0
    %3442 = vmatprep.subr.bf16.mxu0 0
    %3443 = vmatpush1.bf16.msra.mxu0 0
    %3444 = vmatprep.subr.bf16.mxu0 0
    %3445 = vmatpush1.bf16.msra.mxu0 0
    %3446 = vmatprep.subr.bf16.mxu0 0
    %3447 = vmatpush1.bf16.msra.mxu0 0
    %3448 = vmatprep.subr.bf16.mxu0 0
    %3449 = vmatpush1.bf16.msra.mxu0 0
    %3450 = vmatprep.subr.bf16.mxu0 0
    %3451 = vmatpush1.bf16.msra.mxu0 0
    %3452 = vmatprep.subr.bf16.mxu0 0
    %3453 = vmatpush1.bf16.msra.mxu0 0
    %3454 = vmatprep.subr.bf16.mxu0 0
    %3455 = vmatpush1.bf16.msra.mxu0 0
    %3456 = vmatprep.subr.bf16.mxu0 0
    %3457 = vmatpush1.bf16.msra.mxu0 0
    %3458 = vmatprep.subr.bf16.mxu0 0
    %3459 = vmatpush1.bf16.msra.mxu0 0
    %3460 = vmatprep.subr.bf16.mxu0 0
    %3461 = vmatpush1.bf16.msra.mxu0 0
    %3462 = vmatprep.subr.bf16.mxu0 0
    %3463 = vmatpush1.bf16.msra.mxu0 0
    %3464 = vmatprep.mubr.bf16.mxu0 0
    %3465 = vmatmul.mubr.bf16.gmra.mrb[0].mxu0 %v2785
    %v3466 = vpop.f32.mrb[0].mxu0
    %v3467 = vadd.f32 %v3424, %v3466
    %v3468 = vpop.f32.mrb[0].mxu0
    %v3469 = vadd.f32 %v3426, %v3468
    %v3470 = vpop.f32.mrb[0].mxu0
    %v3471 = vadd.f32 %v3428, %v3470
    %v3472 = vpop.f32.mrb[0].mxu0
    %v3473 = vadd.f32 %v3430, %v3472
    %3474 = vdwg.mxu0
    %v3475 = vld [vmem:[#allocation6] sm:$0xff]
    %v3477 = vlaneseq
    %v3478 = vshrl.u32 %v3477, 7
    %v3479 = vsub.s32 0, %v3478
    %v3480 = vrot.slane %v3475, %v3479
    %v3481 = vlaneseq
    %v3482 = vshrl.u32 %v3481, 7
    %v3483 = vsub.s32 1, %v3482
    %v3484 = vrot.slane %v3475, %v3483
    %v3485 = vlaneseq
    %v3486 = vshrl.u32 %v3485, 7
    %v3487 = vsub.s32 2, %v3486
    %v3488 = vrot.slane %v3475, %v3487
    %v3489 = vlaneseq
    %v3490 = vshrl.u32 %v3489, 7
    %v3491 = vsub.s32 3, %v3490
    %v3492 = vrot.slane %v3475, %v3491
    %v3493 = vlaneseq
    %v3494 = vshrl.u32 %v3493, 7
    %v3495 = vsub.s32 4, %v3494
    %v3496 = vrot.slane %v3475, %v3495
    %v3497 = vlaneseq
    %v3498 = vshrl.u32 %v3497, 7
    %v3499 = vsub.s32 5, %v3498
    %v3500 = vrot.slane %v3475, %v3499
    %v3501 = vlaneseq
    %v3502 = vshrl.u32 %v3501, 7
    %v3503 = vsub.s32 6, %v3502
    %v3504 = vrot.slane %v3475, %v3503
    %v3505 = vlaneseq
    %v3506 = vshrl.u32 %v3505, 7
    %v3507 = vsub.s32 7, %v3506
    %v3508 = vrot.slane %v3475, %v3507
    %v3517 = vadd.f32 %v2951, %v3480
    %v3518 = vadd.f32 %v2953, %v3484
    %v3519 = vadd.f32 %v3123, %v3488
    %v3520 = vadd.f32 %v3125, %v3492
    %v3521 = vadd.f32 %v3295, %v3496
    %v3522 = vadd.f32 %v3297, %v3500
    %v3523 = vadd.f32 %v3467, %v3504
    %v3524 = vadd.f32 %v3469, %v3508
    %v3525 = vadd.f32 %v2955, %v3480
    %v3526 = vadd.f32 %v2957, %v3484
    %v3527 = vadd.f32 %v3127, %v3488
    %v3528 = vadd.f32 %v3129, %v3492
    %v3529 = vadd.f32 %v3299, %v3496
    %v3530 = vadd.f32 %v3301, %v3500
    %v3531 = vadd.f32 %v3471, %v3504
    %v3532 = vadd.f32 %v3473, %v3508
    %v3533 = vmul.f32 %v3517, 0.2
    %v3534 = vmul.f32 %v3518, 0.2
    %v3535 = vmul.f32 %v3519, 0.2
    %v3536 = vmul.f32 %v3520, 0.2
    %v3537 = vmul.f32 %v3521, 0.2
    %v3538 = vmul.f32 %v3522, 0.2
    %v3539 = vmul.f32 %v3523, 0.2
    %v3540 = vmul.f32 %v3524, 0.2
    %v3541 = vmul.f32 %v3525, 0.2
    %v3542 = vmul.f32 %v3526, 0.2
    %v3543 = vmul.f32 %v3527, 0.2
    %v3544 = vmul.f32 %v3528, 0.2
    %v3545 = vmul.f32 %v3529, 0.2
    %v3546 = vmul.f32 %v3530, 0.2
    %v3547 = vmul.f32 %v3531, 0.2
    %v3548 = vmul.f32 %v3532, 0.2
    %v3549 = vmax.f32 %v3517, %v3533
    %v3550 = vmax.f32 %v3518, %v3534
    %v3551 = vmax.f32 %v3519, %v3535
    %v3552 = vmax.f32 %v3520, %v3536
    %v3553 = vmax.f32 %v3521, %v3537
    %v3554 = vmax.f32 %v3522, %v3538
    %v3555 = vmax.f32 %v3523, %v3539
    %v3556 = vmax.f32 %v3524, %v3540
    %v3557 = vmax.f32 %v3525, %v3541
    %v3558 = vmax.f32 %v3526, %v3542
    %v3559 = vmax.f32 %v3527, %v3543
    %v3560 = vmax.f32 %v3528, %v3544
    %v3561 = vmax.f32 %v3529, %v3545
    %v3562 = vmax.f32 %v3530, %v3546
    %v3563 = vmax.f32 %v3531, %v3547
    %v3564 = vmax.f32 %v3532, %v3548
    %v3565 = vpack.c.bf16 %v3557, %v3549
    %v3566 = vpack.c.bf16 %v3558, %v3550
    %v3567 = vpack.c.bf16 %v3559, %v3551
    %v3568 = vpack.c.bf16 %v3560, %v3552
    %v3569 = vpack.c.bf16 %v3561, %v3553
    %v3570 = vpack.c.bf16 %v3562, %v3554
    %v3571 = vpack.c.bf16 %v3563, %v3555
    %v3572 = vpack.c.bf16 %v3564, %v3556
    %v3573 = vld [vmem:[#allocation7] sm:$0xff]
    %v3574 = vld [vmem:[#allocation7 + $0x8] sm:$0xff]
    %v3575 = vld [vmem:[#allocation7 + $0x10] sm:$0xff]
    %v3576 = vld [vmem:[#allocation7 + $0x18] sm:$0xff]
    %v3577 = vld [vmem:[#allocation7 + $0x20] sm:$0xff]
    %v3578 = vld [vmem:[#allocation7 + $0x28] sm:$0xff]
    %v3579 = vld [vmem:[#allocation7 + $0x30] sm:$0xff]
    %v3580 = vld [vmem:[#allocation7 + $0x38] sm:$0xff]
    %v3581 = vld [vmem:[#allocation7 + $0x40] sm:$0xff]
    %v3582 = vld [vmem:[#allocation7 + $0x48] sm:$0xff]
    %v3583 = vld [vmem:[#allocation7 + $0x50] sm:$0xff]
    %v3584 = vld [vmem:[#allocation7 + $0x58] sm:$0xff]
    %v3585 = vld [vmem:[#allocation7 + $0x60] sm:$0xff]
    %v3586 = vld [vmem:[#allocation7 + $0x68] sm:$0xff]
    %v3587 = vld [vmem:[#allocation7 + $0x70] sm:$0xff]
    %v3588 = vld [vmem:[#allocation7 + $0x78] sm:$0xff]
    %v3589 = vld [vmem:[#allocation7 + $0x80] sm:$0xff]
    %v3590 = vld [vmem:[#allocation7 + $0x88] sm:$0xff]
    %v3591 = vld [vmem:[#allocation7 + $0x90] sm:$0xff]
    %v3592 = vld [vmem:[#allocation7 + $0x98] sm:$0xff]
    %v3593 = vld [vmem:[#allocation7 + $0xa0] sm:$0xff]
    %v3594 = vld [vmem:[#allocation7 + $0xa8] sm:$0xff]
    %v3595 = vld [vmem:[#allocation7 + $0xb0] sm:$0xff]
    %v3596 = vld [vmem:[#allocation7 + $0xb8] sm:$0xff]
    %v3597 = vld [vmem:[#allocation7 + $0xc0] sm:$0xff]
    %v3598 = vld [vmem:[#allocation7 + $0xc8] sm:$0xff]
    %v3599 = vld [vmem:[#allocation7 + $0xd0] sm:$0xff]
    %v3600 = vld [vmem:[#allocation7 + $0xd8] sm:$0xff]
    %v3601 = vld [vmem:[#allocation7 + $0xe0] sm:$0xff]
    %v3602 = vld [vmem:[#allocation7 + $0xe8] sm:$0xff]
    %v3603 = vld [vmem:[#allocation7 + $0xf0] sm:$0xff]
    %v3604 = vld [vmem:[#allocation7 + $0xf8] sm:$0xff]
    %v3605 = vld [vmem:[#allocation7 + $0x100] sm:$0xff]
    %v3606 = vld [vmem:[#allocation7 + $0x108] sm:$0xff]
    %v3607 = vld [vmem:[#allocation7 + $0x110] sm:$0xff]
    %v3608 = vld [vmem:[#allocation7 + $0x118] sm:$0xff]
    %v3609 = vld [vmem:[#allocation7 + $0x120] sm:$0xff]
    %v3610 = vld [vmem:[#allocation7 + $0x128] sm:$0xff]
    %v3611 = vld [vmem:[#allocation7 + $0x130] sm:$0xff]
    %v3612 = vld [vmem:[#allocation7 + $0x138] sm:$0xff]
    %v3613 = vld [vmem:[#allocation7 + $0x140] sm:$0xff]
    %v3614 = vld [vmem:[#allocation7 + $0x148] sm:$0xff]
    %v3615 = vld [vmem:[#allocation7 + $0x150] sm:$0xff]
    %v3616 = vld [vmem:[#allocation7 + $0x158] sm:$0xff]
    %v3617 = vld [vmem:[#allocation7 + $0x160] sm:$0xff]
    %v3618 = vld [vmem:[#allocation7 + $0x168] sm:$0xff]
    %v3619 = vld [vmem:[#allocation7 + $0x170] sm:$0xff]
    %v3620 = vld [vmem:[#allocation7 + $0x178] sm:$0xff]
    %v3621 = vld [vmem:[#allocation7 + $0x180] sm:$0xff]
    %v3622 = vld [vmem:[#allocation7 + $0x188] sm:$0xff]
    %v3623 = vld [vmem:[#allocation7 + $0x190] sm:$0xff]
    %v3624 = vld [vmem:[#allocation7 + $0x198] sm:$0xff]
    %v3625 = vld [vmem:[#allocation7 + $0x1a0] sm:$0xff]
    %v3626 = vld [vmem:[#allocation7 + $0x1a8] sm:$0xff]
    %v3627 = vld [vmem:[#allocation7 + $0x1b0] sm:$0xff]
    %v3628 = vld [vmem:[#allocation7 + $0x1b8] sm:$0xff]
    %v3629 = vld [vmem:[#allocation7 + $0x1c0] sm:$0xff]
    %v3630 = vld [vmem:[#allocation7 + $0x1c8] sm:$0xff]
    %v3631 = vld [vmem:[#allocation7 + $0x1d0] sm:$0xff]
    %v3632 = vld [vmem:[#allocation7 + $0x1d8] sm:$0xff]
    %v3633 = vld [vmem:[#allocation7 + $0x1e0] sm:$0xff]
    %v3634 = vld [vmem:[#allocation7 + $0x1e8] sm:$0xff]
    %v3635 = vld [vmem:[#allocation7 + $0x1f0] sm:$0xff]
    %v3636 = vld [vmem:[#allocation7 + $0x1f8] sm:$0xff]
    %v3637 = vld [vmem:[#allocation7 + $0x200] sm:$0xff]
    %v3638 = vld [vmem:[#allocation7 + $0x208] sm:$0xff]
    %v3639 = vld [vmem:[#allocation7 + $0x210] sm:$0xff]
    %v3640 = vld [vmem:[#allocation7 + $0x218] sm:$0xff]
    %v3641 = vld [vmem:[#allocation7 + $0x220] sm:$0xff]
    %v3642 = vld [vmem:[#allocation7 + $0x228] sm:$0xff]
    %v3643 = vld [vmem:[#allocation7 + $0x230] sm:$0xff]
    %v3644 = vld [vmem:[#allocation7 + $0x238] sm:$0xff]
    %v3645 = vld [vmem:[#allocation7 + $0x240] sm:$0xff]
    %v3646 = vld [vmem:[#allocation7 + $0x248] sm:$0xff]
    %v3647 = vld [vmem:[#allocation7 + $0x250] sm:$0xff]
    %v3648 = vld [vmem:[#allocation7 + $0x258] sm:$0xff]
    %v3649 = vld [vmem:[#allocation7 + $0x260] sm:$0xff]
    %v3650 = vld [vmem:[#allocation7 + $0x268] sm:$0xff]
    %v3651 = vld [vmem:[#allocation7 + $0x270] sm:$0xff]
    %v3652 = vld [vmem:[#allocation7 + $0x278] sm:$0xff]
    %v3653 = vld [vmem:[#allocation7 + $0x280] sm:$0xff]
    %v3654 = vld [vmem:[#allocation7 + $0x288] sm:$0xff]
    %v3655 = vld [vmem:[#allocation7 + $0x290] sm:$0xff]
    %v3656 = vld [vmem:[#allocation7 + $0x298] sm:$0xff]
    %v3657 = vld [vmem:[#allocation7 + $0x2a0] sm:$0xff]
    %v3658 = vld [vmem:[#allocation7 + $0x2a8] sm:$0xff]
    %v3659 = vld [vmem:[#allocation7 + $0x2b0] sm:$0xff]
    %v3660 = vld [vmem:[#allocation7 + $0x2b8] sm:$0xff]
    %v3661 = vld [vmem:[#allocation7 + $0x2c0] sm:$0xff]
    %v3662 = vld [vmem:[#allocation7 + $0x2c8] sm:$0xff]
    %v3663 = vld [vmem:[#allocation7 + $0x2d0] sm:$0xff]
    %v3664 = vld [vmem:[#allocation7 + $0x2d8] sm:$0xff]
    %v3665 = vld [vmem:[#allocation7 + $0x2e0] sm:$0xff]
    %v3666 = vld [vmem:[#allocation7 + $0x2e8] sm:$0xff]
    %v3667 = vld [vmem:[#allocation7 + $0x2f0] sm:$0xff]
    %v3668 = vld [vmem:[#allocation7 + $0x2f8] sm:$0xff]
    %v3669 = vld [vmem:[#allocation7 + $0x300] sm:$0xff]
    %v3670 = vld [vmem:[#allocation7 + $0x308] sm:$0xff]
    %v3671 = vld [vmem:[#allocation7 + $0x310] sm:$0xff]
    %v3672 = vld [vmem:[#allocation7 + $0x318] sm:$0xff]
    %v3673 = vld [vmem:[#allocation7 + $0x320] sm:$0xff]
    %v3674 = vld [vmem:[#allocation7 + $0x328] sm:$0xff]
    %v3675 = vld [vmem:[#allocation7 + $0x330] sm:$0xff]
    %v3676 = vld [vmem:[#allocation7 + $0x338] sm:$0xff]
    %v3677 = vld [vmem:[#allocation7 + $0x340] sm:$0xff]
    %v3678 = vld [vmem:[#allocation7 + $0x348] sm:$0xff]
    %v3679 = vld [vmem:[#allocation7 + $0x350] sm:$0xff]
    %v3680 = vld [vmem:[#allocation7 + $0x358] sm:$0xff]
    %v3681 = vld [vmem:[#allocation7 + $0x360] sm:$0xff]
    %v3682 = vld [vmem:[#allocation7 + $0x368] sm:$0xff]
    %v3683 = vld [vmem:[#allocation7 + $0x370] sm:$0xff]
    %v3684 = vld [vmem:[#allocation7 + $0x378] sm:$0xff]
    %v3685 = vld [vmem:[#allocation7 + $0x380] sm:$0xff]
    %v3686 = vld [vmem:[#allocation7 + $0x388] sm:$0xff]
    %v3687 = vld [vmem:[#allocation7 + $0x390] sm:$0xff]
    %v3688 = vld [vmem:[#allocation7 + $0x398] sm:$0xff]
    %v3689 = vld [vmem:[#allocation7 + $0x3a0] sm:$0xff]
    %v3690 = vld [vmem:[#allocation7 + $0x3a8] sm:$0xff]
    %v3691 = vld [vmem:[#allocation7 + $0x3b0] sm:$0xff]
    %v3692 = vld [vmem:[#allocation7 + $0x3b8] sm:$0xff]
    %v3693 = vld [vmem:[#allocation7 + $0x3c0] sm:$0xff]
    %v3694 = vld [vmem:[#allocation7 + $0x3c8] sm:$0xff]
    %v3695 = vld [vmem:[#allocation7 + $0x3d0] sm:$0xff]
    %v3696 = vld [vmem:[#allocation7 + $0x3d8] sm:$0xff]
    %v3697 = vld [vmem:[#allocation7 + $0x3e0] sm:$0xff]
    %v3698 = vld [vmem:[#allocation7 + $0x3e8] sm:$0xff]
    %v3699 = vld [vmem:[#allocation7 + $0x3f0] sm:$0xff]
    %v3700 = vld [vmem:[#allocation7 + $0x3f8] sm:$0xff]
    %v3701 = vld [vmem:[#allocation7 + $0x400] sm:$0xff]
    %v3702 = vld [vmem:[#allocation7 + $0x408] sm:$0xff]
    %v3703 = vld [vmem:[#allocation7 + $0x410] sm:$0xff]
    %v3704 = vld [vmem:[#allocation7 + $0x418] sm:$0xff]
    %v3705 = vld [vmem:[#allocation7 + $0x420] sm:$0xff]
    %v3706 = vld [vmem:[#allocation7 + $0x428] sm:$0xff]
    %v3707 = vld [vmem:[#allocation7 + $0x430] sm:$0xff]
    %v3708 = vld [vmem:[#allocation7 + $0x438] sm:$0xff]
    %v3709 = vld [vmem:[#allocation7 + $0x440] sm:$0xff]
    %v3710 = vld [vmem:[#allocation7 + $0x448] sm:$0xff]
    %v3711 = vld [vmem:[#allocation7 + $0x450] sm:$0xff]
    %v3712 = vld [vmem:[#allocation7 + $0x458] sm:$0xff]
    %v3713 = vld [vmem:[#allocation7 + $0x460] sm:$0xff]
    %v3714 = vld [vmem:[#allocation7 + $0x468] sm:$0xff]
    %v3715 = vld [vmem:[#allocation7 + $0x470] sm:$0xff]
    %v3716 = vld [vmem:[#allocation7 + $0x478] sm:$0xff]
    %v3717 = vld [vmem:[#allocation7 + $0x480] sm:$0xff]
    %v3718 = vld [vmem:[#allocation7 + $0x488] sm:$0xff]
    %v3719 = vld [vmem:[#allocation7 + $0x490] sm:$0xff]
    %v3720 = vld [vmem:[#allocation7 + $0x498] sm:$0xff]
    %v3721 = vld [vmem:[#allocation7 + $0x4a0] sm:$0xff]
    %v3722 = vld [vmem:[#allocation7 + $0x4a8] sm:$0xff]
    %v3723 = vld [vmem:[#allocation7 + $0x4b0] sm:$0xff]
    %v3724 = vld [vmem:[#allocation7 + $0x4b8] sm:$0xff]
    %v3725 = vld [vmem:[#allocation7 + $0x4c0] sm:$0xff]
    %v3726 = vld [vmem:[#allocation7 + $0x4c8] sm:$0xff]
    %v3727 = vld [vmem:[#allocation7 + $0x4d0] sm:$0xff]
    %v3728 = vld [vmem:[#allocation7 + $0x4d8] sm:$0xff]
    %v3729 = vld [vmem:[#allocation7 + $0x4e0] sm:$0xff]
    %v3730 = vld [vmem:[#allocation7 + $0x4e8] sm:$0xff]
    %v3731 = vld [vmem:[#allocation7 + $0x4f0] sm:$0xff]
    %v3732 = vld [vmem:[#allocation7 + $0x4f8] sm:$0xff]
    %v3733 = vld [vmem:[#allocation7 + $0x500] sm:$0xff]
    %v3734 = vld [vmem:[#allocation7 + $0x508] sm:$0xff]
    %v3735 = vld [vmem:[#allocation7 + $0x510] sm:$0xff]
    %v3736 = vld [vmem:[#allocation7 + $0x518] sm:$0xff]
    %v3737 = vld [vmem:[#allocation7 + $0x520] sm:$0xff]
    %v3738 = vld [vmem:[#allocation7 + $0x528] sm:$0xff]
    %v3739 = vld [vmem:[#allocation7 + $0x530] sm:$0xff]
    %v3740 = vld [vmem:[#allocation7 + $0x538] sm:$0xff]
    %v3741 = vld [vmem:[#allocation7 + $0x540] sm:$0xff]
    %v3742 = vld [vmem:[#allocation7 + $0x548] sm:$0xff]
    %v3743 = vld [vmem:[#allocation7 + $0x550] sm:$0xff]
    %v3744 = vld [vmem:[#allocation7 + $0x558] sm:$0xff]
    %v3745 = vld [vmem:[#allocation7 + $0x560] sm:$0xff]
    %v3746 = vld [vmem:[#allocation7 + $0x568] sm:$0xff]
    %v3747 = vld [vmem:[#allocation7 + $0x570] sm:$0xff]
    %v3748 = vld [vmem:[#allocation7 + $0x578] sm:$0xff]
    %v3749 = vld [vmem:[#allocation7 + $0x580] sm:$0xff]
    %v3750 = vld [vmem:[#allocation7 + $0x588] sm:$0xff]
    %v3751 = vld [vmem:[#allocation7 + $0x590] sm:$0xff]
    %v3752 = vld [vmem:[#allocation7 + $0x598] sm:$0xff]
    %v3753 = vld [vmem:[#allocation7 + $0x5a0] sm:$0xff]
    %v3754 = vld [vmem:[#allocation7 + $0x5a8] sm:$0xff]
    %v3755 = vld [vmem:[#allocation7 + $0x5b0] sm:$0xff]
    %v3756 = vld [vmem:[#allocation7 + $0x5b8] sm:$0xff]
    %v3757 = vld [vmem:[#allocation7 + $0x5c0] sm:$0xff]
    %v3758 = vld [vmem:[#allocation7 + $0x5c8] sm:$0xff]
    %v3759 = vld [vmem:[#allocation7 + $0x5d0] sm:$0xff]
    %v3760 = vld [vmem:[#allocation7 + $0x5d8] sm:$0xff]
    %v3761 = vld [vmem:[#allocation7 + $0x5e0] sm:$0xff]
    %v3762 = vld [vmem:[#allocation7 + $0x5e8] sm:$0xff]
    %v3763 = vld [vmem:[#allocation7 + $0x5f0] sm:$0xff]
    %v3764 = vld [vmem:[#allocation7 + $0x5f8] sm:$0xff]
    %v3765 = vld [vmem:[#allocation7 + $0x600] sm:$0xff]
    %v3766 = vld [vmem:[#allocation7 + $0x608] sm:$0xff]
    %v3767 = vld [vmem:[#allocation7 + $0x610] sm:$0xff]
    %v3768 = vld [vmem:[#allocation7 + $0x618] sm:$0xff]
    %v3769 = vld [vmem:[#allocation7 + $0x620] sm:$0xff]
    %v3770 = vld [vmem:[#allocation7 + $0x628] sm:$0xff]
    %v3771 = vld [vmem:[#allocation7 + $0x630] sm:$0xff]
    %v3772 = vld [vmem:[#allocation7 + $0x638] sm:$0xff]
    %v3773 = vld [vmem:[#allocation7 + $0x640] sm:$0xff]
    %v3774 = vld [vmem:[#allocation7 + $0x648] sm:$0xff]
    %v3775 = vld [vmem:[#allocation7 + $0x650] sm:$0xff]
    %v3776 = vld [vmem:[#allocation7 + $0x658] sm:$0xff]
    %v3777 = vld [vmem:[#allocation7 + $0x660] sm:$0xff]
    %v3778 = vld [vmem:[#allocation7 + $0x668] sm:$0xff]
    %v3779 = vld [vmem:[#allocation7 + $0x670] sm:$0xff]
    %v3780 = vld [vmem:[#allocation7 + $0x678] sm:$0xff]
    %v3781 = vld [vmem:[#allocation7 + $0x680] sm:$0xff]
    %v3782 = vld [vmem:[#allocation7 + $0x688] sm:$0xff]
    %v3783 = vld [vmem:[#allocation7 + $0x690] sm:$0xff]
    %v3784 = vld [vmem:[#allocation7 + $0x698] sm:$0xff]
    %v3785 = vld [vmem:[#allocation7 + $0x6a0] sm:$0xff]
    %v3786 = vld [vmem:[#allocation7 + $0x6a8] sm:$0xff]
    %v3787 = vld [vmem:[#allocation7 + $0x6b0] sm:$0xff]
    %v3788 = vld [vmem:[#allocation7 + $0x6b8] sm:$0xff]
    %v3789 = vld [vmem:[#allocation7 + $0x6c0] sm:$0xff]
    %v3790 = vld [vmem:[#allocation7 + $0x6c8] sm:$0xff]
    %v3791 = vld [vmem:[#allocation7 + $0x6d0] sm:$0xff]
    %v3792 = vld [vmem:[#allocation7 + $0x6d8] sm:$0xff]
    %v3793 = vld [vmem:[#allocation7 + $0x6e0] sm:$0xff]
    %v3794 = vld [vmem:[#allocation7 + $0x6e8] sm:$0xff]
    %v3795 = vld [vmem:[#allocation7 + $0x6f0] sm:$0xff]
    %v3796 = vld [vmem:[#allocation7 + $0x6f8] sm:$0xff]
    %v3797 = vld [vmem:[#allocation7 + $0x700] sm:$0xff]
    %v3798 = vld [vmem:[#allocation7 + $0x708] sm:$0xff]
    %v3799 = vld [vmem:[#allocation7 + $0x710] sm:$0xff]
    %v3800 = vld [vmem:[#allocation7 + $0x718] sm:$0xff]
    %v3801 = vld [vmem:[#allocation7 + $0x720] sm:$0xff]
    %v3802 = vld [vmem:[#allocation7 + $0x728] sm:$0xff]
    %v3803 = vld [vmem:[#allocation7 + $0x730] sm:$0xff]
    %v3804 = vld [vmem:[#allocation7 + $0x738] sm:$0xff]
    %v3805 = vld [vmem:[#allocation7 + $0x740] sm:$0xff]
    %v3806 = vld [vmem:[#allocation7 + $0x748] sm:$0xff]
    %v3807 = vld [vmem:[#allocation7 + $0x750] sm:$0xff]
    %v3808 = vld [vmem:[#allocation7 + $0x758] sm:$0xff]
    %v3809 = vld [vmem:[#allocation7 + $0x760] sm:$0xff]
    %v3810 = vld [vmem:[#allocation7 + $0x768] sm:$0xff]
    %v3811 = vld [vmem:[#allocation7 + $0x770] sm:$0xff]
    %v3812 = vld [vmem:[#allocation7 + $0x778] sm:$0xff]
    %v3813 = vld [vmem:[#allocation7 + $0x780] sm:$0xff]
    %v3814 = vld [vmem:[#allocation7 + $0x788] sm:$0xff]
    %v3815 = vld [vmem:[#allocation7 + $0x790] sm:$0xff]
    %v3816 = vld [vmem:[#allocation7 + $0x798] sm:$0xff]
    %v3817 = vld [vmem:[#allocation7 + $0x7a0] sm:$0xff]
    %v3818 = vld [vmem:[#allocation7 + $0x7a8] sm:$0xff]
    %v3819 = vld [vmem:[#allocation7 + $0x7b0] sm:$0xff]
    %v3820 = vld [vmem:[#allocation7 + $0x7b8] sm:$0xff]
    %v3821 = vld [vmem:[#allocation7 + $0x7c0] sm:$0xff]
    %v3822 = vld [vmem:[#allocation7 + $0x7c8] sm:$0xff]
    %v3823 = vld [vmem:[#allocation7 + $0x7d0] sm:$0xff]
    %v3824 = vld [vmem:[#allocation7 + $0x7d8] sm:$0xff]
    %v3825 = vld [vmem:[#allocation7 + $0x7e0] sm:$0xff]
    %v3826 = vld [vmem:[#allocation7 + $0x7e8] sm:$0xff]
    %v3827 = vld [vmem:[#allocation7 + $0x7f0] sm:$0xff]
    %v3828 = vld [vmem:[#allocation7 + $0x7f8] sm:$0xff]
    %v3829 = vld [vmem:[#allocation9] sm:$0xf]
    %v3831 = vlaneseq
    %v3832 = vshrl.u32 %v3831, 7
    %v3833 = vsub.s32 0, %v3832
    %v3834 = vrot.slane %v3829, %v3833
    %v3835 = vlaneseq
    %v3836 = vshrl.u32 %v3835, 7
    %v3837 = vsub.s32 1, %v3836
    %v3838 = vrot.slane %v3829, %v3837
    %v3839 = vlaneseq
    %v3840 = vshrl.u32 %v3839, 7
    %v3841 = vsub.s32 2, %v3840
    %v3842 = vrot.slane %v3829, %v3841
    %v3843 = vlaneseq
    %v3844 = vshrl.u32 %v3843, 7
    %v3845 = vsub.s32 3, %v3844
    %v3846 = vrot.slane %v3829, %v3845
    %v4107 = vunpack.c.l.b16 %v3573
    %v4108 = vunpack.c.h.b16 %v3573
    %v4109 = vunpack.c.l.b16 %v3574
    %v4110 = vunpack.c.h.b16 %v3574
    %v4111 = vunpack.c.l.b16 %v3575
    %v4112 = vunpack.c.h.b16 %v3575
    %v4113 = vunpack.c.l.b16 %v3576
    %v4114 = vunpack.c.h.b16 %v3576
    %v4115 = vunpack.c.l.b16 %v3577
    %v4116 = vunpack.c.h.b16 %v3577
    %v4117 = vunpack.c.l.b16 %v3578
    %v4118 = vunpack.c.h.b16 %v3578
    %v4119 = vunpack.c.l.b16 %v3579
    %v4120 = vunpack.c.h.b16 %v3579
    %v4121 = vunpack.c.l.b16 %v3580
    %v4122 = vunpack.c.h.b16 %v3580
    %v4123 = vunpack.c.l.b16 %v3581
    %v4124 = vunpack.c.h.b16 %v3581
    %v4125 = vunpack.c.l.b16 %v3582
    %v4126 = vunpack.c.h.b16 %v3582
    %v4127 = vunpack.c.l.b16 %v3583
    %v4128 = vunpack.c.h.b16 %v3583
    %v4129 = vunpack.c.l.b16 %v3584
    %v4130 = vunpack.c.h.b16 %v3584
    %v4131 = vunpack.c.l.b16 %v3585
    %v4132 = vunpack.c.h.b16 %v3585
    %v4133 = vunpack.c.l.b16 %v3586
    %v4134 = vunpack.c.h.b16 %v3586
    %v4135 = vunpack.c.l.b16 %v3587
    %v4136 = vunpack.c.h.b16 %v3587
    %v4137 = vunpack.c.l.b16 %v3588
    %v4138 = vunpack.c.h.b16 %v3588
    %v4139 = vunpack.c.l.b16 %v3589
    %v4140 = vunpack.c.h.b16 %v3589
    %v4141 = vunpack.c.l.b16 %v3590
    %v4142 = vunpack.c.h.b16 %v3590
    %v4143 = vunpack.c.l.b16 %v3591
    %v4144 = vunpack.c.h.b16 %v3591
    %v4145 = vunpack.c.l.b16 %v3592
    %v4146 = vunpack.c.h.b16 %v3592
    %v4147 = vunpack.c.l.b16 %v3593
    %v4148 = vunpack.c.h.b16 %v3593
    %v4149 = vunpack.c.l.b16 %v3594
    %v4150 = vunpack.c.h.b16 %v3594
    %v4151 = vunpack.c.l.b16 %v3595
    %v4152 = vunpack.c.h.b16 %v3595
    %v4153 = vunpack.c.l.b16 %v3596
    %v4154 = vunpack.c.h.b16 %v3596
    %v4155 = vunpack.c.l.b16 %v3597
    %v4156 = vunpack.c.h.b16 %v3597
    %v4157 = vunpack.c.l.b16 %v3598
    %v4158 = vunpack.c.h.b16 %v3598
    %v4159 = vunpack.c.l.b16 %v3599
    %v4160 = vunpack.c.h.b16 %v3599
    %v4161 = vunpack.c.l.b16 %v3600
    %v4162 = vunpack.c.h.b16 %v3600
    %v4163 = vunpack.c.l.b16 %v3601
    %v4164 = vunpack.c.h.b16 %v3601
    %v4165 = vunpack.c.l.b16 %v3602
    %v4166 = vunpack.c.h.b16 %v3602
    %v4167 = vunpack.c.l.b16 %v3603
    %v4168 = vunpack.c.h.b16 %v3603
    %v4169 = vunpack.c.l.b16 %v3604
    %v4170 = vunpack.c.h.b16 %v3604
    %v4171 = vunpack.c.l.b16 %v3605
    %v4172 = vunpack.c.h.b16 %v3605
    %v4173 = vunpack.c.l.b16 %v3606
    %v4174 = vunpack.c.h.b16 %v3606
    %v4175 = vunpack.c.l.b16 %v3607
    %v4176 = vunpack.c.h.b16 %v3607
    %v4177 = vunpack.c.l.b16 %v3608
    %v4178 = vunpack.c.h.b16 %v3608
    %v4179 = vunpack.c.l.b16 %v3609
    %v4180 = vunpack.c.h.b16 %v3609
    %v4181 = vunpack.c.l.b16 %v3610
    %v4182 = vunpack.c.h.b16 %v3610
    %v4183 = vunpack.c.l.b16 %v3611
    %v4184 = vunpack.c.h.b16 %v3611
    %v4185 = vunpack.c.l.b16 %v3612
    %v4186 = vunpack.c.h.b16 %v3612
    %v4187 = vunpack.c.l.b16 %v3613
    %v4188 = vunpack.c.h.b16 %v3613
    %v4189 = vunpack.c.l.b16 %v3614
    %v4190 = vunpack.c.h.b16 %v3614
    %v4191 = vunpack.c.l.b16 %v3615
    %v4192 = vunpack.c.h.b16 %v3615
    %v4193 = vunpack.c.l.b16 %v3616
    %v4194 = vunpack.c.h.b16 %v3616
    %v4195 = vunpack.c.l.b16 %v3617
    %v4196 = vunpack.c.h.b16 %v3617
    %v4197 = vunpack.c.l.b16 %v3618
    %v4198 = vunpack.c.h.b16 %v3618
    %v4199 = vunpack.c.l.b16 %v3619
    %v4200 = vunpack.c.h.b16 %v3619
    %v4201 = vunpack.c.l.b16 %v3620
    %v4202 = vunpack.c.h.b16 %v3620
    %v4203 = vunpack.c.l.b16 %v3621
    %v4204 = vunpack.c.h.b16 %v3621
    %v4205 = vunpack.c.l.b16 %v3622
    %v4206 = vunpack.c.h.b16 %v3622
    %v4207 = vunpack.c.l.b16 %v3623
    %v4208 = vunpack.c.h.b16 %v3623
    %v4209 = vunpack.c.l.b16 %v3624
    %v4210 = vunpack.c.h.b16 %v3624
    %v4211 = vunpack.c.l.b16 %v3625
    %v4212 = vunpack.c.h.b16 %v3625
    %v4213 = vunpack.c.l.b16 %v3626
    %v4214 = vunpack.c.h.b16 %v3626
    %v4215 = vunpack.c.l.b16 %v3627
    %v4216 = vunpack.c.h.b16 %v3627
    %v4217 = vunpack.c.l.b16 %v3628
    %v4218 = vunpack.c.h.b16 %v3628
    %v4219 = vunpack.c.l.b16 %v3629
    %v4220 = vunpack.c.h.b16 %v3629
    %v4221 = vunpack.c.l.b16 %v3630
    %v4222 = vunpack.c.h.b16 %v3630
    %v4223 = vunpack.c.l.b16 %v3631
    %v4224 = vunpack.c.h.b16 %v3631
    %v4225 = vunpack.c.l.b16 %v3632
    %v4226 = vunpack.c.h.b16 %v3632
    %v4227 = vunpack.c.l.b16 %v3633
    %v4228 = vunpack.c.h.b16 %v3633
    %v4229 = vunpack.c.l.b16 %v3634
    %v4230 = vunpack.c.h.b16 %v3634
    %v4231 = vunpack.c.l.b16 %v3635
    %v4232 = vunpack.c.h.b16 %v3635
    %v4233 = vunpack.c.l.b16 %v3636
    %v4234 = vunpack.c.h.b16 %v3636
    %v4235 = vunpack.c.l.b16 %v3637
    %v4236 = vunpack.c.h.b16 %v3637
    %v4237 = vunpack.c.l.b16 %v3638
    %v4238 = vunpack.c.h.b16 %v3638
    %v4239 = vunpack.c.l.b16 %v3639
    %v4240 = vunpack.c.h.b16 %v3639
    %v4241 = vunpack.c.l.b16 %v3640
    %v4242 = vunpack.c.h.b16 %v3640
    %v4243 = vunpack.c.l.b16 %v3641
    %v4244 = vunpack.c.h.b16 %v3641
    %v4245 = vunpack.c.l.b16 %v3642
    %v4246 = vunpack.c.h.b16 %v3642
    %v4247 = vunpack.c.l.b16 %v3643
    %v4248 = vunpack.c.h.b16 %v3643
    %v4249 = vunpack.c.l.b16 %v3644
    %v4250 = vunpack.c.h.b16 %v3644
    %v4251 = vunpack.c.l.b16 %v3645
    %v4252 = vunpack.c.h.b16 %v3645
    %v4253 = vunpack.c.l.b16 %v3646
    %v4254 = vunpack.c.h.b16 %v3646
    %v4255 = vunpack.c.l.b16 %v3647
    %v4256 = vunpack.c.h.b16 %v3647
    %v4257 = vunpack.c.l.b16 %v3648
    %v4258 = vunpack.c.h.b16 %v3648
    %v4259 = vunpack.c.l.b16 %v3649
    %v4260 = vunpack.c.h.b16 %v3649
    %v4261 = vunpack.c.l.b16 %v3650
    %v4262 = vunpack.c.h.b16 %v3650
    %v4263 = vunpack.c.l.b16 %v3651
    %v4264 = vunpack.c.h.b16 %v3651
    %v4265 = vunpack.c.l.b16 %v3652
    %v4266 = vunpack.c.h.b16 %v3652
    %v4267 = vunpack.c.l.b16 %v3653
    %v4268 = vunpack.c.h.b16 %v3653
    %v4269 = vunpack.c.l.b16 %v3654
    %v4270 = vunpack.c.h.b16 %v3654
    %v4271 = vunpack.c.l.b16 %v3655
    %v4272 = vunpack.c.h.b16 %v3655
    %v4273 = vunpack.c.l.b16 %v3656
    %v4274 = vunpack.c.h.b16 %v3656
    %v4275 = vunpack.c.l.b16 %v3657
    %v4276 = vunpack.c.h.b16 %v3657
    %v4277 = vunpack.c.l.b16 %v3658
    %v4278 = vunpack.c.h.b16 %v3658
    %v4279 = vunpack.c.l.b16 %v3659
    %v4280 = vunpack.c.h.b16 %v3659
    %v4281 = vunpack.c.l.b16 %v3660
    %v4282 = vunpack.c.h.b16 %v3660
    %v4283 = vunpack.c.l.b16 %v3661
    %v4284 = vunpack.c.h.b16 %v3661
    %v4285 = vunpack.c.l.b16 %v3662
    %v4286 = vunpack.c.h.b16 %v3662
    %v4287 = vunpack.c.l.b16 %v3663
    %v4288 = vunpack.c.h.b16 %v3663
    %v4289 = vunpack.c.l.b16 %v3664
    %v4290 = vunpack.c.h.b16 %v3664
    %v4291 = vunpack.c.l.b16 %v3665
    %v4292 = vunpack.c.h.b16 %v3665
    %v4293 = vunpack.c.l.b16 %v3666
    %v4294 = vunpack.c.h.b16 %v3666
    %v4295 = vunpack.c.l.b16 %v3667
    %v4296 = vunpack.c.h.b16 %v3667
    %v4297 = vunpack.c.l.b16 %v3668
    %v4298 = vunpack.c.h.b16 %v3668
    %v4299 = vunpack.c.l.b16 %v3669
    %v4300 = vunpack.c.h.b16 %v3669
    %v4301 = vunpack.c.l.b16 %v3670
    %v4302 = vunpack.c.h.b16 %v3670
    %v4303 = vunpack.c.l.b16 %v3671
    %v4304 = vunpack.c.h.b16 %v3671
    %v4305 = vunpack.c.l.b16 %v3672
    %v4306 = vunpack.c.h.b16 %v3672
    %v4307 = vunpack.c.l.b16 %v3673
    %v4308 = vunpack.c.h.b16 %v3673
    %v4309 = vunpack.c.l.b16 %v3674
    %v4310 = vunpack.c.h.b16 %v3674
    %v4311 = vunpack.c.l.b16 %v3675
    %v4312 = vunpack.c.h.b16 %v3675
    %v4313 = vunpack.c.l.b16 %v3676
    %v4314 = vunpack.c.h.b16 %v3676
    %v4315 = vunpack.c.l.b16 %v3677
    %v4316 = vunpack.c.h.b16 %v3677
    %v4317 = vunpack.c.l.b16 %v3678
    %v4318 = vunpack.c.h.b16 %v3678
    %v4319 = vunpack.c.l.b16 %v3679
    %v4320 = vunpack.c.h.b16 %v3679
    %v4321 = vunpack.c.l.b16 %v3680
    %v4322 = vunpack.c.h.b16 %v3680
    %v4323 = vunpack.c.l.b16 %v3681
    %v4324 = vunpack.c.h.b16 %v3681
    %v4325 = vunpack.c.l.b16 %v3682
    %v4326 = vunpack.c.h.b16 %v3682
    %v4327 = vunpack.c.l.b16 %v3683
    %v4328 = vunpack.c.h.b16 %v3683
    %v4329 = vunpack.c.l.b16 %v3684
    %v4330 = vunpack.c.h.b16 %v3684
    %v4331 = vunpack.c.l.b16 %v3685
    %v4332 = vunpack.c.h.b16 %v3685
    %v4333 = vunpack.c.l.b16 %v3686
    %v4334 = vunpack.c.h.b16 %v3686
    %v4335 = vunpack.c.l.b16 %v3687
    %v4336 = vunpack.c.h.b16 %v3687
    %v4337 = vunpack.c.l.b16 %v3688
    %v4338 = vunpack.c.h.b16 %v3688
    %v4339 = vunpack.c.l.b16 %v3689
    %v4340 = vunpack.c.h.b16 %v3689
    %v4341 = vunpack.c.l.b16 %v3690
    %v4342 = vunpack.c.h.b16 %v3690
    %v4343 = vunpack.c.l.b16 %v3691
    %v4344 = vunpack.c.h.b16 %v3691
    %v4345 = vunpack.c.l.b16 %v3692
    %v4346 = vunpack.c.h.b16 %v3692
    %v4347 = vunpack.c.l.b16 %v3693
    %v4348 = vunpack.c.h.b16 %v3693
    %v4349 = vunpack.c.l.b16 %v3694
    %v4350 = vunpack.c.h.b16 %v3694
    %v4351 = vunpack.c.l.b16 %v3695
    %v4352 = vunpack.c.h.b16 %v3695
    %v4353 = vunpack.c.l.b16 %v3696
    %v4354 = vunpack.c.h.b16 %v3696
    %v4355 = vunpack.c.l.b16 %v3697
    %v4356 = vunpack.c.h.b16 %v3697
    %v4357 = vunpack.c.l.b16 %v3698
    %v4358 = vunpack.c.h.b16 %v3698
    %v4359 = vunpack.c.l.b16 %v3699
    %v4360 = vunpack.c.h.b16 %v3699
    %v4361 = vunpack.c.l.b16 %v3700
    %v4362 = vunpack.c.h.b16 %v3700
    %v4363 = vunpack.c.l.b16 %v3701
    %v4364 = vunpack.c.h.b16 %v3701
    %v4365 = vunpack.c.l.b16 %v3702
    %v4366 = vunpack.c.h.b16 %v3702
    %v4367 = vunpack.c.l.b16 %v3703
    %v4368 = vunpack.c.h.b16 %v3703
    %v4369 = vunpack.c.l.b16 %v3704
    %v4370 = vunpack.c.h.b16 %v3704
    %v4371 = vunpack.c.l.b16 %v3705
    %v4372 = vunpack.c.h.b16 %v3705
    %v4373 = vunpack.c.l.b16 %v3706
    %v4374 = vunpack.c.h.b16 %v3706
    %v4375 = vunpack.c.l.b16 %v3707
    %v4376 = vunpack.c.h.b16 %v3707
    %v4377 = vunpack.c.l.b16 %v3708
    %v4378 = vunpack.c.h.b16 %v3708
    %v4379 = vunpack.c.l.b16 %v3709
    %v4380 = vunpack.c.h.b16 %v3709
    %v4381 = vunpack.c.l.b16 %v3710
    %v4382 = vunpack.c.h.b16 %v3710
    %v4383 = vunpack.c.l.b16 %v3711
    %v4384 = vunpack.c.h.b16 %v3711
    %v4385 = vunpack.c.l.b16 %v3712
    %v4386 = vunpack.c.h.b16 %v3712
    %v4387 = vunpack.c.l.b16 %v3713
    %v4388 = vunpack.c.h.b16 %v3713
    %v4389 = vunpack.c.l.b16 %v3714
    %v4390 = vunpack.c.h.b16 %v3714
    %v4391 = vunpack.c.l.b16 %v3715
    %v4392 = vunpack.c.h.b16 %v3715
    %v4393 = vunpack.c.l.b16 %v3716
    %v4394 = vunpack.c.h.b16 %v3716
    %v4395 = vunpack.c.l.b16 %v3717
    %v4396 = vunpack.c.h.b16 %v3717
    %v4397 = vunpack.c.l.b16 %v3718
    %v4398 = vunpack.c.h.b16 %v3718
    %v4399 = vunpack.c.l.b16 %v3719
    %v4400 = vunpack.c.h.b16 %v3719
    %v4401 = vunpack.c.l.b16 %v3720
    %v4402 = vunpack.c.h.b16 %v3720
    %v4403 = vunpack.c.l.b16 %v3721
    %v4404 = vunpack.c.h.b16 %v3721
    %v4405 = vunpack.c.l.b16 %v3722
    %v4406 = vunpack.c.h.b16 %v3722
    %v4407 = vunpack.c.l.b16 %v3723
    %v4408 = vunpack.c.h.b16 %v3723
    %v4409 = vunpack.c.l.b16 %v3724
    %v4410 = vunpack.c.h.b16 %v3724
    %v4411 = vunpack.c.l.b16 %v3725
    %v4412 = vunpack.c.h.b16 %v3725
    %v4413 = vunpack.c.l.b16 %v3726
    %v4414 = vunpack.c.h.b16 %v3726
    %v4415 = vunpack.c.l.b16 %v3727
    %v4416 = vunpack.c.h.b16 %v3727
    %v4417 = vunpack.c.l.b16 %v3728
    %v4418 = vunpack.c.h.b16 %v3728
    %v4419 = vunpack.c.l.b16 %v3729
    %v4420 = vunpack.c.h.b16 %v3729
    %v4421 = vunpack.c.l.b16 %v3730
    %v4422 = vunpack.c.h.b16 %v3730
    %v4423 = vunpack.c.l.b16 %v3731
    %v4424 = vunpack.c.h.b16 %v3731
    %v4425 = vunpack.c.l.b16 %v3732
    %v4426 = vunpack.c.h.b16 %v3732
    %v4427 = vunpack.c.l.b16 %v3733
    %v4428 = vunpack.c.h.b16 %v3733
    %v4429 = vunpack.c.l.b16 %v3734
    %v4430 = vunpack.c.h.b16 %v3734
    %v4431 = vunpack.c.l.b16 %v3735
    %v4432 = vunpack.c.h.b16 %v3735
    %v4433 = vunpack.c.l.b16 %v3736
    %v4434 = vunpack.c.h.b16 %v3736
    %v4435 = vunpack.c.l.b16 %v3737
    %v4436 = vunpack.c.h.b16 %v3737
    %v4437 = vunpack.c.l.b16 %v3738
    %v4438 = vunpack.c.h.b16 %v3738
    %v4439 = vunpack.c.l.b16 %v3739
    %v4440 = vunpack.c.h.b16 %v3739
    %v4441 = vunpack.c.l.b16 %v3740
    %v4442 = vunpack.c.h.b16 %v3740
    %v4443 = vunpack.c.l.b16 %v3741
    %v4444 = vunpack.c.h.b16 %v3741
    %v4445 = vunpack.c.l.b16 %v3742
    %v4446 = vunpack.c.h.b16 %v3742
    %v4447 = vunpack.c.l.b16 %v3743
    %v4448 = vunpack.c.h.b16 %v3743
    %v4449 = vunpack.c.l.b16 %v3744
    %v4450 = vunpack.c.h.b16 %v3744
    %v4451 = vunpack.c.l.b16 %v3745
    %v4452 = vunpack.c.h.b16 %v3745
    %v4453 = vunpack.c.l.b16 %v3746
    %v4454 = vunpack.c.h.b16 %v3746
    %v4455 = vunpack.c.l.b16 %v3747
    %v4456 = vunpack.c.h.b16 %v3747
    %v4457 = vunpack.c.l.b16 %v3748
    %v4458 = vunpack.c.h.b16 %v3748
    %v4459 = vunpack.c.l.b16 %v3749
    %v4460 = vunpack.c.h.b16 %v3749
    %v4461 = vunpack.c.l.b16 %v3750
    %v4462 = vunpack.c.h.b16 %v3750
    %v4463 = vunpack.c.l.b16 %v3751
    %v4464 = vunpack.c.h.b16 %v3751
    %v4465 = vunpack.c.l.b16 %v3752
    %v4466 = vunpack.c.h.b16 %v3752
    %v4467 = vunpack.c.l.b16 %v3753
    %v4468 = vunpack.c.h.b16 %v3753
    %v4469 = vunpack.c.l.b16 %v3754
    %v4470 = vunpack.c.h.b16 %v3754
    %v4471 = vunpack.c.l.b16 %v3755
    %v4472 = vunpack.c.h.b16 %v3755
    %v4473 = vunpack.c.l.b16 %v3756
    %v4474 = vunpack.c.h.b16 %v3756
    %v4475 = vunpack.c.l.b16 %v3757
    %v4476 = vunpack.c.h.b16 %v3757
    %v4477 = vunpack.c.l.b16 %v3758
    %v4478 = vunpack.c.h.b16 %v3758
    %v4479 = vunpack.c.l.b16 %v3759
    %v4480 = vunpack.c.h.b16 %v3759
    %v4481 = vunpack.c.l.b16 %v3760
    %v4482 = vunpack.c.h.b16 %v3760
    %v4483 = vunpack.c.l.b16 %v3761
    %v4484 = vunpack.c.h.b16 %v3761
    %v4485 = vunpack.c.l.b16 %v3762
    %v4486 = vunpack.c.h.b16 %v3762
    %v4487 = vunpack.c.l.b16 %v3763
    %v4488 = vunpack.c.h.b16 %v3763
    %v4489 = vunpack.c.l.b16 %v3764
    %v4490 = vunpack.c.h.b16 %v3764
    %v4491 = vunpack.c.l.b16 %v3765
    %v4492 = vunpack.c.h.b16 %v3765
    %v4493 = vunpack.c.l.b16 %v3766
    %v4494 = vunpack.c.h.b16 %v3766
    %v4495 = vunpack.c.l.b16 %v3767
    %v4496 = vunpack.c.h.b16 %v3767
    %v4497 = vunpack.c.l.b16 %v3768
    %v4498 = vunpack.c.h.b16 %v3768
    %v4499 = vunpack.c.l.b16 %v3769
    %v4500 = vunpack.c.h.b16 %v3769
    %v4501 = vunpack.c.l.b16 %v3770
    %v4502 = vunpack.c.h.b16 %v3770
    %v4503 = vunpack.c.l.b16 %v3771
    %v4504 = vunpack.c.h.b16 %v3771
    %v4505 = vunpack.c.l.b16 %v3772
    %v4506 = vunpack.c.h.b16 %v3772
    %v4507 = vunpack.c.l.b16 %v3773
    %v4508 = vunpack.c.h.b16 %v3773
    %v4509 = vunpack.c.l.b16 %v3774
    %v4510 = vunpack.c.h.b16 %v3774
    %v4511 = vunpack.c.l.b16 %v3775
    %v4512 = vunpack.c.h.b16 %v3775
    %v4513 = vunpack.c.l.b16 %v3776
    %v4514 = vunpack.c.h.b16 %v3776
    %v4515 = vunpack.c.l.b16 %v3777
    %v4516 = vunpack.c.h.b16 %v3777
    %v4517 = vunpack.c.l.b16 %v3778
    %v4518 = vunpack.c.h.b16 %v3778
    %v4519 = vunpack.c.l.b16 %v3779
    %v4520 = vunpack.c.h.b16 %v3779
    %v4521 = vunpack.c.l.b16 %v3780
    %v4522 = vunpack.c.h.b16 %v3780
    %v4523 = vunpack.c.l.b16 %v3781
    %v4524 = vunpack.c.h.b16 %v3781
    %v4525 = vunpack.c.l.b16 %v3782
    %v4526 = vunpack.c.h.b16 %v3782
    %v4527 = vunpack.c.l.b16 %v3783
    %v4528 = vunpack.c.h.b16 %v3783
    %v4529 = vunpack.c.l.b16 %v3784
    %v4530 = vunpack.c.h.b16 %v3784
    %v4531 = vunpack.c.l.b16 %v3785
    %v4532 = vunpack.c.h.b16 %v3785
    %v4533 = vunpack.c.l.b16 %v3786
    %v4534 = vunpack.c.h.b16 %v3786
    %v4535 = vunpack.c.l.b16 %v3787
    %v4536 = vunpack.c.h.b16 %v3787
    %v4537 = vunpack.c.l.b16 %v3788
    %v4538 = vunpack.c.h.b16 %v3788
    %v4539 = vunpack.c.l.b16 %v3789
    %v4540 = vunpack.c.h.b16 %v3789
    %v4541 = vunpack.c.l.b16 %v3790
    %v4542 = vunpack.c.h.b16 %v3790
    %v4543 = vunpack.c.l.b16 %v3791
    %v4544 = vunpack.c.h.b16 %v3791
    %v4545 = vunpack.c.l.b16 %v3792
    %v4546 = vunpack.c.h.b16 %v3792
    %v4547 = vunpack.c.l.b16 %v3793
    %v4548 = vunpack.c.h.b16 %v3793
    %v4549 = vunpack.c.l.b16 %v3794
    %v4550 = vunpack.c.h.b16 %v3794
    %v4551 = vunpack.c.l.b16 %v3795
    %v4552 = vunpack.c.h.b16 %v3795
    %v4553 = vunpack.c.l.b16 %v3796
    %v4554 = vunpack.c.h.b16 %v3796
    %v4555 = vunpack.c.l.b16 %v3797
    %v4556 = vunpack.c.h.b16 %v3797
    %v4557 = vunpack.c.l.b16 %v3798
    %v4558 = vunpack.c.h.b16 %v3798
    %v4559 = vunpack.c.l.b16 %v3799
    %v4560 = vunpack.c.h.b16 %v3799
    %v4561 = vunpack.c.l.b16 %v3800
    %v4562 = vunpack.c.h.b16 %v3800
    %v4563 = vunpack.c.l.b16 %v3801
    %v4564 = vunpack.c.h.b16 %v3801
    %v4565 = vunpack.c.l.b16 %v3802
    %v4566 = vunpack.c.h.b16 %v3802
    %v4567 = vunpack.c.l.b16 %v3803
    %v4568 = vunpack.c.h.b16 %v3803
    %v4569 = vunpack.c.l.b16 %v3804
    %v4570 = vunpack.c.h.b16 %v3804
    %v4571 = vunpack.c.l.b16 %v3805
    %v4572 = vunpack.c.h.b16 %v3805
    %v4573 = vunpack.c.l.b16 %v3806
    %v4574 = vunpack.c.h.b16 %v3806
    %v4575 = vunpack.c.l.b16 %v3807
    %v4576 = vunpack.c.h.b16 %v3807
    %v4577 = vunpack.c.l.b16 %v3808
    %v4578 = vunpack.c.h.b16 %v3808
    %v4579 = vunpack.c.l.b16 %v3809
    %v4580 = vunpack.c.h.b16 %v3809
    %v4581 = vunpack.c.l.b16 %v3810
    %v4582 = vunpack.c.h.b16 %v3810
    %v4583 = vunpack.c.l.b16 %v3811
    %v4584 = vunpack.c.h.b16 %v3811
    %v4585 = vunpack.c.l.b16 %v3812
    %v4586 = vunpack.c.h.b16 %v3812
    %v4587 = vunpack.c.l.b16 %v3813
    %v4588 = vunpack.c.h.b16 %v3813
    %v4589 = vunpack.c.l.b16 %v3814
    %v4590 = vunpack.c.h.b16 %v3814
    %v4591 = vunpack.c.l.b16 %v3815
    %v4592 = vunpack.c.h.b16 %v3815
    %v4593 = vunpack.c.l.b16 %v3816
    %v4594 = vunpack.c.h.b16 %v3816
    %v4595 = vunpack.c.l.b16 %v3817
    %v4596 = vunpack.c.h.b16 %v3817
    %v4597 = vunpack.c.l.b16 %v3818
    %v4598 = vunpack.c.h.b16 %v3818
    %v4599 = vunpack.c.l.b16 %v3819
    %v4600 = vunpack.c.h.b16 %v3819
    %v4601 = vunpack.c.l.b16 %v3820
    %v4602 = vunpack.c.h.b16 %v3820
    %v4603 = vunpack.c.l.b16 %v3821
    %v4604 = vunpack.c.h.b16 %v3821
    %v4605 = vunpack.c.l.b16 %v3822
    %v4606 = vunpack.c.h.b16 %v3822
    %v4607 = vunpack.c.l.b16 %v3823
    %v4608 = vunpack.c.h.b16 %v3823
    %v4609 = vunpack.c.l.b16 %v3824
    %v4610 = vunpack.c.h.b16 %v3824
    %v4611 = vunpack.c.l.b16 %v3825
    %v4612 = vunpack.c.h.b16 %v3825
    %v4613 = vunpack.c.l.b16 %v3826
    %v4614 = vunpack.c.h.b16 %v3826
    %v4615 = vunpack.c.l.b16 %v3827
    %v4616 = vunpack.c.h.b16 %v3827
    %v4617 = vunpack.c.l.b16 %v3828
    %v4618 = vunpack.c.h.b16 %v3828
    %v4619 = vpack.c.b16 %v4111, %v4107
    %v4620 = vpack.c.b16 %v4112, %v4108
    %v4621 = vpack.c.b16 %v4113, %v4109
    %v4622 = vpack.c.b16 %v4114, %v4110
    %v4623 = vpack.c.b16 %v4119, %v4115
    %v4624 = vpack.c.b16 %v4120, %v4116
    %v4625 = vpack.c.b16 %v4121, %v4117
    %v4626 = vpack.c.b16 %v4122, %v4118
    %v4627 = vpack.c.b16 %v4127, %v4123
    %v4628 = vpack.c.b16 %v4128, %v4124
    %v4629 = vpack.c.b16 %v4129, %v4125
    %v4630 = vpack.c.b16 %v4130, %v4126
    %v4631 = vpack.c.b16 %v4135, %v4131
    %v4632 = vpack.c.b16 %v4136, %v4132
    %v4633 = vpack.c.b16 %v4137, %v4133
    %v4634 = vpack.c.b16 %v4138, %v4134
    %v4635 = vpack.c.b16 %v4143, %v4139
    %v4636 = vpack.c.b16 %v4144, %v4140
    %v4637 = vpack.c.b16 %v4145, %v4141
    %v4638 = vpack.c.b16 %v4146, %v4142
    %v4639 = vpack.c.b16 %v4151, %v4147
    %v4640 = vpack.c.b16 %v4152, %v4148
    %v4641 = vpack.c.b16 %v4153, %v4149
    %v4642 = vpack.c.b16 %v4154, %v4150
    %v4643 = vpack.c.b16 %v4159, %v4155
    %v4644 = vpack.c.b16 %v4160, %v4156
    %v4645 = vpack.c.b16 %v4161, %v4157
    %v4646 = vpack.c.b16 %v4162, %v4158
    %v4647 = vpack.c.b16 %v4167, %v4163
    %v4648 = vpack.c.b16 %v4168, %v4164
    %v4649 = vpack.c.b16 %v4169, %v4165
    %v4650 = vpack.c.b16 %v4170, %v4166
    %v4651 = vpack.c.b16 %v4175, %v4171
    %v4652 = vpack.c.b16 %v4176, %v4172
    %v4653 = vpack.c.b16 %v4177, %v4173
    %v4654 = vpack.c.b16 %v4178, %v4174
    %v4655 = vpack.c.b16 %v4183, %v4179
    %v4656 = vpack.c.b16 %v4184, %v4180
    %v4657 = vpack.c.b16 %v4185, %v4181
    %v4658 = vpack.c.b16 %v4186, %v4182
    %v4659 = vpack.c.b16 %v4191, %v4187
    %v4660 = vpack.c.b16 %v4192, %v4188
    %v4661 = vpack.c.b16 %v4193, %v4189
    %v4662 = vpack.c.b16 %v4194, %v4190
    %v4663 = vpack.c.b16 %v4199, %v4195
    %v4664 = vpack.c.b16 %v4200, %v4196
    %v4665 = vpack.c.b16 %v4201, %v4197
    %v4666 = vpack.c.b16 %v4202, %v4198
    %v4667 = vpack.c.b16 %v4207, %v4203
    %v4668 = vpack.c.b16 %v4208, %v4204
    %v4669 = vpack.c.b16 %v4209, %v4205
    %v4670 = vpack.c.b16 %v4210, %v4206
    %v4671 = vpack.c.b16 %v4215, %v4211
    %v4672 = vpack.c.b16 %v4216, %v4212
    %v4673 = vpack.c.b16 %v4217, %v4213
    %v4674 = vpack.c.b16 %v4218, %v4214
    %v4675 = vpack.c.b16 %v4223, %v4219
    %v4676 = vpack.c.b16 %v4224, %v4220
    %v4677 = vpack.c.b16 %v4225, %v4221
    %v4678 = vpack.c.b16 %v4226, %v4222
    %v4679 = vpack.c.b16 %v4231, %v4227
    %v4680 = vpack.c.b16 %v4232, %v4228
    %v4681 = vpack.c.b16 %v4233, %v4229
    %v4682 = vpack.c.b16 %v4234, %v4230
    %v4683 = vpack.c.b16 %v4239, %v4235
    %v4684 = vpack.c.b16 %v4240, %v4236
    %v4685 = vpack.c.b16 %v4241, %v4237
    %v4686 = vpack.c.b16 %v4242, %v4238
    %v4687 = vpack.c.b16 %v4247, %v4243
    %v4688 = vpack.c.b16 %v4248, %v4244
    %v4689 = vpack.c.b16 %v4249, %v4245
    %v4690 = vpack.c.b16 %v4250, %v4246
    %v4691 = vpack.c.b16 %v4255, %v4251
    %v4692 = vpack.c.b16 %v4256, %v4252
    %v4693 = vpack.c.b16 %v4257, %v4253
    %v4694 = vpack.c.b16 %v4258, %v4254
    %v4695 = vpack.c.b16 %v4263, %v4259
    %v4696 = vpack.c.b16 %v4264, %v4260
    %v4697 = vpack.c.b16 %v4265, %v4261
    %v4698 = vpack.c.b16 %v4266, %v4262
    %v4699 = vpack.c.b16 %v4271, %v4267
    %v4700 = vpack.c.b16 %v4272, %v4268
    %v4701 = vpack.c.b16 %v4273, %v4269
    %v4702 = vpack.c.b16 %v4274, %v4270
    %v4703 = vpack.c.b16 %v4279, %v4275
    %v4704 = vpack.c.b16 %v4280, %v4276
    %v4705 = vpack.c.b16 %v4281, %v4277
    %v4706 = vpack.c.b16 %v4282, %v4278
    %v4707 = vpack.c.b16 %v4287, %v4283
    %v4708 = vpack.c.b16 %v4288, %v4284
    %v4709 = vpack.c.b16 %v4289, %v4285
    %v4710 = vpack.c.b16 %v4290, %v4286
    %v4711 = vpack.c.b16 %v4295, %v4291
    %v4712 = vpack.c.b16 %v4296, %v4292
    %v4713 = vpack.c.b16 %v4297, %v4293
    %v4714 = vpack.c.b16 %v4298, %v4294
    %v4715 = vpack.c.b16 %v4303, %v4299
    %v4716 = vpack.c.b16 %v4304, %v4300
    %v4717 = vpack.c.b16 %v4305, %v4301
    %v4718 = vpack.c.b16 %v4306, %v4302
    %v4719 = vpack.c.b16 %v4311, %v4307
    %v4720 = vpack.c.b16 %v4312, %v4308
    %v4721 = vpack.c.b16 %v4313, %v4309
    %v4722 = vpack.c.b16 %v4314, %v4310
    %v4723 = vpack.c.b16 %v4319, %v4315
    %v4724 = vpack.c.b16 %v4320, %v4316
    %v4725 = vpack.c.b16 %v4321, %v4317
    %v4726 = vpack.c.b16 %v4322, %v4318
    %v4727 = vpack.c.b16 %v4327, %v4323
    %v4728 = vpack.c.b16 %v4328, %v4324
    %v4729 = vpack.c.b16 %v4329, %v4325
    %v4730 = vpack.c.b16 %v4330, %v4326
    %v4731 = vpack.c.b16 %v4335, %v4331
    %v4732 = vpack.c.b16 %v4336, %v4332
    %v4733 = vpack.c.b16 %v4337, %v4333
    %v4734 = vpack.c.b16 %v4338, %v4334
    %v4735 = vpack.c.b16 %v4343, %v4339
    %v4736 = vpack.c.b16 %v4344, %v4340
    %v4737 = vpack.c.b16 %v4345, %v4341
    %v4738 = vpack.c.b16 %v4346, %v4342
    %v4739 = vpack.c.b16 %v4351, %v4347
    %v4740 = vpack.c.b16 %v4352, %v4348
    %v4741 = vpack.c.b16 %v4353, %v4349
    %v4742 = vpack.c.b16 %v4354, %v4350
    %v4743 = vpack.c.b16 %v4359, %v4355
    %v4744 = vpack.c.b16 %v4360, %v4356
    %v4745 = vpack.c.b16 %v4361, %v4357
    %v4746 = vpack.c.b16 %v4362, %v4358
    %v4747 = vpack.c.b16 %v4367, %v4363
    %v4748 = vpack.c.b16 %v4368, %v4364
    %v4749 = vpack.c.b16 %v4369, %v4365
    %v4750 = vpack.c.b16 %v4370, %v4366
    %v4751 = vpack.c.b16 %v4375, %v4371
    %v4752 = vpack.c.b16 %v4376, %v4372
    %v4753 = vpack.c.b16 %v4377, %v4373
    %v4754 = vpack.c.b16 %v4378, %v4374
    %v4755 = vpack.c.b16 %v4383, %v4379
    %v4756 = vpack.c.b16 %v4384, %v4380
    %v4757 = vpack.c.b16 %v4385, %v4381
    %v4758 = vpack.c.b16 %v4386, %v4382
    %v4759 = vpack.c.b16 %v4391, %v4387
    %v4760 = vpack.c.b16 %v4392, %v4388
    %v4761 = vpack.c.b16 %v4393, %v4389
    %v4762 = vpack.c.b16 %v4394, %v4390
    %v4763 = vpack.c.b16 %v4399, %v4395
    %v4764 = vpack.c.b16 %v4400, %v4396
    %v4765 = vpack.c.b16 %v4401, %v4397
    %v4766 = vpack.c.b16 %v4402, %v4398
    %v4767 = vpack.c.b16 %v4407, %v4403
    %v4768 = vpack.c.b16 %v4408, %v4404
    %v4769 = vpack.c.b16 %v4409, %v4405
    %v4770 = vpack.c.b16 %v4410, %v4406
    %v4771 = vpack.c.b16 %v4415, %v4411
    %v4772 = vpack.c.b16 %v4416, %v4412
    %v4773 = vpack.c.b16 %v4417, %v4413
    %v4774 = vpack.c.b16 %v4418, %v4414
    %v4775 = vpack.c.b16 %v4423, %v4419
    %v4776 = vpack.c.b16 %v4424, %v4420
    %v4777 = vpack.c.b16 %v4425, %v4421
    %v4778 = vpack.c.b16 %v4426, %v4422
    %v4779 = vpack.c.b16 %v4431, %v4427
    %v4780 = vpack.c.b16 %v4432, %v4428
    %v4781 = vpack.c.b16 %v4433, %v4429
    %v4782 = vpack.c.b16 %v4434, %v4430
    %v4783 = vpack.c.b16 %v4439, %v4435
    %v4784 = vpack.c.b16 %v4440, %v4436
    %v4785 = vpack.c.b16 %v4441, %v4437
    %v4786 = vpack.c.b16 %v4442, %v4438
    %v4787 = vpack.c.b16 %v4447, %v4443
    %v4788 = vpack.c.b16 %v4448, %v4444
    %v4789 = vpack.c.b16 %v4449, %v4445
    %v4790 = vpack.c.b16 %v4450, %v4446
    %v4791 = vpack.c.b16 %v4455, %v4451
    %v4792 = vpack.c.b16 %v4456, %v4452
    %v4793 = vpack.c.b16 %v4457, %v4453
    %v4794 = vpack.c.b16 %v4458, %v4454
    %v4795 = vpack.c.b16 %v4463, %v4459
    %v4796 = vpack.c.b16 %v4464, %v4460
    %v4797 = vpack.c.b16 %v4465, %v4461
    %v4798 = vpack.c.b16 %v4466, %v4462
    %v4799 = vpack.c.b16 %v4471, %v4467
    %v4800 = vpack.c.b16 %v4472, %v4468
    %v4801 = vpack.c.b16 %v4473, %v4469
    %v4802 = vpack.c.b16 %v4474, %v4470
    %v4803 = vpack.c.b16 %v4479, %v4475
    %v4804 = vpack.c.b16 %v4480, %v4476
    %v4805 = vpack.c.b16 %v4481, %v4477
    %v4806 = vpack.c.b16 %v4482, %v4478
    %v4807 = vpack.c.b16 %v4487, %v4483
    %v4808 = vpack.c.b16 %v4488, %v4484
    %v4809 = vpack.c.b16 %v4489, %v4485
    %v4810 = vpack.c.b16 %v4490, %v4486
    %v4811 = vpack.c.b16 %v4495, %v4491
    %v4812 = vpack.c.b16 %v4496, %v4492
    %v4813 = vpack.c.b16 %v4497, %v4493
    %v4814 = vpack.c.b16 %v4498, %v4494
    %v4815 = vpack.c.b16 %v4503, %v4499
    %v4816 = vpack.c.b16 %v4504, %v4500
    %v4817 = vpack.c.b16 %v4505, %v4501
    %v4818 = vpack.c.b16 %v4506, %v4502
    %v4819 = vpack.c.b16 %v4511, %v4507
    %v4820 = vpack.c.b16 %v4512, %v4508
    %v4821 = vpack.c.b16 %v4513, %v4509
    %v4822 = vpack.c.b16 %v4514, %v4510
    %v4823 = vpack.c.b16 %v4519, %v4515
    %v4824 = vpack.c.b16 %v4520, %v4516
    %v4825 = vpack.c.b16 %v4521, %v4517
    %v4826 = vpack.c.b16 %v4522, %v4518
    %v4827 = vpack.c.b16 %v4527, %v4523
    %v4828 = vpack.c.b16 %v4528, %v4524
    %v4829 = vpack.c.b16 %v4529, %v4525
    %v4830 = vpack.c.b16 %v4530, %v4526
    %v4831 = vpack.c.b16 %v4535, %v4531
    %v4832 = vpack.c.b16 %v4536, %v4532
    %v4833 = vpack.c.b16 %v4537, %v4533
    %v4834 = vpack.c.b16 %v4538, %v4534
    %v4835 = vpack.c.b16 %v4543, %v4539
    %v4836 = vpack.c.b16 %v4544, %v4540
    %v4837 = vpack.c.b16 %v4545, %v4541
    %v4838 = vpack.c.b16 %v4546, %v4542
    %v4839 = vpack.c.b16 %v4551, %v4547
    %v4840 = vpack.c.b16 %v4552, %v4548
    %v4841 = vpack.c.b16 %v4553, %v4549
    %v4842 = vpack.c.b16 %v4554, %v4550
    %v4843 = vpack.c.b16 %v4559, %v4555
    %v4844 = vpack.c.b16 %v4560, %v4556
    %v4845 = vpack.c.b16 %v4561, %v4557
    %v4846 = vpack.c.b16 %v4562, %v4558
    %v4847 = vpack.c.b16 %v4567, %v4563
    %v4848 = vpack.c.b16 %v4568, %v4564
    %v4849 = vpack.c.b16 %v4569, %v4565
    %v4850 = vpack.c.b16 %v4570, %v4566
    %v4851 = vpack.c.b16 %v4575, %v4571
    %v4852 = vpack.c.b16 %v4576, %v4572
    %v4853 = vpack.c.b16 %v4577, %v4573
    %v4854 = vpack.c.b16 %v4578, %v4574
    %v4855 = vpack.c.b16 %v4583, %v4579
    %v4856 = vpack.c.b16 %v4584, %v4580
    %v4857 = vpack.c.b16 %v4585, %v4581
    %v4858 = vpack.c.b16 %v4586, %v4582
    %v4859 = vpack.c.b16 %v4591, %v4587
    %v4860 = vpack.c.b16 %v4592, %v4588
    %v4861 = vpack.c.b16 %v4593, %v4589
    %v4862 = vpack.c.b16 %v4594, %v4590
    %v4863 = vpack.c.b16 %v4599, %v4595
    %v4864 = vpack.c.b16 %v4600, %v4596
    %v4865 = vpack.c.b16 %v4601, %v4597
    %v4866 = vpack.c.b16 %v4602, %v4598
    %v4867 = vpack.c.b16 %v4607, %v4603
    %v4868 = vpack.c.b16 %v4608, %v4604
    %v4869 = vpack.c.b16 %v4609, %v4605
    %v4870 = vpack.c.b16 %v4610, %v4606
    %v4871 = vpack.c.b16 %v4615, %v4611
    %v4872 = vpack.c.b16 %v4616, %v4612
    %v4873 = vpack.c.b16 %v4617, %v4613
    %v4874 = vpack.c.b16 %v4618, %v4614
    %5131 = vmatprep.subr.bf16.mxu0 %v4620
    %5132 = vmatpush1.bf16.msra.mxu0 %v4619
    %5133 = vmatprep.subr.bf16.mxu0 %v4624
    %5134 = vmatpush1.bf16.msra.mxu0 %v4623
    %5135 = vmatprep.subr.bf16.mxu0 %v4628
    %5136 = vmatpush1.bf16.msra.mxu0 %v4627
    %5137 = vmatprep.subr.bf16.mxu0 %v4632
    %5138 = vmatpush1.bf16.msra.mxu0 %v4631
    %5139 = vmatprep.subr.bf16.mxu0 %v4636
    %5140 = vmatpush1.bf16.msra.mxu0 %v4635
    %5141 = vmatprep.subr.bf16.mxu0 %v4640
    %5142 = vmatpush1.bf16.msra.mxu0 %v4639
    %5143 = vmatprep.subr.bf16.mxu0 %v4644
    %5144 = vmatpush1.bf16.msra.mxu0 %v4643
    %5145 = vmatprep.subr.bf16.mxu0 %v4648
    %5146 = vmatpush1.bf16.msra.mxu0 %v4647
    %5147 = vmatprep.subr.bf16.mxu0 %v4652
    %5148 = vmatpush1.bf16.msra.mxu0 %v4651
    %5149 = vmatprep.subr.bf16.mxu0 %v4656
    %5150 = vmatpush1.bf16.msra.mxu0 %v4655
    %5151 = vmatprep.subr.bf16.mxu0 %v4660
    %5152 = vmatpush1.bf16.msra.mxu0 %v4659
    %5153 = vmatprep.subr.bf16.mxu0 %v4664
    %5154 = vmatpush1.bf16.msra.mxu0 %v4663
    %5155 = vmatprep.subr.bf16.mxu0 %v4668
    %5156 = vmatpush1.bf16.msra.mxu0 %v4667
    %5157 = vmatprep.subr.bf16.mxu0 %v4672
    %5158 = vmatpush1.bf16.msra.mxu0 %v4671
    %5159 = vmatprep.subr.bf16.mxu0 %v4676
    %5160 = vmatpush1.bf16.msra.mxu0 %v4675
    %5161 = vmatprep.subr.bf16.mxu0 %v4680
    %5162 = vmatpush1.bf16.msra.mxu0 %v4679
    %5163 = vmatprep.mubr.bf16.mxu0 %v3566
    %5164 = vmatmul.mubr.bf16.gmra.mrb[0].mxu0 %v3565
    %v5165 = vpop.f32.mrb[0].mxu0
    %v5166 = vadd.f32 %v3834, %v5165
    %v5167 = vpop.f32.mrb[0].mxu0
    %v5168 = vadd.f32 %v3838, %v5167
    %v5169 = vpop.f32.mrb[0].mxu0
    %v5170 = vadd.f32 %v3834, %v5169
    %v5171 = vpop.f32.mrb[0].mxu0
    %v5172 = vadd.f32 %v3838, %v5171
    %5173 = vdwg.mxu0
    %5174 = vmatprep.subr.bf16.mxu0 %v4684
    %5175 = vmatpush1.bf16.msra.mxu0 %v4683
    %5176 = vmatprep.subr.bf16.mxu0 %v4688
    %5177 = vmatpush1.bf16.msra.mxu0 %v4687
    %5178 = vmatprep.subr.bf16.mxu0 %v4692
    %5179 = vmatpush1.bf16.msra.mxu0 %v4691
    %5180 = vmatprep.subr.bf16.mxu0 %v4696
    %5181 = vmatpush1.bf16.msra.mxu0 %v4695
    %5182 = vmatprep.subr.bf16.mxu0 %v4700
    %5183 = vmatpush1.bf16.msra.mxu0 %v4699
    %5184 = vmatprep.subr.bf16.mxu0 %v4704
    %5185 = vmatpush1.bf16.msra.mxu0 %v4703
    %5186 = vmatprep.subr.bf16.mxu0 %v4708
    %5187 = vmatpush1.bf16.msra.mxu0 %v4707
    %5188 = vmatprep.subr.bf16.mxu0 %v4712
    %5189 = vmatpush1.bf16.msra.mxu0 %v4711
    %5190 = vmatprep.subr.bf16.mxu0 %v4716
    %5191 = vmatpush1.bf16.msra.mxu0 %v4715
    %5192 = vmatprep.subr.bf16.mxu0 %v4720
    %5193 = vmatpush1.bf16.msra.mxu0 %v4719
    %5194 = vmatprep.subr.bf16.mxu0 %v4724
    %5195 = vmatpush1.bf16.msra.mxu0 %v4723
    %5196 = vmatprep.subr.bf16.mxu0 %v4728
    %5197 = vmatpush1.bf16.msra.mxu0 %v4727
    %5198 = vmatprep.subr.bf16.mxu0 %v4732
    %5199 = vmatpush1.bf16.msra.mxu0 %v4731
    %5200 = vmatprep.subr.bf16.mxu0 %v4736
    %5201 = vmatpush1.bf16.msra.mxu0 %v4735
    %5202 = vmatprep.subr.bf16.mxu0 %v4740
    %5203 = vmatpush1.bf16.msra.mxu0 %v4739
    %5204 = vmatprep.subr.bf16.mxu0 %v4744
    %5205 = vmatpush1.bf16.msra.mxu0 %v4743
    %5206 = vmatprep.mubr.bf16.mxu0 %v3568
    %5207 = vmatmul.mubr.bf16.gmra.mrb[0].mxu0 %v3567
    %v5208 = vpop.f32.mrb[0].mxu0
    %v5209 = vadd.f32 %v5166, %v5208
    %v5210 = vpop.f32.mrb[0].mxu0
    %v5211 = vadd.f32 %v5168, %v5210
    %v5212 = vpop.f32.mrb[0].mxu0
    %v5213 = vadd.f32 %v5170, %v5212
    %v5214 = vpop.f32.mrb[0].mxu0
    %v5215 = vadd.f32 %v5172, %v5214
    %5216 = vdwg.mxu0
    %5217 = vmatprep.subr.bf16.mxu0 %v4748
    %5218 = vmatpush1.bf16.msra.mxu0 %v4747
    %5219 = vmatprep.subr.bf16.mxu0 %v4752
    %5220 = vmatpush1.bf16.msra.mxu0 %v4751
    %5221 = vmatprep.subr.bf16.mxu0 %v4756
    %5222 = vmatpush1.bf16.msra.mxu0 %v4755
    %5223 = vmatprep.subr.bf16.mxu0 %v4760
    %5224 = vmatpush1.bf16.msra.mxu0 %v4759
    %5225 = vmatprep.subr.bf16.mxu0 %v4764
    %5226 = vmatpush1.bf16.msra.mxu0 %v4763
    %5227 = vmatprep.subr.bf16.mxu0 %v4768
    %5228 = vmatpush1.bf16.msra.mxu0 %v4767
    %5229 = vmatprep.subr.bf16.mxu0 %v4772
    %5230 = vmatpush1.bf16.msra.mxu0 %v4771
    %5231 = vmatprep.subr.bf16.mxu0 %v4776
    %5232 = vmatpush1.bf16.msra.mxu0 %v4775
    %5233 = vmatprep.subr.bf16.mxu0 %v4780
    %5234 = vmatpush1.bf16.msra.mxu0 %v4779
    %5235 = vmatprep.subr.bf16.mxu0 %v4784
    %5236 = vmatpush1.bf16.msra.mxu0 %v4783
    %5237 = vmatprep.subr.bf16.mxu0 %v4788
    %5238 = vmatpush1.bf16.msra.mxu0 %v4787
    %5239 = vmatprep.subr.bf16.mxu0 %v4792
    %5240 = vmatpush1.bf16.msra.mxu0 %v4791
    %5241 = vmatprep.subr.bf16.mxu0 %v4796
    %5242 = vmatpush1.bf16.msra.mxu0 %v4795
    %5243 = vmatprep.subr.bf16.mxu0 %v4800
    %5244 = vmatpush1.bf16.msra.mxu0 %v4799
    %5245 = vmatprep.subr.bf16.mxu0 %v4804
    %5246 = vmatpush1.bf16.msra.mxu0 %v4803
    %5247 = vmatprep.subr.bf16.mxu0 %v4808
    %5248 = vmatpush1.bf16.msra.mxu0 %v4807
    %5249 = vmatprep.mubr.bf16.mxu0 %v3570
    %5250 = vmatmul.mubr.bf16.gmra.mrb[0].mxu0 %v3569
    %v5251 = vpop.f32.mrb[0].mxu0
    %v5252 = vadd.f32 %v5209, %v5251
    %v5253 = vpop.f32.mrb[0].mxu0
    %v5254 = vadd.f32 %v5211, %v5253
    %v5255 = vpop.f32.mrb[0].mxu0
    %v5256 = vadd.f32 %v5213, %v5255
    %v5257 = vpop.f32.mrb[0].mxu0
    %v5258 = vadd.f32 %v5215, %v5257
    %5259 = vdwg.mxu0
    %5260 = vmatprep.subr.bf16.mxu0 %v4812
    %5261 = vmatpush1.bf16.msra.mxu0 %v4811
    %5262 = vmatprep.subr.bf16.mxu0 %v4816
    %5263 = vmatpush1.bf16.msra.mxu0 %v4815
    %5264 = vmatprep.subr.bf16.mxu0 %v4820
    %5265 = vmatpush1.bf16.msra.mxu0 %v4819
    %5266 = vmatprep.subr.bf16.mxu0 %v4824
    %5267 = vmatpush1.bf16.msra.mxu0 %v4823
    %5268 = vmatprep.subr.bf16.mxu0 %v4828
    %5269 = vmatpush1.bf16.msra.mxu0 %v4827
    %5270 = vmatprep.subr.bf16.mxu0 %v4832
    %5271 = vmatpush1.bf16.msra.mxu0 %v4831
    %5272 = vmatprep.subr.bf16.mxu0 %v4836
    %5273 = vmatpush1.bf16.msra.mxu0 %v4835
    %5274 = vmatprep.subr.bf16.mxu0 %v4840
    %5275 = vmatpush1.bf16.msra.mxu0 %v4839
    %5276 = vmatprep.subr.bf16.mxu0 %v4844
    %5277 = vmatpush1.bf16.msra.mxu0 %v4843
    %5278 = vmatprep.subr.bf16.mxu0 %v4848
    %5279 = vmatpush1.bf16.msra.mxu0 %v4847
    %5280 = vmatprep.subr.bf16.mxu0 %v4852
    %5281 = vmatpush1.bf16.msra.mxu0 %v4851
    %5282 = vmatprep.subr.bf16.mxu0 %v4856
    %5283 = vmatpush1.bf16.msra.mxu0 %v4855
    %5284 = vmatprep.subr.bf16.mxu0 %v4860
    %5285 = vmatpush1.bf16.msra.mxu0 %v4859
    %5286 = vmatprep.subr.bf16.mxu0 %v4864
    %5287 = vmatpush1.bf16.msra.mxu0 %v4863
    %5288 = vmatprep.subr.bf16.mxu0 %v4868
    %5289 = vmatpush1.bf16.msra.mxu0 %v4867
    %5290 = vmatprep.subr.bf16.mxu0 %v4872
    %5291 = vmatpush1.bf16.msra.mxu0 %v4871
    %5292 = vmatprep.mubr.bf16.mxu0 %v3572
    %5293 = vmatmul.mubr.bf16.gmra.mrb[0].mxu0 %v3571
    %v5294 = vpop.f32.mrb[0].mxu0
    %v5295 = vadd.f32 %v5252, %v5294
    %v5296 = vpop.f32.mrb[0].mxu0
    %v5297 = vadd.f32 %v5254, %v5296
    %v5298 = vpop.f32.mrb[0].mxu0
    %v5299 = vadd.f32 %v5256, %v5298
    %v5300 = vpop.f32.mrb[0].mxu0
    %v5301 = vadd.f32 %v5258, %v5300
    %5302 = vdwg.mxu0
    %5303 = vmatprep.subr.bf16.mxu0 %v4622
    %5304 = vmatpush1.bf16.msra.mxu0 %v4621
    %5305 = vmatprep.subr.bf16.mxu0 %v4626
    %5306 = vmatpush1.bf16.msra.mxu0 %v4625
    %5307 = vmatprep.subr.bf16.mxu0 %v4630
    %5308 = vmatpush1.bf16.msra.mxu0 %v4629
    %5309 = vmatprep.subr.bf16.mxu0 %v4634
    %5310 = vmatpush1.bf16.msra.mxu0 %v4633
    %5311 = vmatprep.subr.bf16.mxu0 %v4638
    %5312 = vmatpush1.bf16.msra.mxu0 %v4637
    %5313 = vmatprep.subr.bf16.mxu0 %v4642
    %5314 = vmatpush1.bf16.msra.mxu0 %v4641
    %5315 = vmatprep.subr.bf16.mxu0 %v4646
    %5316 = vmatpush1.bf16.msra.mxu0 %v4645
    %5317 = vmatprep.subr.bf16.mxu0 %v4650
    %5318 = vmatpush1.bf16.msra.mxu0 %v4649
    %5319 = vmatprep.subr.bf16.mxu0 %v4654
    %5320 = vmatpush1.bf16.msra.mxu0 %v4653
    %5321 = vmatprep.subr.bf16.mxu0 %v4658
    %5322 = vmatpush1.bf16.msra.mxu0 %v4657
    %5323 = vmatprep.subr.bf16.mxu0 %v4662
    %5324 = vmatpush1.bf16.msra.mxu0 %v4661
    %5325 = vmatprep.subr.bf16.mxu0 %v4666
    %5326 = vmatpush1.bf16.msra.mxu0 %v4665
    %5327 = vmatprep.subr.bf16.mxu0 %v4670
    %5328 = vmatpush1.bf16.msra.mxu0 %v4669
    %5329 = vmatprep.subr.bf16.mxu0 %v4674
    %5330 = vmatpush1.bf16.msra.mxu0 %v4673
    %5331 = vmatprep.subr.bf16.mxu0 %v4678
    %5332 = vmatpush1.bf16.msra.mxu0 %v4677
    %5333 = vmatprep.subr.bf16.mxu0 %v4682
    %5334 = vmatpush1.bf16.msra.mxu0 %v4681
    %5335 = vmatprep.mubr.bf16.mxu0 %v3566
    %5336 = vmatmul.mubr.bf16.gmra.mrb[0].mxu0 %v3565
    %v5337 = vpop.f32.mrb[0].mxu0
    %v5338 = vadd.f32 %v3842, %v5337
    %v5339 = vpop.f32.mrb[0].mxu0
    %v5340 = vadd.f32 %v3846, %v5339
    %v5341 = vpop.f32.mrb[0].mxu0
    %v5342 = vadd.f32 %v3842, %v5341
    %v5343 = vpop.f32.mrb[0].mxu0
    %v5344 = vadd.f32 %v3846, %v5343
    %5345 = vdwg.mxu0
    %5346 = vmatprep.subr.bf16.mxu0 %v4686
    %5347 = vmatpush1.bf16.msra.mxu0 %v4685
    %5348 = vmatprep.subr.bf16.mxu0 %v4690
    %5349 = vmatpush1.bf16.msra.mxu0 %v4689
    %5350 = vmatprep.subr.bf16.mxu0 %v4694
    %5351 = vmatpush1.bf16.msra.mxu0 %v4693
    %5352 = vmatprep.subr.bf16.mxu0 %v4698
    %5353 = vmatpush1.bf16.msra.mxu0 %v4697
    %5354 = vmatprep.subr.bf16.mxu0 %v4702
    %5355 = vmatpush1.bf16.msra.mxu0 %v4701
    %5356 = vmatprep.subr.bf16.mxu0 %v4706
    %5357 = vmatpush1.bf16.msra.mxu0 %v4705
    %5358 = vmatprep.subr.bf16.mxu0 %v4710
    %5359 = vmatpush1.bf16.msra.mxu0 %v4709
    %5360 = vmatprep.subr.bf16.mxu0 %v4714
    %5361 = vmatpush1.bf16.msra.mxu0 %v4713
    %5362 = vmatprep.subr.bf16.mxu0 %v4718
    %5363 = vmatpush1.bf16.msra.mxu0 %v4717
    %5364 = vmatprep.subr.bf16.mxu0 %v4722
    %5365 = vmatpush1.bf16.msra.mxu0 %v4721
    %5366 = vmatprep.subr.bf16.mxu0 %v4726
    %5367 = vmatpush1.bf16.msra.mxu0 %v4725
    %5368 = vmatprep.subr.bf16.mxu0 %v4730
    %5369 = vmatpush1.bf16.msra.mxu0 %v4729
    %5370 = vmatprep.subr.bf16.mxu0 %v4734
    %5371 = vmatpush1.bf16.msra.mxu0 %v4733
    %5372 = vmatprep.subr.bf16.mxu0 %v4738
    %5373 = vmatpush1.bf16.msra.mxu0 %v4737
    %5374 = vmatprep.subr.bf16.mxu0 %v4742
    %5375 = vmatpush1.bf16.msra.mxu0 %v4741
    %5376 = vmatprep.subr.bf16.mxu0 %v4746
    %5377 = vmatpush1.bf16.msra.mxu0 %v4745
    %5378 = vmatprep.mubr.bf16.mxu0 %v3568
    %5379 = vmatmul.mubr.bf16.gmra.mrb[0].mxu0 %v3567
    %v5380 = vpop.f32.mrb[0].mxu0
    %v5381 = vadd.f32 %v5338, %v5380
    %v5382 = vpop.f32.mrb[0].mxu0
    %v5383 = vadd.f32 %v5340, %v5382
    %v5384 = vpop.f32.mrb[0].mxu0
    %v5385 = vadd.f32 %v5342, %v5384
    %v5386 = vpop.f32.mrb[0].mxu0
    %v5387 = vadd.f32 %v5344, %v5386
    %5388 = vdwg.mxu0
    %5389 = vmatprep.subr.bf16.mxu0 %v4750
    %5390 = vmatpush1.bf16.msra.mxu0 %v4749
    %5391 = vmatprep.subr.bf16.mxu0 %v4754
    %5392 = vmatpush1.bf16.msra.mxu0 %v4753
    %5393 = vmatprep.subr.bf16.mxu0 %v4758
    %5394 = vmatpush1.bf16.msra.mxu0 %v4757
    %5395 = vmatprep.subr.bf16.mxu0 %v4762
    %5396 = vmatpush1.bf16.msra.mxu0 %v4761
    %5397 = vmatprep.subr.bf16.mxu0 %v4766
    %5398 = vmatpush1.bf16.msra.mxu0 %v4765
    %5399 = vmatprep.subr.bf16.mxu0 %v4770
    %5400 = vmatpush1.bf16.msra.mxu0 %v4769
    %5401 = vmatprep.subr.bf16.mxu0 %v4774
    %5402 = vmatpush1.bf16.msra.mxu0 %v4773
    %5403 = vmatprep.subr.bf16.mxu0 %v4778
    %5404 = vmatpush1.bf16.msra.mxu0 %v4777
    %5405 = vmatprep.subr.bf16.mxu0 %v4782
    %5406 = vmatpush1.bf16.msra.mxu0 %v4781
    %5407 = vmatprep.subr.bf16.mxu0 %v4786
    %5408 = vmatpush1.bf16.msra.mxu0 %v4785
    %5409 = vmatprep.subr.bf16.mxu0 %v4790
    %5410 = vmatpush1.bf16.msra.mxu0 %v4789
    %5411 = vmatprep.subr.bf16.mxu0 %v4794
    %5412 = vmatpush1.bf16.msra.mxu0 %v4793
    %5413 = vmatprep.subr.bf16.mxu0 %v4798
    %5414 = vmatpush1.bf16.msra.mxu0 %v4797
    %5415 = vmatprep.subr.bf16.mxu0 %v4802
    %5416 = vmatpush1.bf16.msra.mxu0 %v4801
    %5417 = vmatprep.subr.bf16.mxu0 %v4806
    %5418 = vmatpush1.bf16.msra.mxu0 %v4805
    %5419 = vmatprep.subr.bf16.mxu0 %v4810
    %5420 = vmatpush1.bf16.msra.mxu0 %v4809
    %5421 = vmatprep.mubr.bf16.mxu0 %v3570
    %5422 = vmatmul.mubr.bf16.gmra.mrb[0].mxu0 %v3569
    %v5423 = vpop.f32.mrb[0].mxu0
    %v5424 = vadd.f32 %v5381, %v5423
    %v5425 = vpop.f32.mrb[0].mxu0
    %v5426 = vadd.f32 %v5383, %v5425
    %v5427 = vpop.f32.mrb[0].mxu0
    %v5428 = vadd.f32 %v5385, %v5427
    %v5429 = vpop.f32.mrb[0].mxu0
    %v5430 = vadd.f32 %v5387, %v5429
    %5431 = vdwg.mxu0
    %5432 = vmatprep.subr.bf16.mxu0 %v4814
    %5433 = vmatpush1.bf16.msra.mxu0 %v4813
    %5434 = vmatprep.subr.bf16.mxu0 %v4818
    %5435 = vmatpush1.bf16.msra.mxu0 %v4817
    %5436 = vmatprep.subr.bf16.mxu0 %v4822
    %5437 = vmatpush1.bf16.msra.mxu0 %v4821
    %5438 = vmatprep.subr.bf16.mxu0 %v4826
    %5439 = vmatpush1.bf16.msra.mxu0 %v4825
    %5440 = vmatprep.subr.bf16.mxu0 %v4830
    %5441 = vmatpush1.bf16.msra.mxu0 %v4829
    %5442 = vmatprep.subr.bf16.mxu0 %v4834
    %5443 = vmatpush1.bf16.msra.mxu0 %v4833
    %5444 = vmatprep.subr.bf16.mxu0 %v4838
    %5445 = vmatpush1.bf16.msra.mxu0 %v4837
    %5446 = vmatprep.subr.bf16.mxu0 %v4842
    %5447 = vmatpush1.bf16.msra.mxu0 %v4841
    %5448 = vmatprep.subr.bf16.mxu0 %v4846
    %5449 = vmatpush1.bf16.msra.mxu0 %v4845
    %5450 = vmatprep.subr.bf16.mxu0 %v4850
    %5451 = vmatpush1.bf16.msra.mxu0 %v4849
    %5452 = vmatprep.subr.bf16.mxu0 %v4854
    %5453 = vmatpush1.bf16.msra.mxu0 %v4853
    %5454 = vmatprep.subr.bf16.mxu0 %v4858
    %5455 = vmatpush1.bf16.msra.mxu0 %v4857
    %5456 = vmatprep.subr.bf16.mxu0 %v4862
    %5457 = vmatpush1.bf16.msra.mxu0 %v4861
    %5458 = vmatprep.subr.bf16.mxu0 %v4866
    %5459 = vmatpush1.bf16.msra.mxu0 %v4865
    %5460 = vmatprep.subr.bf16.mxu0 %v4870
    %5461 = vmatpush1.bf16.msra.mxu0 %v4869
    %5462 = vmatprep.subr.bf16.mxu0 %v4874
    %5463 = vmatpush1.bf16.msra.mxu0 %v4873
    %5464 = vmatprep.mubr.bf16.mxu0 %v3572
    %5465 = vmatmul.mubr.bf16.gmra.mrb[0].mxu0 %v3571
    %v5466 = vpop.f32.mrb[0].mxu0
    %v5467 = vadd.f32 %v5424, %v5466
    %v5468 = vpop.f32.mrb[0].mxu0
    %v5469 = vadd.f32 %v5426, %v5468
    %v5470 = vpop.f32.mrb[0].mxu0
    %v5471 = vadd.f32 %v5428, %v5470
    %v5472 = vpop.f32.mrb[0].mxu0
    %v5473 = vadd.f32 %v5430, %v5472
    %5474 = vdwg.mxu0
    %v5475 = vmul.f32 %v5295, 0.2
    %v5476 = vmul.f32 %v5297, 0.2
    %v5477 = vmul.f32 %v5467, 0.2
    %v5478 = vmul.f32 %v5469, 0.2
    %v5479 = vmul.f32 %v5299, 0.2
    %v5480 = vmul.f32 %v5301, 0.2
    %v5481 = vmul.f32 %v5471, 0.2
    %v5482 = vmul.f32 %v5473, 0.2
    %v5483 = vmax.f32 %v5295, %v5475
    %v5484 = vmax.f32 %v5297, %v5476
    %v5485 = vmax.f32 %v5467, %v5477
    %v5486 = vmax.f32 %v5469, %v5478
    %v5487 = vmax.f32 %v5299, %v5479
    %v5488 = vmax.f32 %v5301, %v5480
    %v5489 = vmax.f32 %v5471, %v5481
    %v5490 = vmax.f32 %v5473, %v5482
    %v5491 = vpack.c.bf16 %v5487, %v5483
    %v5492 = vpack.c.bf16 %v5488, %v5484
    %v5493 = vpack.c.bf16 %v5489, %v5485
    %v5494 = vpack.c.bf16 %v5490, %v5486
    %v5495 = vld [vmem:[#allocation10] sm:$0xff]
    %v5496 = vld [vmem:[#allocation10 + $0x8] sm:$0xff]
    %v5497 = vld [vmem:[#allocation10 + $0x10] sm:$0xff]
    %v5498 = vld [vmem:[#allocation10 + $0x18] sm:$0xff]
    %v5499 = vld [vmem:[#allocation10 + $0x20] sm:$0xff]
    %v5500 = vld [vmem:[#allocation10 + $0x28] sm:$0xff]
    %v5501 = vld [vmem:[#allocation10 + $0x30] sm:$0xff]
    %v5502 = vld [vmem:[#allocation10 + $0x38] sm:$0xff]
    %v5503 = vld [vmem:[#allocation10 + $0x40] sm:$0xff]
    %v5504 = vld [vmem:[#allocation10 + $0x48] sm:$0xff]
    %v5505 = vld [vmem:[#allocation10 + $0x50] sm:$0xff]
    %v5506 = vld [vmem:[#allocation10 + $0x58] sm:$0xff]
    %v5507 = vld [vmem:[#allocation10 + $0x60] sm:$0xff]
    %v5508 = vld [vmem:[#allocation10 + $0x68] sm:$0xff]
    %v5509 = vld [vmem:[#allocation10 + $0x70] sm:$0xff]
    %v5510 = vld [vmem:[#allocation10 + $0x78] sm:$0xff]
    %v5511 = vld [vmem:[#allocation10 + $0x80] sm:$0xff]
    %v5512 = vld [vmem:[#allocation10 + $0x88] sm:$0xff]
    %v5513 = vld [vmem:[#allocation10 + $0x90] sm:$0xff]
    %v5514 = vld [vmem:[#allocation10 + $0x98] sm:$0xff]
    %v5515 = vld [vmem:[#allocation10 + $0xa0] sm:$0xff]
    %v5516 = vld [vmem:[#allocation10 + $0xa8] sm:$0xff]
    %v5517 = vld [vmem:[#allocation10 + $0xb0] sm:$0xff]
    %v5518 = vld [vmem:[#allocation10 + $0xb8] sm:$0xff]
    %v5519 = vld [vmem:[#allocation10 + $0xc0] sm:$0xff]
    %v5520 = vld [vmem:[#allocation10 + $0xc8] sm:$0xff]
    %v5521 = vld [vmem:[#allocation10 + $0xd0] sm:$0xff]
    %v5522 = vld [vmem:[#allocation10 + $0xd8] sm:$0xff]
    %v5523 = vld [vmem:[#allocation10 + $0xe0] sm:$0xff]
    %v5524 = vld [vmem:[#allocation10 + $0xe8] sm:$0xff]
    %v5525 = vld [vmem:[#allocation10 + $0xf0] sm:$0xff]
    %v5526 = vld [vmem:[#allocation10 + $0xf8] sm:$0xff]
    %v5527 = vld [vmem:[#allocation10 + $0x100] sm:$0xff]
    %v5528 = vld [vmem:[#allocation10 + $0x108] sm:$0xff]
    %v5529 = vld [vmem:[#allocation10 + $0x110] sm:$0xff]
    %v5530 = vld [vmem:[#allocation10 + $0x118] sm:$0xff]
    %v5531 = vld [vmem:[#allocation10 + $0x120] sm:$0xff]
    %v5532 = vld [vmem:[#allocation10 + $0x128] sm:$0xff]
    %v5533 = vld [vmem:[#allocation10 + $0x130] sm:$0xff]
    %v5534 = vld [vmem:[#allocation10 + $0x138] sm:$0xff]
    %v5535 = vld [vmem:[#allocation10 + $0x140] sm:$0xff]
    %v5536 = vld [vmem:[#allocation10 + $0x148] sm:$0xff]
    %v5537 = vld [vmem:[#allocation10 + $0x150] sm:$0xff]
    %v5538 = vld [vmem:[#allocation10 + $0x158] sm:$0xff]
    %v5539 = vld [vmem:[#allocation10 + $0x160] sm:$0xff]
    %v5540 = vld [vmem:[#allocation10 + $0x168] sm:$0xff]
    %v5541 = vld [vmem:[#allocation10 + $0x170] sm:$0xff]
    %v5542 = vld [vmem:[#allocation10 + $0x178] sm:$0xff]
    %v5543 = vld [vmem:[#allocation10 + $0x180] sm:$0xff]
    %v5544 = vld [vmem:[#allocation10 + $0x188] sm:$0xff]
    %v5545 = vld [vmem:[#allocation10 + $0x190] sm:$0xff]
    %v5546 = vld [vmem:[#allocation10 + $0x198] sm:$0xff]
    %v5547 = vld [vmem:[#allocation10 + $0x1a0] sm:$0xff]
    %v5548 = vld [vmem:[#allocation10 + $0x1a8] sm:$0xff]
    %v5549 = vld [vmem:[#allocation10 + $0x1b0] sm:$0xff]
    %v5550 = vld [vmem:[#allocation10 + $0x1b8] sm:$0xff]
    %v5551 = vld [vmem:[#allocation10 + $0x1c0] sm:$0xff]
    %v5552 = vld [vmem:[#allocation10 + $0x1c8] sm:$0xff]
    %v5553 = vld [vmem:[#allocation10 + $0x1d0] sm:$0xff]
    %v5554 = vld [vmem:[#allocation10 + $0x1d8] sm:$0xff]
    %v5555 = vld [vmem:[#allocation10 + $0x1e0] sm:$0xff]
    %v5556 = vld [vmem:[#allocation10 + $0x1e8] sm:$0xff]
    %v5557 = vld [vmem:[#allocation10 + $0x1f0] sm:$0xff]
    %v5558 = vld [vmem:[#allocation10 + $0x1f8] sm:$0xff]
    %v5559 = vld [vmem:[#allocation12] sm:$0x3]
    %v5561 = vlaneseq
    %v5562 = vshrl.u32 %v5561, 7
    %v5563 = vsub.s32 0, %v5562
    %v5564 = vrot.slane %v5559, %v5563
    %v5565 = vlaneseq
    %v5566 = vshrl.u32 %v5565, 7
    %v5567 = vsub.s32 1, %v5566
    %v5568 = vrot.slane %v5559, %v5567
    %v5635 = vunpack.c.l.b16 %v5495
    %v5636 = vunpack.c.h.b16 %v5495
    %v5637 = vunpack.c.l.b16 %v5496
    %v5638 = vunpack.c.h.b16 %v5496
    %v5639 = vunpack.c.l.b16 %v5497
    %v5640 = vunpack.c.h.b16 %v5497
    %v5641 = vunpack.c.l.b16 %v5498
    %v5642 = vunpack.c.h.b16 %v5498
    %v5643 = vunpack.c.l.b16 %v5499
    %v5644 = vunpack.c.h.b16 %v5499
    %v5645 = vunpack.c.l.b16 %v5500
    %v5646 = vunpack.c.h.b16 %v5500
    %v5647 = vunpack.c.l.b16 %v5501
    %v5648 = vunpack.c.h.b16 %v5501
    %v5649 = vunpack.c.l.b16 %v5502
    %v5650 = vunpack.c.h.b16 %v5502
    %v5651 = vunpack.c.l.b16 %v5503
    %v5652 = vunpack.c.h.b16 %v5503
    %v5653 = vunpack.c.l.b16 %v5504
    %v5654 = vunpack.c.h.b16 %v5504
    %v5655 = vunpack.c.l.b16 %v5505
    %v5656 = vunpack.c.h.b16 %v5505
    %v5657 = vunpack.c.l.b16 %v5506
    %v5658 = vunpack.c.h.b16 %v5506
    %v5659 = vunpack.c.l.b16 %v5507
    %v5660 = vunpack.c.h.b16 %v5507
    %v5661 = vunpack.c.l.b16 %v5508
    %v5662 = vunpack.c.h.b16 %v5508
    %v5663 = vunpack.c.l.b16 %v5509
    %v5664 = vunpack.c.h.b16 %v5509
    %v5665 = vunpack.c.l.b16 %v5510
    %v5666 = vunpack.c.h.b16 %v5510
    %v5667 = vunpack.c.l.b16 %v5511
    %v5668 = vunpack.c.h.b16 %v5511
    %v5669 = vunpack.c.l.b16 %v5512
    %v5670 = vunpack.c.h.b16 %v5512
    %v5671 = vunpack.c.l.b16 %v5513
    %v5672 = vunpack.c.h.b16 %v5513
    %v5673 = vunpack.c.l.b16 %v5514
    %v5674 = vunpack.c.h.b16 %v5514
    %v5675 = vunpack.c.l.b16 %v5515
    %v5676 = vunpack.c.h.b16 %v5515
    %v5677 = vunpack.c.l.b16 %v5516
    %v5678 = vunpack.c.h.b16 %v5516
    %v5679 = vunpack.c.l.b16 %v5517
    %v5680 = vunpack.c.h.b16 %v5517
    %v5681 = vunpack.c.l.b16 %v5518
    %v5682 = vunpack.c.h.b16 %v5518
    %v5683 = vunpack.c.l.b16 %v5519
    %v5684 = vunpack.c.h.b16 %v5519
    %v5685 = vunpack.c.l.b16 %v5520
    %v5686 = vunpack.c.h.b16 %v5520
    %v5687 = vunpack.c.l.b16 %v5521
    %v5688 = vunpack.c.h.b16 %v5521
    %v5689 = vunpack.c.l.b16 %v5522
    %v5690 = vunpack.c.h.b16 %v5522
    %v5691 = vunpack.c.l.b16 %v5523
    %v5692 = vunpack.c.h.b16 %v5523
    %v5693 = vunpack.c.l.b16 %v5524
    %v5694 = vunpack.c.h.b16 %v5524
    %v5695 = vunpack.c.l.b16 %v5525
    %v5696 = vunpack.c.h.b16 %v5525
    %v5697 = vunpack.c.l.b16 %v5526
    %v5698 = vunpack.c.h.b16 %v5526
    %v5699 = vunpack.c.l.b16 %v5527
    %v5700 = vunpack.c.h.b16 %v5527
    %v5701 = vunpack.c.l.b16 %v5528
    %v5702 = vunpack.c.h.b16 %v5528
    %v5703 = vunpack.c.l.b16 %v5529
    %v5704 = vunpack.c.h.b16 %v5529
    %v5705 = vunpack.c.l.b16 %v5530
    %v5706 = vunpack.c.h.b16 %v5530
    %v5707 = vunpack.c.l.b16 %v5531
    %v5708 = vunpack.c.h.b16 %v5531
    %v5709 = vunpack.c.l.b16 %v5532
    %v5710 = vunpack.c.h.b16 %v5532
    %v5711 = vunpack.c.l.b16 %v5533
    %v5712 = vunpack.c.h.b16 %v5533
    %v5713 = vunpack.c.l.b16 %v5534
    %v5714 = vunpack.c.h.b16 %v5534
    %v5715 = vunpack.c.l.b16 %v5535
    %v5716 = vunpack.c.h.b16 %v5535
    %v5717 = vunpack.c.l.b16 %v5536
    %v5718 = vunpack.c.h.b16 %v5536
    %v5719 = vunpack.c.l.b16 %v5537
    %v5720 = vunpack.c.h.b16 %v5537
    %v5721 = vunpack.c.l.b16 %v5538
    %v5722 = vunpack.c.h.b16 %v5538
    %v5723 = vunpack.c.l.b16 %v5539
    %v5724 = vunpack.c.h.b16 %v5539
    %v5725 = vunpack.c.l.b16 %v5540
    %v5726 = vunpack.c.h.b16 %v5540
    %v5727 = vunpack.c.l.b16 %v5541
    %v5728 = vunpack.c.h.b16 %v5541
    %v5729 = vunpack.c.l.b16 %v5542
    %v5730 = vunpack.c.h.b16 %v5542
    %v5731 = vunpack.c.l.b16 %v5543
    %v5732 = vunpack.c.h.b16 %v5543
    %v5733 = vunpack.c.l.b16 %v5544
    %v5734 = vunpack.c.h.b16 %v5544
    %v5735 = vunpack.c.l.b16 %v5545
    %v5736 = vunpack.c.h.b16 %v5545
    %v5737 = vunpack.c.l.b16 %v5546
    %v5738 = vunpack.c.h.b16 %v5546
    %v5739 = vunpack.c.l.b16 %v5547
    %v5740 = vunpack.c.h.b16 %v5547
    %v5741 = vunpack.c.l.b16 %v5548
    %v5742 = vunpack.c.h.b16 %v5548
    %v5743 = vunpack.c.l.b16 %v5549
    %v5744 = vunpack.c.h.b16 %v5549
    %v5745 = vunpack.c.l.b16 %v5550
    %v5746 = vunpack.c.h.b16 %v5550
    %v5747 = vunpack.c.l.b16 %v5551
    %v5748 = vunpack.c.h.b16 %v5551
    %v5749 = vunpack.c.l.b16 %v5552
    %v5750 = vunpack.c.h.b16 %v5552
    %v5751 = vunpack.c.l.b16 %v5553
    %v5752 = vunpack.c.h.b16 %v5553
    %v5753 = vunpack.c.l.b16 %v5554
    %v5754 = vunpack.c.h.b16 %v5554
    %v5755 = vunpack.c.l.b16 %v5555
    %v5756 = vunpack.c.h.b16 %v5555
    %v5757 = vunpack.c.l.b16 %v5556
    %v5758 = vunpack.c.h.b16 %v5556
    %v5759 = vunpack.c.l.b16 %v5557
    %v5760 = vunpack.c.h.b16 %v5557
    %v5761 = vunpack.c.l.b16 %v5558
    %v5762 = vunpack.c.h.b16 %v5558
    %v5763 = vpack.c.b16 %v5637, %v5635
    %v5764 = vpack.c.b16 %v5638, %v5636
    %v5765 = vpack.c.b16 %v5641, %v5639
    %v5766 = vpack.c.b16 %v5642, %v5640
    %v5767 = vpack.c.b16 %v5645, %v5643
    %v5768 = vpack.c.b16 %v5646, %v5644
    %v5769 = vpack.c.b16 %v5649, %v5647
    %v5770 = vpack.c.b16 %v5650, %v5648
    %v5771 = vpack.c.b16 %v5653, %v5651
    %v5772 = vpack.c.b16 %v5654, %v5652
    %v5773 = vpack.c.b16 %v5657, %v5655
    %v5774 = vpack.c.b16 %v5658, %v5656
    %v5775 = vpack.c.b16 %v5661, %v5659
    %v5776 = vpack.c.b16 %v5662, %v5660
    %v5777 = vpack.c.b16 %v5665, %v5663
    %v5778 = vpack.c.b16 %v5666, %v5664
    %v5779 = vpack.c.b16 %v5669, %v5667
    %v5780 = vpack.c.b16 %v5670, %v5668
    %v5781 = vpack.c.b16 %v5673, %v5671
    %v5782 = vpack.c.b16 %v5674, %v5672
    %v5783 = vpack.c.b16 %v5677, %v5675
    %v5784 = vpack.c.b16 %v5678, %v5676
    %v5785 = vpack.c.b16 %v5681, %v5679
    %v5786 = vpack.c.b16 %v5682, %v5680
    %v5787 = vpack.c.b16 %v5685, %v5683
    %v5788 = vpack.c.b16 %v5686, %v5684
    %v5789 = vpack.c.b16 %v5689, %v5687
    %v5790 = vpack.c.b16 %v5690, %v5688
    %v5791 = vpack.c.b16 %v5693, %v5691
    %v5792 = vpack.c.b16 %v5694, %v5692
    %v5793 = vpack.c.b16 %v5697, %v5695
    %v5794 = vpack.c.b16 %v5698, %v5696
    %v5795 = vpack.c.b16 %v5701, %v5699
    %v5796 = vpack.c.b16 %v5702, %v5700
    %v5797 = vpack.c.b16 %v5705, %v5703
    %v5798 = vpack.c.b16 %v5706, %v5704
    %v5799 = vpack.c.b16 %v5709, %v5707
    %v5800 = vpack.c.b16 %v5710, %v5708
    %v5801 = vpack.c.b16 %v5713, %v5711
    %v5802 = vpack.c.b16 %v5714, %v5712
    %v5803 = vpack.c.b16 %v5717, %v5715
    %v5804 = vpack.c.b16 %v5718, %v5716
    %v5805 = vpack.c.b16 %v5721, %v5719
    %v5806 = vpack.c.b16 %v5722, %v5720
    %v5807 = vpack.c.b16 %v5725, %v5723
    %v5808 = vpack.c.b16 %v5726, %v5724
    %v5809 = vpack.c.b16 %v5729, %v5727
    %v5810 = vpack.c.b16 %v5730, %v5728
    %v5811 = vpack.c.b16 %v5733, %v5731
    %v5812 = vpack.c.b16 %v5734, %v5732
    %v5813 = vpack.c.b16 %v5737, %v5735
    %v5814 = vpack.c.b16 %v5738, %v5736
    %v5815 = vpack.c.b16 %v5741, %v5739
    %v5816 = vpack.c.b16 %v5742, %v5740
    %v5817 = vpack.c.b16 %v5745, %v5743
    %v5818 = vpack.c.b16 %v5746, %v5744
    %v5819 = vpack.c.b16 %v5749, %v5747
    %v5820 = vpack.c.b16 %v5750, %v5748
    %v5821 = vpack.c.b16 %v5753, %v5751
    %v5822 = vpack.c.b16 %v5754, %v5752
    %v5823 = vpack.c.b16 %v5757, %v5755
    %v5824 = vpack.c.b16 %v5758, %v5756
    %v5825 = vpack.c.b16 %v5761, %v5759
    %v5826 = vpack.c.b16 %v5762, %v5760
    %5891 = vmatprep.subr.bf16.mxu0 %v5764
    %5892 = vmatpush1.bf16.msra.mxu0 %v5763
    %5893 = vmatprep.subr.bf16.mxu0 %v5766
    %5894 = vmatpush1.bf16.msra.mxu0 %v5765
    %5895 = vmatprep.subr.bf16.mxu0 %v5768
    %5896 = vmatpush1.bf16.msra.mxu0 %v5767
    %5897 = vmatprep.subr.bf16.mxu0 %v5770
    %5898 = vmatpush1.bf16.msra.mxu0 %v5769
    %5899 = vmatprep.subr.bf16.mxu0 %v5772
    %5900 = vmatpush1.bf16.msra.mxu0 %v5771
    %5901 = vmatprep.subr.bf16.mxu0 %v5774
    %5902 = vmatpush1.bf16.msra.mxu0 %v5773
    %5903 = vmatprep.subr.bf16.mxu0 %v5776
    %5904 = vmatpush1.bf16.msra.mxu0 %v5775
    %5905 = vmatprep.subr.bf16.mxu0 %v5778
    %5906 = vmatpush1.bf16.msra.mxu0 %v5777
    %5907 = vmatprep.subr.bf16.mxu0 %v5780
    %5908 = vmatpush1.bf16.msra.mxu0 %v5779
    %5909 = vmatprep.subr.bf16.mxu0 %v5782
    %5910 = vmatpush1.bf16.msra.mxu0 %v5781
    %5911 = vmatprep.subr.bf16.mxu0 %v5784
    %5912 = vmatpush1.bf16.msra.mxu0 %v5783
    %5913 = vmatprep.subr.bf16.mxu0 %v5786
    %5914 = vmatpush1.bf16.msra.mxu0 %v5785
    %5915 = vmatprep.subr.bf16.mxu0 %v5788
    %5916 = vmatpush1.bf16.msra.mxu0 %v5787
    %5917 = vmatprep.subr.bf16.mxu0 %v5790
    %5918 = vmatpush1.bf16.msra.mxu0 %v5789
    %5919 = vmatprep.subr.bf16.mxu0 %v5792
    %5920 = vmatpush1.bf16.msra.mxu0 %v5791
    %5921 = vmatprep.subr.bf16.mxu0 %v5794
    %5922 = vmatpush1.bf16.msra.mxu0 %v5793
    %5923 = vmatprep.mubr.bf16.mxu0 %v5492
    %5924 = vmatmul.mubr.bf16.gmra.mrb[0].mxu0 %v5491
    %v5925 = vpop.f32.mrb[0].mxu0
    %v5926 = vadd.f32 %v5564, %v5925
    %v5927 = vpop.f32.mrb[0].mxu0
    %v5928 = vadd.f32 %v5568, %v5927
    %v5929 = vpop.f32.mrb[0].mxu0
    %v5930 = vadd.f32 %v5564, %v5929
    %v5931 = vpop.f32.mrb[0].mxu0
    %v5932 = vadd.f32 %v5568, %v5931
    %5933 = vdwg.mxu0
    %5934 = vmatprep.subr.bf16.mxu0 %v5796
    %5935 = vmatpush1.bf16.msra.mxu0 %v5795
    %5936 = vmatprep.subr.bf16.mxu0 %v5798
    %5937 = vmatpush1.bf16.msra.mxu0 %v5797
    %5938 = vmatprep.subr.bf16.mxu0 %v5800
    %5939 = vmatpush1.bf16.msra.mxu0 %v5799
    %5940 = vmatprep.subr.bf16.mxu0 %v5802
    %5941 = vmatpush1.bf16.msra.mxu0 %v5801
    %5942 = vmatprep.subr.bf16.mxu0 %v5804
    %5943 = vmatpush1.bf16.msra.mxu0 %v5803
    %5944 = vmatprep.subr.bf16.mxu0 %v5806
    %5945 = vmatpush1.bf16.msra.mxu0 %v5805
    %5946 = vmatprep.subr.bf16.mxu0 %v5808
    %5947 = vmatpush1.bf16.msra.mxu0 %v5807
    %5948 = vmatprep.subr.bf16.mxu0 %v5810
    %5949 = vmatpush1.bf16.msra.mxu0 %v5809
    %5950 = vmatprep.subr.bf16.mxu0 %v5812
    %5951 = vmatpush1.bf16.msra.mxu0 %v5811
    %5952 = vmatprep.subr.bf16.mxu0 %v5814
    %5953 = vmatpush1.bf16.msra.mxu0 %v5813
    %5954 = vmatprep.subr.bf16.mxu0 %v5816
    %5955 = vmatpush1.bf16.msra.mxu0 %v5815
    %5956 = vmatprep.subr.bf16.mxu0 %v5818
    %5957 = vmatpush1.bf16.msra.mxu0 %v5817
    %5958 = vmatprep.subr.bf16.mxu0 %v5820
    %5959 = vmatpush1.bf16.msra.mxu0 %v5819
    %5960 = vmatprep.subr.bf16.mxu0 %v5822
    %5961 = vmatpush1.bf16.msra.mxu0 %v5821
    %5962 = vmatprep.subr.bf16.mxu0 %v5824
    %5963 = vmatpush1.bf16.msra.mxu0 %v5823
    %5964 = vmatprep.subr.bf16.mxu0 %v5826
    %5965 = vmatpush1.bf16.msra.mxu0 %v5825
    %5966 = vmatprep.mubr.bf16.mxu0 %v5494
    %5967 = vmatmul.mubr.bf16.gmra.mrb[0].mxu0 %v5493
    %v5968 = vpop.f32.mrb[0].mxu0
    %v5969 = vadd.f32 %v5926, %v5968
    %v5970 = vpop.f32.mrb[0].mxu0
    %v5971 = vadd.f32 %v5928, %v5970
    %v5972 = vpop.f32.mrb[0].mxu0
    %v5973 = vadd.f32 %v5930, %v5972
    %v5974 = vpop.f32.mrb[0].mxu0
    %v5975 = vadd.f32 %v5932, %v5974
    %5976 = vdwg.mxu0
    %v5977 = vmul.f32 %v5969, 0.2
    %v5978 = vmul.f32 %v5971, 0.2
    %v5979 = vmul.f32 %v5973, 0.2
    %v5980 = vmul.f32 %v5975, 0.2
    %v5981 = vmax.f32 %v5969, %v5977
    %v5982 = vmax.f32 %v5971, %v5978
    %v5983 = vmax.f32 %v5973, %v5979
    %v5984 = vmax.f32 %v5975, %v5980
    %v5985 = vpack.c.bf16 %v5983, %v5981
    %v5986 = vpack.c.bf16 %v5984, %v5982
    %v5987 = vld [vmem:[#allocation13] sm:$0xf]
    %v5988 = vld [vmem:[#allocation13 + $0x4] sm:$0xf]
    %v5989 = vld [vmem:[#allocation13 + $0x8] sm:$0xf]
    %v5990 = vld [vmem:[#allocation13 + $0xc] sm:$0xf]
    %v5991 = vld [vmem:[#allocation13 + $0x10] sm:$0xf]
    %v5992 = vld [vmem:[#allocation13 + $0x14] sm:$0xf]
    %v5993 = vld [vmem:[#allocation13 + $0x18] sm:$0xf]
    %v5994 = vld [vmem:[#allocation13 + $0x1c] sm:$0xf]
    %v5995 = vld [vmem:[#allocation13 + $0x20] sm:$0xf]
    %v5996 = vld [vmem:[#allocation13 + $0x24] sm:$0xf]
    %v5997 = vld [vmem:[#allocation13 + $0x28] sm:$0xf]
    %v5998 = vld [vmem:[#allocation13 + $0x2c] sm:$0xf]
    %v5999 = vld [vmem:[#allocation13 + $0x30] sm:$0xf]
    %v6000 = vld [vmem:[#allocation13 + $0x34] sm:$0xf]
    %v6001 = vld [vmem:[#allocation13 + $0x38] sm:$0xf]
    %v6002 = vld [vmem:[#allocation13 + $0x3c] sm:$0xf]
    %v6003 = vld [vmem:[#allocation13 + $0x40] sm:$0xf]
    %v6004 = vld [vmem:[#allocation13 + $0x44] sm:$0xf]
    %v6005 = vld [vmem:[#allocation13 + $0x48] sm:$0xf]
    %v6006 = vld [vmem:[#allocation13 + $0x4c] sm:$0xf]
    %v6007 = vld [vmem:[#allocation13 + $0x50] sm:$0xf]
    %v6008 = vld [vmem:[#allocation13 + $0x54] sm:$0xf]
    %v6009 = vld [vmem:[#allocation13 + $0x58] sm:$0xf]
    %v6010 = vld [vmem:[#allocation13 + $0x5c] sm:$0xf]
    %v6011 = vld [vmem:[#allocation13 + $0x60] sm:$0xf]
    %v6012 = vld [vmem:[#allocation13 + $0x64] sm:$0xf]
    %v6013 = vld [vmem:[#allocation13 + $0x68] sm:$0xf]
    %v6014 = vld [vmem:[#allocation13 + $0x6c] sm:$0xf]
    %v6015 = vld [vmem:[#allocation13 + $0x70] sm:$0xf]
    %v6016 = vld [vmem:[#allocation13 + $0x74] sm:$0xf]
    %v6017 = vld [vmem:[#allocation13 + $0x78] sm:$0xf]
    %v6018 = vld [vmem:[#allocation13 + $0x7c] sm:$0xf]
    %v6019 = vld [vmem:[#allocation15] sm:$0x1]
    %v6021 = vlaneseq
    %v6022 = vshrl.u32 %v6021, 7
    %v6023 = vsub.s32 0, %v6022
    %v6024 = vrot.slane %v6019, %v6023
    %v6058 = vunpack.c.l.b16 %v5987
    %v6059 = vunpack.c.l.b16 %v5988
    %v6060 = vunpack.c.l.b16 %v5989
    %v6061 = vunpack.c.l.b16 %v5990
    %v6062 = vunpack.c.l.b16 %v5991
    %v6063 = vunpack.c.l.b16 %v5992
    %v6064 = vunpack.c.l.b16 %v5993
    %v6065 = vunpack.c.l.b16 %v5994
    %v6066 = vunpack.c.l.b16 %v5995
    %v6067 = vunpack.c.l.b16 %v5996
    %v6068 = vunpack.c.l.b16 %v5997
    %v6069 = vunpack.c.l.b16 %v5998
    %v6070 = vunpack.c.l.b16 %v5999
    %v6071 = vunpack.c.l.b16 %v6000
    %v6072 = vunpack.c.l.b16 %v6001
    %v6073 = vunpack.c.l.b16 %v6002
    %v6074 = vunpack.c.l.b16 %v6003
    %v6075 = vunpack.c.l.b16 %v6004
    %v6076 = vunpack.c.l.b16 %v6005
    %v6077 = vunpack.c.l.b16 %v6006
    %v6078 = vunpack.c.l.b16 %v6007
    %v6079 = vunpack.c.l.b16 %v6008
    %v6080 = vunpack.c.l.b16 %v6009
    %v6081 = vunpack.c.l.b16 %v6010
    %v6082 = vunpack.c.l.b16 %v6011
    %v6083 = vunpack.c.l.b16 %v6012
    %v6084 = vunpack.c.l.b16 %v6013
    %v6085 = vunpack.c.l.b16 %v6014
    %v6086 = vunpack.c.l.b16 %v6015
    %v6087 = vunpack.c.l.b16 %v6016
    %v6088 = vunpack.c.l.b16 %v6017
    %v6089 = vunpack.c.l.b16 %v6018
    %v6090 = vpack.c.b16 %v6059, %v6058
    %v6091 = vpack.c.b16 %v6061, %v6060
    %v6092 = vpack.c.b16 %v6063, %v6062
    %v6093 = vpack.c.b16 %v6065, %v6064
    %v6094 = vpack.c.b16 %v6067, %v6066
    %v6095 = vpack.c.b16 %v6069, %v6068
    %v6096 = vpack.c.b16 %v6071, %v6070
    %v6097 = vpack.c.b16 %v6073, %v6072
    %v6098 = vpack.c.b16 %v6075, %v6074
    %v6099 = vpack.c.b16 %v6077, %v6076
    %v6100 = vpack.c.b16 %v6079, %v6078
    %v6101 = vpack.c.b16 %v6081, %v6080
    %v6102 = vpack.c.b16 %v6083, %v6082
    %v6103 = vpack.c.b16 %v6085, %v6084
    %v6104 = vpack.c.b16 %v6087, %v6086
    %v6105 = vpack.c.b16 %v6089, %v6088
    %6122 = vmatprep.subr.bf16.mxu0 0
    %6123 = vmatpush1.bf16.msra.mxu0 %v6090
    %6124 = vmatprep.subr.bf16.mxu0 0
    %6125 = vmatpush1.bf16.msra.mxu0 %v6091
    %6126 = vmatprep.subr.bf16.mxu0 0
    %6127 = vmatpush1.bf16.msra.mxu0 %v6092
    %6128 = vmatprep.subr.bf16.mxu0 0
    %6129 = vmatpush1.bf16.msra.mxu0 %v6093
    %6130 = vmatprep.subr.bf16.mxu0 0
    %6131 = vmatpush1.bf16.msra.mxu0 %v6094
    %6132 = vmatprep.subr.bf16.mxu0 0
    %6133 = vmatpush1.bf16.msra.mxu0 %v6095
    %6134 = vmatprep.subr.bf16.mxu0 0
    %6135 = vmatpush1.bf16.msra.mxu0 %v6096
    %6136 = vmatprep.subr.bf16.mxu0 0
    %6137 = vmatpush1.bf16.msra.mxu0 %v6097
    %6138 = vmatprep.subr.bf16.mxu0 0
    %6139 = vmatpush1.bf16.msra.mxu0 %v6098
    %6140 = vmatprep.subr.bf16.mxu0 0
    %6141 = vmatpush1.bf16.msra.mxu0 %v6099
    %6142 = vmatprep.subr.bf16.mxu0 0
    %6143 = vmatpush1.bf16.msra.mxu0 %v6100
    %6144 = vmatprep.subr.bf16.mxu0 0
    %6145 = vmatpush1.bf16.msra.mxu0 %v6101
    %6146 = vmatprep.subr.bf16.mxu0 0
    %6147 = vmatpush1.bf16.msra.mxu0 %v6102
    %6148 = vmatprep.subr.bf16.mxu0 0
    %6149 = vmatpush1.bf16.msra.mxu0 %v6103
    %6150 = vmatprep.subr.bf16.mxu0 0
    %6151 = vmatpush1.bf16.msra.mxu0 %v6104
    %6152 = vmatprep.subr.bf16.mxu0 0
    %6153 = vmatpush1.bf16.msra.mxu0 %v6105
    %6154 = vmatprep.mubr.bf16.mxu0 %v5986
    %6155 = vmatmul.mubr.bf16.gmra.mrb[0].mxu0 %v5985
    %v6156 = vpop.f32.mrb[0].mxu0
    %v6157 = vadd.f32 %v6024, %v6156
    %v6158 = vpop.f32.mrb[0].mxu0
    %v6159 = vpop.f32.mrb[0].mxu0
    %v6160 = vadd.f32 %v6024, %v6159
    %v6161 = vpop.f32.mrb[0].mxu0
    %6162 = vdwg.mxu0
    %v6163 = vmul.f32 %v6157, 0.2
    %v6164 = vmul.f32 %v6160, 0.2
    %v6165 = vmax.f32 %v6157, %v6163
    %v6166 = vmax.f32 %v6160, %v6164
    %v6167 = vpack.c.bf16 %v6166, %v6165
    %v6168 = vld [vmem:[#allocation16] sm:$0xf]
    %v6169 = vld [vmem:[#allocation16 + $0x4] sm:$0xf]
    %v6170 = vld [vmem:[#allocation16 + $0x8] sm:$0xf]
    %v6171 = vld [vmem:[#allocation16 + $0xc] sm:$0xf]
    %v6172 = vld [vmem:[#allocation16 + $0x10] sm:$0xf]
    %v6173 = vld [vmem:[#allocation16 + $0x14] sm:$0xf]
    %v6174 = vld [vmem:[#allocation16 + $0x18] sm:$0xf]
    %v6175 = vld [vmem:[#allocation16 + $0x1c] sm:$0xf]
    %v6176 = vld [vmem:[#allocation16 + $0x20] sm:$0xf]
    %v6177 = vld [vmem:[#allocation16 + $0x24] sm:$0xf]
    %v6178 = vld [vmem:[#allocation16 + $0x28] sm:$0xf]
    %v6179 = vld [vmem:[#allocation16 + $0x2c] sm:$0xf]
    %v6180 = vld [vmem:[#allocation16 + $0x30] sm:$0xf]
    %v6181 = vld [vmem:[#allocation16 + $0x34] sm:$0xf]
    %v6182 = vld [vmem:[#allocation16 + $0x38] sm:$0xf]
    %v6183 = vld [vmem:[#allocation16 + $0x3c] sm:$0xf]
    %v6184 = vld [vmem:[#allocation18] sm:$0x1]
    %v6186 = vlaneseq
    %v6187 = vshrl.u32 %v6186, 7
    %v6188 = vsub.s32 0, %v6187
    %v6189 = vrot.slane %v6184, %v6188
    %v6207 = vunpack.c.l.b16 %v6168
    %v6208 = vunpack.c.l.b16 %v6169
    %v6209 = vunpack.c.l.b16 %v6170
    %v6210 = vunpack.c.l.b16 %v6171
    %v6211 = vunpack.c.l.b16 %v6172
    %v6212 = vunpack.c.l.b16 %v6173
    %v6213 = vunpack.c.l.b16 %v6174
    %v6214 = vunpack.c.l.b16 %v6175
    %v6215 = vunpack.c.l.b16 %v6176
    %v6216 = vunpack.c.l.b16 %v6177
    %v6217 = vunpack.c.l.b16 %v6178
    %v6218 = vunpack.c.l.b16 %v6179
    %v6219 = vunpack.c.l.b16 %v6180
    %v6220 = vunpack.c.l.b16 %v6181
    %v6221 = vunpack.c.l.b16 %v6182
    %v6222 = vunpack.c.l.b16 %v6183
    %v6223 = vpack.c.b16 %v6208, %v6207
    %v6224 = vpack.c.b16 %v6210, %v6209
    %v6225 = vpack.c.b16 %v6212, %v6211
    %v6226 = vpack.c.b16 %v6214, %v6213
    %v6227 = vpack.c.b16 %v6216, %v6215
    %v6228 = vpack.c.b16 %v6218, %v6217
    %v6229 = vpack.c.b16 %v6220, %v6219
    %v6230 = vpack.c.b16 %v6222, %v6221
    %6239 = vmatprep.subr.bf16.mxu0 0
    %6240 = vmatpush1.bf16.msra.mxu0 %v6223
    %6241 = vmatprep.subr.bf16.mxu0 0
    %6242 = vmatpush1.bf16.msra.mxu0 %v6224
    %6243 = vmatprep.subr.bf16.mxu0 0
    %6244 = vmatpush1.bf16.msra.mxu0 %v6225
    %6245 = vmatprep.subr.bf16.mxu0 0
    %6246 = vmatpush1.bf16.msra.mxu0 %v6226
    %6247 = vmatprep.subr.bf16.mxu0 0
    %6248 = vmatpush1.bf16.msra.mxu0 %v6227
    %6249 = vmatprep.subr.bf16.mxu0 0
    %6250 = vmatpush1.bf16.msra.mxu0 %v6228
    %6251 = vmatprep.subr.bf16.mxu0 0
    %6252 = vmatpush1.bf16.msra.mxu0 %v6229
    %6253 = vmatprep.subr.bf16.mxu0 0
    %6254 = vmatpush1.bf16.msra.mxu0 %v6230
    %6255 = vmatprep.subr.bf16.mxu0 0
    %6256 = vmatpush1.bf16.msra.mxu0 0
    %6257 = vmatprep.subr.bf16.mxu0 0
    %6258 = vmatpush1.bf16.msra.mxu0 0
    %6259 = vmatprep.subr.bf16.mxu0 0
    %6260 = vmatpush1.bf16.msra.mxu0 0
    %6261 = vmatprep.subr.bf16.mxu0 0
    %6262 = vmatpush1.bf16.msra.mxu0 0
    %6263 = vmatprep.subr.bf16.mxu0 0
    %6264 = vmatpush1.bf16.msra.mxu0 0
    %6265 = vmatprep.subr.bf16.mxu0 0
    %6266 = vmatpush1.bf16.msra.mxu0 0
    %6267 = vmatprep.subr.bf16.mxu0 0
    %6268 = vmatpush1.bf16.msra.mxu0 0
    %6269 = vmatprep.subr.bf16.mxu0 0
    %6270 = vmatpush1.bf16.msra.mxu0 0
    %6271 = vmatprep.mubr.bf16.mxu0 0
    %6272 = vmatmul.mubr.bf16.gmra.mrb[0].mxu0 %v6167
    %v6273 = vpop.f32.mrb[0].mxu0
    %v6274 = vadd.f32 %v6189, %v6273
    %v6275 = vpop.f32.mrb[0].mxu0
    %v6276 = vpop.f32.mrb[0].mxu0
    %v6277 = vadd.f32 %v6189, %v6276
    %v6278 = vpop.f32.mrb[0].mxu0
    %6279 = vdwg.mxu0
    %v6280 = vxor.u32 %v6274, 2147483648
    %v6281 = vxor.u32 %v6277, 2147483648
    %v6282 = vmul.f32 %v6280, 1.442695
    %v6283 = vpow.pop %v6282
    %v6284 = vmul.f32 %v6281, 1.442695
    %v6285 = vpow.pop %v6284
    %v6286 = vadd.f32 %v6283, 1.0
    %v6287 = vadd.f32 %v6285, 1.0
    %v6288 = vrcp.pop %v6286
    %v6289 = vmul.f32 1.0, %v6288
    %v6290 = vrcp.pop %v6287
    %v6291 = vmul.f32 1.0, %v6290
    %6292 = vst [vmem:[%s13] sm:$0xff] %v6289
    %6293 = vst [vmem:[%s13 + $0x8] sm:$0xff] %v6291
    // Predicated region
    $region98: #{discriminator_forward.1} parent=1 // pred_check
      _
    $region99: #{discriminator_forward.1} parent=1 // pred_check_branch
      %6295 = sbr.rel (0) target = $region101
    $region100: #{discriminator_forward.1} parent=1 // pred_region
      _
    $region101: #{discriminator_forward.1} parent=1 // pred_fallthru
      _
    // Predicated region
    $region102: #{discriminator_forward.1} parent=1 // pred_check
      _
    $region103: #{discriminator_forward.1} parent=1 // pred_check_branch
      %6297 = sbr.rel (0) target = $region105
    $region104: #{discriminator_forward.1} parent=1 // pred_region
      _
    $region105: #{discriminator_forward.1} parent=1 // pred_fallthru
      _
    %6298 = vsyncpa [#allocation3], 1
    %6299 = vsyncpa [#allocation5], 1
    %6300 = vsyncpa [#allocation8], 1
    %6301 = vsyncpa [#allocation11], 1
    %6302 = vsyncpa [#allocation14], 1
    %6303 = vsyncpa [#allocation17], 1

</llo_original>
